<compile_context>
chip_gen: v7x
topology: tpu7x:2x2x1
jax: 0.10.0
libtpu: 0.0.40
codegen_flags: <defaults>
</compile_context>

<pallas_src>
import functools

import jax
import jax.numpy as jnp
from jax import lax
from jax.experimental import pallas as pl
from jax.experimental.pallas import tpu as pltpu

# ---------------- model hyper-parameters (small, deterministic) ----------------
VOCAB_SIZE = 64
EMBED_DIM = 32
HIDDEN_DIM = 32
NUM_LAYERS = 2
PAD_IDX = 0
BATCH = 2
SEQ = 8


# ---------------- fused Pallas kernel ----------------
def _decoder_kernel(num_layers, seq, batch, hidden, vocab, *refs):
    """Fused embedding gather + multi-layer LSTM recurrence + FC head.

    refs layout:
      inputs : trg(B,S) int32 [SMEM], emb(VOCAB,E), h0(L,B,H), c0(L,B,H),
               [w_ih(In,4H), w_hh(H,4H), b(1,4H)] * L   (gate order i|f|g|o),
               w_fc(H,V), b_fc(1,V)
      outputs: preds(B,S,V), h_n(L,B,H), c_n(L,B,H)
      scratch: pre_sc(S*B,4H) VMEM  (restaged input projection)
    """
    trg_ref, emb_ref, h0_ref, c0_ref = refs[0], refs[1], refs[2], refs[3]
    layer_refs = refs[4:4 + 3 * num_layers]
    w_fc_ref, b_fc_ref = refs[4 + 3 * num_layers], refs[5 + 3 * num_layers]
    n_in = 6 + 3 * num_layers
    preds_ref, hN_ref, cN_ref = refs[n_in], refs[n_in + 1], refs[n_in + 2]
    pre_sc = refs[n_in + 3]

    B, S, H = batch, seq, hidden

    # ---- fused embedding gather: one-hot (S*B, VOCAB) built from SMEM scalars, one MXU dot ----
    iota_v = lax.broadcasted_iota(jnp.int32, (1, vocab), 1)          # (1, VOCAB)
    rows = []
    for t in range(S):                                               # time-major row order
        for b in range(B):
            idx = trg_ref[b, t]                                      # scalar read from SMEM
            rows.append((iota_v == idx).astype(jnp.float32))         # (1, VOCAB)
    onehot = jnp.concatenate(rows, axis=0)                           # (S*B, VOCAB)
    x_in = jnp.dot(onehot, emb_ref[...],
                   preferred_element_type=jnp.float32)               # (S*B, E)

    # ---- lane mask selecting the g-gate lanes [2H, 3H) of the fused (B, 4H) gate block ----
    lane = lax.broadcasted_iota(jnp.int32, (B, 4 * H), 1)
    g_mask = (lane >= 2 * H) & (lane < 3 * H)

    hs = None
    for layer in range(num_layers):
        w_ih_ref = layer_refs[3 * layer + 0]   # (In, 4H)
        w_hh_ref = layer_refs[3 * layer + 1]   # (H, 4H)
        b_ref = layer_refs[3 * layer + 2]      # (1, 4H)   (b_ih + b_hh folded)

        # Input projection for ALL timesteps in one MXU dot (bias folded); restage it into a
        # VMEM scratch so the per-step read is a plain static vld instead of a vreg extract.
        pre_sc[...] = (jnp.dot(x_in, w_ih_ref[...], preferred_element_type=jnp.float32)
                       + b_ref[...])                                 # (S*B, 4H)

        w_hh = w_hh_ref[...]                   # (H, 4H), hoisted out of the time loop
        h = h0_ref[layer]                      # (B, H)
        c = c0_ref[layer]                      # (B, H)

        hs = []
        for t in range(seq):                   # fully unrolled, static time loop
            # One fused recurrent dot per step: (B, H) x (H, 4H) -> lane-dense (B, 4H).
            z = pre_sc[t * B:(t + 1) * B, :] + jnp.dot(
                h, w_hh, preferred_element_type=jnp.float32)
            sig = jax.nn.sigmoid(z)            # whole-block sigmoid (1 EUP push)
            th = jnp.tanh(z)                   # whole-block tanh    (1 EUP push)
            gates = jnp.where(g_mask, th, sig)
            i_t = gates[:, 0:H]
            f_t = gates[:, H:2 * H]
            g_t = gates[:, 2 * H:3 * H]
            o_t = gates[:, 3 * H:4 * H]
            c = f_t * c + i_t * g_t
            h = o_t * jnp.tanh(c)
            hs.append(h)                       # per-step hiddens stay in vregs

        hN_ref[layer] = h                      # final states written once per layer
        cN_ref[layer] = c
        if layer + 1 < num_layers:
            x_in = jnp.concatenate(hs, axis=0)  # (S*B, H): next layer's input, one concat

    # ---- FC head, emitted directly in batch-first (B, S, V) layout ----
    w_fc = w_fc_ref[...]
    b_fc = b_fc_ref[...]
    for b in range(B):
        xb = jnp.concatenate([hs[t][b:b + 1, :] for t in range(seq)], axis=0)  # (S, H)
        preds_ref[b] = jnp.dot(xb, w_fc, preferred_element_type=jnp.float32) + b_fc


# ---------------- Decoder forward (single fused pallas_call, no XLA glue) ----------------
def decoder_forward(params, trg, hidden):
    h0, c0 = hidden                                              # each (L, B, H)
    B, S = trg.shape
    H = h0.shape[-1]
    V = params["w_fc"].shape[-1]

    args = [trg, params["embedding"], h0, c0]
    for layer in range(NUM_LAYERS):
        args += [params["w_ih"][layer], params["w_hh"][layer], params["b"][layer]]
    args += [params["w_fc"], params["b_fc"]]

    in_specs = ([pl.BlockSpec(memory_space=pltpu.MemorySpace.SMEM)]     # trg: scalars in SMEM
                + [pl.BlockSpec(memory_space=pltpu.MemorySpace.VMEM)] * (len(args) - 1))

    out_shapes = (
        jax.ShapeDtypeStruct((B, S, V), jnp.float32),            # preds, batch-first
        jax.ShapeDtypeStruct((NUM_LAYERS, B, H), jnp.float32),   # h_n
        jax.ShapeDtypeStruct((NUM_LAYERS, B, H), jnp.float32),   # c_n
    )
    preds, h_n, c_n = pl.pallas_call(
        functools.partial(_decoder_kernel, NUM_LAYERS, S, B, H, V),
        out_shape=out_shapes,
        in_specs=in_specs,
        scratch_shapes=[pltpu.VMEM((S * B, 4 * H), jnp.float32)],
    )(*args)
    return preds, (h_n, c_n)


decoder_forward_jit = jax.jit(decoder_forward)


# ---------------- pure-JAX reference (for correctness check) ----------------
def reference_forward(params, trg, hidden):
    h0, c0 = hidden
    x = jnp.take(params["embedding"], trg, axis=0)               # (B, S, E)
    hs, cs = [], []
    for layer in range(NUM_LAYERS):
        w_ih = params["w_ih"][layer]
        w_hh = params["w_hh"][layer]
        b = params["b"][layer]

        def step(carry, xt, w_ih=w_ih, w_hh=w_hh, b=b):
            h, c = carry
            gates = xt @ w_ih + h @ w_hh + b
            H = h.shape[-1]
            i_g = jax.nn.sigmoid(gates[:, :H])
            f_g = jax.nn.sigmoid(gates[:, H:2 * H])
            g_g = jnp.tanh(gates[:, 2 * H:3 * H])
            o_g = jax.nn.sigmoid(gates[:, 3 * H:])
            c2 = f_g * c + i_g * g_g
            h2 = o_g * jnp.tanh(c2)
            return (h2, c2), h2

        (h_n, c_n), ys = lax.scan(step, (h0[layer], c0[layer]),
                                  jnp.transpose(x, (1, 0, 2)))
        x = jnp.transpose(ys, (1, 0, 2))
        hs.append(h_n)
        cs.append(c_n)
    preds = x @ params["w_fc"] + params["b_fc"]
    return preds, (jnp.stack(hs), jnp.stack(cs))


# ---------------- deterministic parameter init (kernel-friendly layout, done once) ----------------
def init_params(key):
    keys = jax.random.split(key, 4 + 3 * NUM_LAYERS)
    emb = 0.1 * jax.random.normal(keys[0], (VOCAB_SIZE, EMBED_DIM), jnp.float32)
    emb = emb.at[PAD_IDX].set(0.0)                     # padding_idx row = 0
    w_ih, w_hh, b = [], [], []
    for layer in range(NUM_LAYERS):
        in_dim = EMBED_DIM if layer == 0 else HIDDEN_DIM
        k0, k1, k2 = keys[1 + 3 * layer:4 + 3 * layer]
        # Stored gate-concatenated (i|f|g|o) and input-major — exactly what the kernel consumes.
        w_ih.append(0.1 * jax.random.normal(k0, (in_dim, 4 * HIDDEN_DIM), jnp.float32))
        w_hh.append(0.1 * jax.random.normal(k1, (HIDDEN_DIM, 4 * HIDDEN_DIM), jnp.float32))
        # PyTorch has b_ih + b_hh; fold them into a single bias at load/init time.
        b.append(0.1 * jax.random.normal(k2, (1, 4 * HIDDEN_DIM), jnp.float32))
    w_fc = 0.1 * jax.random.normal(keys[-2], (HIDDEN_DIM, VOCAB_SIZE), jnp.float32)
    b_fc = 0.1 * jax.random.normal(keys[-1], (1, VOCAB_SIZE), jnp.float32)
    return {"embedding": emb, "w_ih": w_ih, "w_hh": w_hh, "b": b,
            "w_fc": w_fc, "b_fc": b_fc}


if __name__ == "__main__":
    key = jax.random.PRNGKey(0)
    k_p, k_t, k_h, k_c = jax.random.split(key, 4)
    params = init_params(k_p)

    trg = jax.random.randint(k_t, (BATCH, SEQ), 0, VOCAB_SIZE, dtype=jnp.int32)
    h0 = 0.1 * jax.random.normal(k_h, (NUM_LAYERS, BATCH, HIDDEN_DIM), jnp.float32)
    c0 = 0.1 * jax.random.normal(k_c, (NUM_LAYERS, BATCH, HIDDEN_DIM), jnp.float32)

    preds, (h_n, c_n) = decoder_forward_jit(params, trg, (h0, c0))
    jax.block_until_ready((preds, h_n, c_n))

    ref_preds, (ref_h, ref_c) = reference_forward(params, trg, (h0, c0))
    assert preds.shape == (BATCH, SEQ, VOCAB_SIZE)
    assert h_n.shape == (NUM_LAYERS, BATCH, HIDDEN_DIM)
    assert c_n.shape == (NUM_LAYERS, BATCH, HIDDEN_DIM)
    assert jnp.allclose(preds, ref_preds, atol=5e-3, rtol=5e-3)
    assert jnp.allclose(h_n, ref_h, atol=5e-3, rtol=5e-3)
    assert jnp.allclose(c_n, ref_c, atol=5e-3, rtol=5e-3)

    print("KERNEL_OK")
</pallas_src>

<mosaic_0001>
module attributes {stable_mosaic.version = 11 : i64} {
  func.func @_decoder_kernel(%arg0: memref<2x8xi32, #tpu.memory_space<smem>>, %arg1: memref<64x32xf32, #tpu.memory_space<vmem>>, %arg2: memref<2x2x32xf32, #tpu.memory_space<vmem>>, %arg3: memref<2x2x32xf32, #tpu.memory_space<vmem>>, %arg4: memref<32x128xf32, #tpu.memory_space<vmem>>, %arg5: memref<32x128xf32, #tpu.memory_space<vmem>>, %arg6: memref<1x128xf32, #tpu.memory_space<vmem>>, %arg7: memref<32x128xf32, #tpu.memory_space<vmem>>, %arg8: memref<32x128xf32, #tpu.memory_space<vmem>>, %arg9: memref<1x128xf32, #tpu.memory_space<vmem>>, %arg10: memref<32x64xf32, #tpu.memory_space<vmem>>, %arg11: memref<1x64xf32, #tpu.memory_space<vmem>>, %arg12: memref<2x8x64xf32, #tpu.memory_space<vmem>>, %arg13: memref<2x2x32xf32, #tpu.memory_space<vmem>>, %arg14: memref<2x2x32xf32, #tpu.memory_space<vmem>>, %arg15: memref<16x128xf32, #tpu.memory_space<vmem>>) attributes {dimension_semantics = [], scalar_prefetch = 0 : i64, scratch_operands = 1 : i64, tpu.core_type = #tpu.core_type<tc>} {
    %0 = tpu.iota {dimensions = array<i32: 1>} : vector<1x64xi32>
    %c0 = arith.constant 0 : index
    %c0_0 = arith.constant 0 : index
    %1 = memref.load %arg0[%c0, %c0_0] : memref<2x8xi32, #tpu.memory_space<smem>>
    %2 = vector.broadcast %1 : i32 to vector<1x64xi32>
    %3 = arith.cmpi eq, %0, %2 : vector<1x64xi32>
    %4 = arith.extui %3 : vector<1x64xi1> to vector<1x64xi32>
    %5 = arith.sitofp %4 : vector<1x64xi32> to vector<1x64xf32>
    %c1 = arith.constant 1 : index
    %c0_1 = arith.constant 0 : index
    %6 = memref.load %arg0[%c1, %c0_1] : memref<2x8xi32, #tpu.memory_space<smem>>
    %7 = vector.broadcast %6 : i32 to vector<1x64xi32>
    %8 = arith.cmpi eq, %0, %7 : vector<1x64xi32>
    %9 = arith.extui %8 : vector<1x64xi1> to vector<1x64xi32>
    %10 = arith.sitofp %9 : vector<1x64xi32> to vector<1x64xf32>
    %c0_2 = arith.constant 0 : index
    %c1_3 = arith.constant 1 : index
    %11 = memref.load %arg0[%c0_2, %c1_3] : memref<2x8xi32, #tpu.memory_space<smem>>
    %12 = vector.broadcast %11 : i32 to vector<1x64xi32>
    %13 = arith.cmpi eq, %0, %12 : vector<1x64xi32>
    %14 = arith.extui %13 : vector<1x64xi1> to vector<1x64xi32>
    %15 = arith.sitofp %14 : vector<1x64xi32> to vector<1x64xf32>
    %c1_4 = arith.constant 1 : index
    %c1_5 = arith.constant 1 : index
    %16 = memref.load %arg0[%c1_4, %c1_5] : memref<2x8xi32, #tpu.memory_space<smem>>
    %17 = vector.broadcast %16 : i32 to vector<1x64xi32>
    %18 = arith.cmpi eq, %0, %17 : vector<1x64xi32>
    %19 = arith.extui %18 : vector<1x64xi1> to vector<1x64xi32>
    %20 = arith.sitofp %19 : vector<1x64xi32> to vector<1x64xf32>
    %c0_6 = arith.constant 0 : index
    %c2 = arith.constant 2 : index
    %21 = memref.load %arg0[%c0_6, %c2] : memref<2x8xi32, #tpu.memory_space<smem>>
    %22 = vector.broadcast %21 : i32 to vector<1x64xi32>
    %23 = arith.cmpi eq, %0, %22 : vector<1x64xi32>
    %24 = arith.extui %23 : vector<1x64xi1> to vector<1x64xi32>
    %25 = arith.sitofp %24 : vector<1x64xi32> to vector<1x64xf32>
    %c1_7 = arith.constant 1 : index
    %c2_8 = arith.constant 2 : index
    %26 = memref.load %arg0[%c1_7, %c2_8] : memref<2x8xi32, #tpu.memory_space<smem>>
    %27 = vector.broadcast %26 : i32 to vector<1x64xi32>
    %28 = arith.cmpi eq, %0, %27 : vector<1x64xi32>
    %29 = arith.extui %28 : vector<1x64xi1> to vector<1x64xi32>
    %30 = arith.sitofp %29 : vector<1x64xi32> to vector<1x64xf32>
    %c0_9 = arith.constant 0 : index
    %c3 = arith.constant 3 : index
    %31 = memref.load %arg0[%c0_9, %c3] : memref<2x8xi32, #tpu.memory_space<smem>>
    %32 = vector.broadcast %31 : i32 to vector<1x64xi32>
    %33 = arith.cmpi eq, %0, %32 : vector<1x64xi32>
    %34 = arith.extui %33 : vector<1x64xi1> to vector<1x64xi32>
    %35 = arith.sitofp %34 : vector<1x64xi32> to vector<1x64xf32>
    %c1_10 = arith.constant 1 : index
    %c3_11 = arith.constant 3 : index
    %36 = memref.load %arg0[%c1_10, %c3_11] : memref<2x8xi32, #tpu.memory_space<smem>>
    %37 = vector.broadcast %36 : i32 to vector<1x64xi32>
    %38 = arith.cmpi eq, %0, %37 : vector<1x64xi32>
    %39 = arith.extui %38 : vector<1x64xi1> to vector<1x64xi32>
    %40 = arith.sitofp %39 : vector<1x64xi32> to vector<1x64xf32>
    %c0_12 = arith.constant 0 : index
    %c4 = arith.constant 4 : index
    %41 = memref.load %arg0[%c0_12, %c4] : memref<2x8xi32, #tpu.memory_space<smem>>
    %42 = vector.broadcast %41 : i32 to vector<1x64xi32>
    %43 = arith.cmpi eq, %0, %42 : vector<1x64xi32>
    %44 = arith.extui %43 : vector<1x64xi1> to vector<1x64xi32>
    %45 = arith.sitofp %44 : vector<1x64xi32> to vector<1x64xf32>
    %c1_13 = arith.constant 1 : index
    %c4_14 = arith.constant 4 : index
    %46 = memref.load %arg0[%c1_13, %c4_14] : memref<2x8xi32, #tpu.memory_space<smem>>
    %47 = vector.broadcast %46 : i32 to vector<1x64xi32>
    %48 = arith.cmpi eq, %0, %47 : vector<1x64xi32>
    %49 = arith.extui %48 : vector<1x64xi1> to vector<1x64xi32>
    %50 = arith.sitofp %49 : vector<1x64xi32> to vector<1x64xf32>
    %c0_15 = arith.constant 0 : index
    %c5 = arith.constant 5 : index
    %51 = memref.load %arg0[%c0_15, %c5] : memref<2x8xi32, #tpu.memory_space<smem>>
    %52 = vector.broadcast %51 : i32 to vector<1x64xi32>
    %53 = arith.cmpi eq, %0, %52 : vector<1x64xi32>
    %54 = arith.extui %53 : vector<1x64xi1> to vector<1x64xi32>
    %55 = arith.sitofp %54 : vector<1x64xi32> to vector<1x64xf32>
    %c1_16 = arith.constant 1 : index
    %c5_17 = arith.constant 5 : index
    %56 = memref.load %arg0[%c1_16, %c5_17] : memref<2x8xi32, #tpu.memory_space<smem>>
    %57 = vector.broadcast %56 : i32 to vector<1x64xi32>
    %58 = arith.cmpi eq, %0, %57 : vector<1x64xi32>
    %59 = arith.extui %58 : vector<1x64xi1> to vector<1x64xi32>
    %60 = arith.sitofp %59 : vector<1x64xi32> to vector<1x64xf32>
    %c0_18 = arith.constant 0 : index
    %c6 = arith.constant 6 : index
    %61 = memref.load %arg0[%c0_18, %c6] : memref<2x8xi32, #tpu.memory_space<smem>>
    %62 = vector.broadcast %61 : i32 to vector<1x64xi32>
    %63 = arith.cmpi eq, %0, %62 : vector<1x64xi32>
    %64 = arith.extui %63 : vector<1x64xi1> to vector<1x64xi32>
    %65 = arith.sitofp %64 : vector<1x64xi32> to vector<1x64xf32>
    %c1_19 = arith.constant 1 : index
    %c6_20 = arith.constant 6 : index
    %66 = memref.load %arg0[%c1_19, %c6_20] : memref<2x8xi32, #tpu.memory_space<smem>>
    %67 = vector.broadcast %66 : i32 to vector<1x64xi32>
    %68 = arith.cmpi eq, %0, %67 : vector<1x64xi32>
    %69 = arith.extui %68 : vector<1x64xi1> to vector<1x64xi32>
    %70 = arith.sitofp %69 : vector<1x64xi32> to vector<1x64xf32>
    %c0_21 = arith.constant 0 : index
    %c7 = arith.constant 7 : index
    %71 = memref.load %arg0[%c0_21, %c7] : memref<2x8xi32, #tpu.memory_space<smem>>
    %72 = vector.broadcast %71 : i32 to vector<1x64xi32>
    %73 = arith.cmpi eq, %0, %72 : vector<1x64xi32>
    %74 = arith.extui %73 : vector<1x64xi1> to vector<1x64xi32>
    %75 = arith.sitofp %74 : vector<1x64xi32> to vector<1x64xf32>
    %c1_22 = arith.constant 1 : index
    %c7_23 = arith.constant 7 : index
    %76 = memref.load %arg0[%c1_22, %c7_23] : memref<2x8xi32, #tpu.memory_space<smem>>
    %77 = vector.broadcast %76 : i32 to vector<1x64xi32>
    %78 = arith.cmpi eq, %0, %77 : vector<1x64xi32>
    %79 = arith.extui %78 : vector<1x64xi1> to vector<1x64xi32>
    %80 = arith.sitofp %79 : vector<1x64xi32> to vector<1x64xf32>
    %81 = tpu.concatenate %5, %10, %15, %20, %25, %30, %35, %40, %45, %50, %55, %60, %65, %70, %75, %80 in 0 : vector<1x64xf32>, vector<1x64xf32>, vector<1x64xf32>, vector<1x64xf32>, vector<1x64xf32>, vector<1x64xf32>, vector<1x64xf32>, vector<1x64xf32>, vector<1x64xf32>, vector<1x64xf32>, vector<1x64xf32>, vector<1x64xf32>, vector<1x64xf32>, vector<1x64xf32>, vector<1x64xf32>, vector<1x64xf32> -> vector<16x64xf32>
    %c0_24 = arith.constant 0 : index
    %c0_25 = arith.constant 0 : index
    %82 = vector.load %arg1[%c0_24, %c0_25] : memref<64x32xf32, #tpu.memory_space<vmem>>, vector<64x32xf32>
    %cst = arith.constant dense<0.000000e+00> : vector<16x32xf32>
    %83 = tpu.matmul %81, %82, %cst {dimension_numbers = #tpu.dot_dimension_numbers<[1], [0], [0], [1], [0, 0, 1, 1], [], []>} : vector<16x64xf32>, vector<64x32xf32>, vector<16x32xf32> -> vector<16x32xf32>
    %84 = tpu.iota {dimensions = array<i32: 1>} : vector<2x128xi32>
    %c64_i32 = arith.constant 64 : i32
    %85 = vector.broadcast %c64_i32 : i32 to vector<2x128xi32>
    %86 = arith.cmpi sge, %84, %85 : vector<2x128xi32>
    %c96_i32 = arith.constant 96 : i32
    %87 = vector.broadcast %c96_i32 : i32 to vector<2x128xi32>
    %88 = arith.cmpi slt, %84, %87 : vector<2x128xi32>
    %89 = arith.andi %86, %88 : vector<2x128xi1>
    %c0_26 = arith.constant 0 : index
    %c0_27 = arith.constant 0 : index
    %90 = vector.load %arg4[%c0_26, %c0_27] : memref<32x128xf32, #tpu.memory_space<vmem>>, vector<32x128xf32>
    %cst_28 = arith.constant dense<0.000000e+00> : vector<16x128xf32>
    %91 = tpu.matmul %83, %90, %cst_28 {dimension_numbers = #tpu.dot_dimension_numbers<[1], [0], [0], [1], [0, 0, 1, 1], [], []>} : vector<16x32xf32>, vector<32x128xf32>, vector<16x128xf32> -> vector<16x128xf32>
    %c0_29 = arith.constant 0 : index
    %c0_30 = arith.constant 0 : index
    %92 = vector.load %arg6[%c0_29, %c0_30] : memref<1x128xf32, #tpu.memory_space<vmem>>, vector<1x128xf32>
    %93 = vector.broadcast %92 : vector<1x128xf32> to vector<16x128xf32>
    %94 = arith.addf %91, %93 : vector<16x128xf32>
    %c0_31 = arith.constant 0 : index
    %c0_32 = arith.constant 0 : index
    %95 = vector.load %arg15[%c0_31, %c0_32] : memref<16x128xf32, #tpu.memory_space<vmem>>, vector<16x128xf32>
    tpu.vector_store %arg15[%c0_31, %c0_32], %94 {strides = array<i32>} : memref<16x128xf32, #tpu.memory_space<vmem>>, vector<16x128xf32>,
    %c0_33 = arith.constant 0 : index
    %c0_34 = arith.constant 0 : index
    %96 = vector.load %arg5[%c0_33, %c0_34] : memref<32x128xf32, #tpu.memory_space<vmem>>, vector<32x128xf32>
    %c0_35 = arith.constant 0 : index
    %c0_36 = arith.constant 0 : index
    %c0_37 = arith.constant 0 : index
    %97 = vector.load %arg2[%c0_35, %c0_36, %c0_37] : memref<2x2x32xf32, #tpu.memory_space<vmem>>, vector<1x2x32xf32>
    %98 = vector.shape_cast %97 : vector<1x2x32xf32> to vector<2x32xf32>
    %c0_38 = arith.constant 0 : index
    %c0_39 = arith.constant 0 : index
    %c0_40 = arith.constant 0 : index
    %99 = vector.load %arg3[%c0_38, %c0_39, %c0_40] : memref<2x2x32xf32, #tpu.memory_space<vmem>>, vector<1x2x32xf32>
    %100 = vector.shape_cast %99 : vector<1x2x32xf32> to vector<2x32xf32>
    %c0_41 = arith.constant 0 : index
    %c0_42 = arith.constant 0 : index
    %101 = vector.load %arg15[%c0_41, %c0_42] : memref<16x128xf32, #tpu.memory_space<vmem>>, vector<2x128xf32>
    %cst_43 = arith.constant dense<0.000000e+00> : vector<2x128xf32>
    %102 = tpu.matmul %98, %96, %cst_43 {dimension_numbers = #tpu.dot_dimension_numbers<[1], [0], [0], [1], [0, 0, 1, 1], [], []>} : vector<2x32xf32>, vector<32x128xf32>, vector<2x128xf32> -> vector<2x128xf32>
    %103 = arith.addf %101, %102 : vector<2x128xf32>
    %104 = arith.negf %103 : vector<2x128xf32>
    %105 = math.exp %104 : vector<2x128xf32>
    %cst_44 = arith.constant 1.000000e+00 : f32
    %106 = vector.broadcast %cst_44 : f32 to vector<2x128xf32>
    %107 = arith.addf %106, %105 : vector<2x128xf32>
    %108 = arith.divf %106, %107 : vector<2x128xf32>
    %109 = math.tanh %103 : vector<2x128xf32>
    %110 = arith.select %89, %109, %108 : vector<2x128xi1>, vector<2x128xf32>
    %111 = vector.extract_strided_slice %110 {offsets = [0, 0], sizes = [2, 32], strides = [1, 1]} : vector<2x128xf32> to vector<2x32xf32>
    %112 = vector.extract_strided_slice %110 {offsets = [0, 32], sizes = [2, 32], strides = [1, 1]} : vector<2x128xf32> to vector<2x32xf32>
    %113 = vector.extract_strided_slice %110 {offsets = [0, 64], sizes = [2, 32], strides = [1, 1]} : vector<2x128xf32> to vector<2x32xf32>
    %114 = vector.extract_strided_slice %110 {offsets = [0, 96], sizes = [2, 32], strides = [1, 1]} : vector<2x128xf32> to vector<2x32xf32>
    %115 = arith.mulf %112, %100 : vector<2x32xf32>
    %116 = arith.mulf %111, %113 : vector<2x32xf32>
    %117 = arith.addf %115, %116 : vector<2x32xf32>
    %118 = math.tanh %117 : vector<2x32xf32>
    %119 = arith.mulf %114, %118 : vector<2x32xf32>
    %c2_45 = arith.constant 2 : index
    %c0_46 = arith.constant 0 : index
    %120 = vector.load %arg15[%c2_45, %c0_46] : memref<16x128xf32, #tpu.memory_space<vmem>>, vector<2x128xf32>
    %cst_47 = arith.constant dense<0.000000e+00> : vector<2x128xf32>
    %121 = tpu.matmul %119, %96, %cst_47 {dimension_numbers = #tpu.dot_dimension_numbers<[1], [0], [0], [1], [0, 0, 1, 1], [], []>} : vector<2x32xf32>, vector<32x128xf32>, vector<2x128xf32> -> vector<2x128xf32>
    %122 = arith.addf %120, %121 : vector<2x128xf32>
    %123 = arith.negf %122 : vector<2x128xf32>
    %124 = math.exp %123 : vector<2x128xf32>
    %cst_48 = arith.constant 1.000000e+00 : f32
    %125 = vector.broadcast %cst_48 : f32 to vector<2x128xf32>
    %126 = arith.addf %125, %124 : vector<2x128xf32>
    %127 = arith.divf %125, %126 : vector<2x128xf32>
    %128 = math.tanh %122 : vector<2x128xf32>
    %129 = arith.select %89, %128, %127 : vector<2x128xi1>, vector<2x128xf32>
    %130 = vector.extract_strided_slice %129 {offsets = [0, 0], sizes = [2, 32], strides = [1, 1]} : vector<2x128xf32> to vector<2x32xf32>
    %131 = vector.extract_strided_slice %129 {offsets = [0, 32], sizes = [2, 32], strides = [1, 1]} : vector<2x128xf32> to vector<2x32xf32>
    %132 = vector.extract_strided_slice %129 {offsets = [0, 64], sizes = [2, 32], strides = [1, 1]} : vector<2x128xf32> to vector<2x32xf32>
    %133 = vector.extract_strided_slice %129 {offsets = [0, 96], sizes = [2, 32], strides = [1, 1]} : vector<2x128xf32> to vector<2x32xf32>
    %134 = arith.mulf %131, %117 : vector<2x32xf32>
    %135 = arith.mulf %130, %132 : vector<2x32xf32>
    %136 = arith.addf %134, %135 : vector<2x32xf32>
    %137 = math.tanh %136 : vector<2x32xf32>
    %138 = arith.mulf %133, %137 : vector<2x32xf32>
    %c4_49 = arith.constant 4 : index
    %c0_50 = arith.constant 0 : index
    %139 = vector.load %arg15[%c4_49, %c0_50] : memref<16x128xf32, #tpu.memory_space<vmem>>, vector<2x128xf32>
    %cst_51 = arith.constant dense<0.000000e+00> : vector<2x128xf32>
    %140 = tpu.matmul %138, %96, %cst_51 {dimension_numbers = #tpu.dot_dimension_numbers<[1], [0], [0], [1], [0, 0, 1, 1], [], []>} : vector<2x32xf32>, vector<32x128xf32>, vector<2x128xf32> -> vector<2x128xf32>
    %141 = arith.addf %139, %140 : vector<2x128xf32>
    %142 = arith.negf %141 : vector<2x128xf32>
    %143 = math.exp %142 : vector<2x128xf32>
    %cst_52 = arith.constant 1.000000e+00 : f32
    %144 = vector.broadcast %cst_52 : f32 to vector<2x128xf32>
    %145 = arith.addf %144, %143 : vector<2x128xf32>
    %146 = arith.divf %144, %145 : vector<2x128xf32>
    %147 = math.tanh %141 : vector<2x128xf32>
    %148 = arith.select %89, %147, %146 : vector<2x128xi1>, vector<2x128xf32>
    %149 = vector.extract_strided_slice %148 {offsets = [0, 0], sizes = [2, 32], strides = [1, 1]} : vector<2x128xf32> to vector<2x32xf32>
    %150 = vector.extract_strided_slice %148 {offsets = [0, 32], sizes = [2, 32], strides = [1, 1]} : vector<2x128xf32> to vector<2x32xf32>
    %151 = vector.extract_strided_slice %148 {offsets = [0, 64], sizes = [2, 32], strides = [1, 1]} : vector<2x128xf32> to vector<2x32xf32>
    %152 = vector.extract_strided_slice %148 {offsets = [0, 96], sizes = [2, 32], strides = [1, 1]} : vector<2x128xf32> to vector<2x32xf32>
    %153 = arith.mulf %150, %136 : vector<2x32xf32>
    %154 = arith.mulf %149, %151 : vector<2x32xf32>
    %155 = arith.addf %153, %154 : vector<2x32xf32>
    %156 = math.tanh %155 : vector<2x32xf32>
    %157 = arith.mulf %152, %156 : vector<2x32xf32>
    %c6_53 = arith.constant 6 : index
    %c0_54 = arith.constant 0 : index
    %158 = vector.load %arg15[%c6_53, %c0_54] : memref<16x128xf32, #tpu.memory_space<vmem>>, vector<2x128xf32>
    %cst_55 = arith.constant dense<0.000000e+00> : vector<2x128xf32>
    %159 = tpu.matmul %157, %96, %cst_55 {dimension_numbers = #tpu.dot_dimension_numbers<[1], [0], [0], [1], [0, 0, 1, 1], [], []>} : vector<2x32xf32>, vector<32x128xf32>, vector<2x128xf32> -> vector<2x128xf32>
    %160 = arith.addf %158, %159 : vector<2x128xf32>
    %161 = arith.negf %160 : vector<2x128xf32>
    %162 = math.exp %161 : vector<2x128xf32>
    %cst_56 = arith.constant 1.000000e+00 : f32
    %163 = vector.broadcast %cst_56 : f32 to vector<2x128xf32>
    %164 = arith.addf %163, %162 : vector<2x128xf32>
    %165 = arith.divf %163, %164 : vector<2x128xf32>
    %166 = math.tanh %160 : vector<2x128xf32>
    %167 = arith.select %89, %166, %165 : vector<2x128xi1>, vector<2x128xf32>
    %168 = vector.extract_strided_slice %167 {offsets = [0, 0], sizes = [2, 32], strides = [1, 1]} : vector<2x128xf32> to vector<2x32xf32>
    %169 = vector.extract_strided_slice %167 {offsets = [0, 32], sizes = [2, 32], strides = [1, 1]} : vector<2x128xf32> to vector<2x32xf32>
    %170 = vector.extract_strided_slice %167 {offsets = [0, 64], sizes = [2, 32], strides = [1, 1]} : vector<2x128xf32> to vector<2x32xf32>
    %171 = vector.extract_strided_slice %167 {offsets = [0, 96], sizes = [2, 32], strides = [1, 1]} : vector<2x128xf32> to vector<2x32xf32>
    %172 = arith.mulf %169, %155 : vector<2x32xf32>
    %173 = arith.mulf %168, %170 : vector<2x32xf32>
    %174 = arith.addf %172, %173 : vector<2x32xf32>
    %175 = math.tanh %174 : vector<2x32xf32>
    %176 = arith.mulf %171, %175 : vector<2x32xf32>
    %c8 = arith.constant 8 : index
    %c0_57 = arith.constant 0 : index
    %177 = vector.load %arg15[%c8, %c0_57] : memref<16x128xf32, #tpu.memory_space<vmem>>, vector<2x128xf32>
    %cst_58 = arith.constant dense<0.000000e+00> : vector<2x128xf32>
    %178 = tpu.matmul %176, %96, %cst_58 {dimension_numbers = #tpu.dot_dimension_numbers<[1], [0], [0], [1], [0, 0, 1, 1], [], []>} : vector<2x32xf32>, vector<32x128xf32>, vector<2x128xf32> -> vector<2x128xf32>
    %179 = arith.addf %177, %178 : vector<2x128xf32>
    %180 = arith.negf %179 : vector<2x128xf32>
    %181 = math.exp %180 : vector<2x128xf32>
    %cst_59 = arith.constant 1.000000e+00 : f32
    %182 = vector.broadcast %cst_59 : f32 to vector<2x128xf32>
    %183 = arith.addf %182, %181 : vector<2x128xf32>
    %184 = arith.divf %182, %183 : vector<2x128xf32>
    %185 = math.tanh %179 : vector<2x128xf32>
    %186 = arith.select %89, %185, %184 : vector<2x128xi1>, vector<2x128xf32>
    %187 = vector.extract_strided_slice %186 {offsets = [0, 0], sizes = [2, 32], strides = [1, 1]} : vector<2x128xf32> to vector<2x32xf32>
    %188 = vector.extract_strided_slice %186 {offsets = [0, 32], sizes = [2, 32], strides = [1, 1]} : vector<2x128xf32> to vector<2x32xf32>
    %189 = vector.extract_strided_slice %186 {offsets = [0, 64], sizes = [2, 32], strides = [1, 1]} : vector<2x128xf32> to vector<2x32xf32>
    %190 = vector.extract_strided_slice %186 {offsets = [0, 96], sizes = [2, 32], strides = [1, 1]} : vector<2x128xf32> to vector<2x32xf32>
    %191 = arith.mulf %188, %174 : vector<2x32xf32>
    %192 = arith.mulf %187, %189 : vector<2x32xf32>
    %193 = arith.addf %191, %192 : vector<2x32xf32>
    %194 = math.tanh %193 : vector<2x32xf32>
    %195 = arith.mulf %190, %194 : vector<2x32xf32>
    %c10 = arith.constant 10 : index
    %c0_60 = arith.constant 0 : index
    %196 = vector.load %arg15[%c10, %c0_60] : memref<16x128xf32, #tpu.memory_space<vmem>>, vector<2x128xf32>
    %cst_61 = arith.constant dense<0.000000e+00> : vector<2x128xf32>
    %197 = tpu.matmul %195, %96, %cst_61 {dimension_numbers = #tpu.dot_dimension_numbers<[1], [0], [0], [1], [0, 0, 1, 1], [], []>} : vector<2x32xf32>, vector<32x128xf32>, vector<2x128xf32> -> vector<2x128xf32>
    %198 = arith.addf %196, %197 : vector<2x128xf32>
    %199 = arith.negf %198 : vector<2x128xf32>
    %200 = math.exp %199 : vector<2x128xf32>
    %cst_62 = arith.constant 1.000000e+00 : f32
    %201 = vector.broadcast %cst_62 : f32 to vector<2x128xf32>
    %202 = arith.addf %201, %200 : vector<2x128xf32>
    %203 = arith.divf %201, %202 : vector<2x128xf32>
    %204 = math.tanh %198 : vector<2x128xf32>
    %205 = arith.select %89, %204, %203 : vector<2x128xi1>, vector<2x128xf32>
    %206 = vector.extract_strided_slice %205 {offsets = [0, 0], sizes = [2, 32], strides = [1, 1]} : vector<2x128xf32> to vector<2x32xf32>
    %207 = vector.extract_strided_slice %205 {offsets = [0, 32], sizes = [2, 32], strides = [1, 1]} : vector<2x128xf32> to vector<2x32xf32>
    %208 = vector.extract_strided_slice %205 {offsets = [0, 64], sizes = [2, 32], strides = [1, 1]} : vector<2x128xf32> to vector<2x32xf32>
    %209 = vector.extract_strided_slice %205 {offsets = [0, 96], sizes = [2, 32], strides = [1, 1]} : vector<2x128xf32> to vector<2x32xf32>
    %210 = arith.mulf %207, %193 : vector<2x32xf32>
    %211 = arith.mulf %206, %208 : vector<2x32xf32>
    %212 = arith.addf %210, %211 : vector<2x32xf32>
    %213 = math.tanh %212 : vector<2x32xf32>
    %214 = arith.mulf %209, %213 : vector<2x32xf32>
    %c12 = arith.constant 12 : index
    %c0_63 = arith.constant 0 : index
    %215 = vector.load %arg15[%c12, %c0_63] : memref<16x128xf32, #tpu.memory_space<vmem>>, vector<2x128xf32>
    %cst_64 = arith.constant dense<0.000000e+00> : vector<2x128xf32>
    %216 = tpu.matmul %214, %96, %cst_64 {dimension_numbers = #tpu.dot_dimension_numbers<[1], [0], [0], [1], [0, 0, 1, 1], [], []>} : vector<2x32xf32>, vector<32x128xf32>, vector<2x128xf32> -> vector<2x128xf32>
    %217 = arith.addf %215, %216 : vector<2x128xf32>
    %218 = arith.negf %217 : vector<2x128xf32>
    %219 = math.exp %218 : vector<2x128xf32>
    %cst_65 = arith.constant 1.000000e+00 : f32
    %220 = vector.broadcast %cst_65 : f32 to vector<2x128xf32>
    %221 = arith.addf %220, %219 : vector<2x128xf32>
    %222 = arith.divf %220, %221 : vector<2x128xf32>
    %223 = math.tanh %217 : vector<2x128xf32>
    %224 = arith.select %89, %223, %222 : vector<2x128xi1>, vector<2x128xf32>
    %225 = vector.extract_strided_slice %224 {offsets = [0, 0], sizes = [2, 32], strides = [1, 1]} : vector<2x128xf32> to vector<2x32xf32>
    %226 = vector.extract_strided_slice %224 {offsets = [0, 32], sizes = [2, 32], strides = [1, 1]} : vector<2x128xf32> to vector<2x32xf32>
    %227 = vector.extract_strided_slice %224 {offsets = [0, 64], sizes = [2, 32], strides = [1, 1]} : vector<2x128xf32> to vector<2x32xf32>
    %228 = vector.extract_strided_slice %224 {offsets = [0, 96], sizes = [2, 32], strides = [1, 1]} : vector<2x128xf32> to vector<2x32xf32>
    %229 = arith.mulf %226, %212 : vector<2x32xf32>
    %230 = arith.mulf %225, %227 : vector<2x32xf32>
    %231 = arith.addf %229, %230 : vector<2x32xf32>
    %232 = math.tanh %231 : vector<2x32xf32>
    %233 = arith.mulf %228, %232 : vector<2x32xf32>
    %c14 = arith.constant 14 : index
    %c0_66 = arith.constant 0 : index
    %234 = vector.load %arg15[%c14, %c0_66] : memref<16x128xf32, #tpu.memory_space<vmem>>, vector<2x128xf32>
    %cst_67 = arith.constant dense<0.000000e+00> : vector<2x128xf32>
    %235 = tpu.matmul %233, %96, %cst_67 {dimension_numbers = #tpu.dot_dimension_numbers<[1], [0], [0], [1], [0, 0, 1, 1], [], []>} : vector<2x32xf32>, vector<32x128xf32>, vector<2x128xf32> -> vector<2x128xf32>
    %236 = arith.addf %234, %235 : vector<2x128xf32>
    %237 = arith.negf %236 : vector<2x128xf32>
    %238 = math.exp %237 : vector<2x128xf32>
    %cst_68 = arith.constant 1.000000e+00 : f32
    %239 = vector.broadcast %cst_68 : f32 to vector<2x128xf32>
    %240 = arith.addf %239, %238 : vector<2x128xf32>
    %241 = arith.divf %239, %240 : vector<2x128xf32>
    %242 = math.tanh %236 : vector<2x128xf32>
    %243 = arith.select %89, %242, %241 : vector<2x128xi1>, vector<2x128xf32>
    %244 = vector.extract_strided_slice %243 {offsets = [0, 0], sizes = [2, 32], strides = [1, 1]} : vector<2x128xf32> to vector<2x32xf32>
    %245 = vector.extract_strided_slice %243 {offsets = [0, 32], sizes = [2, 32], strides = [1, 1]} : vector<2x128xf32> to vector<2x32xf32>
    %246 = vector.extract_strided_slice %243 {offsets = [0, 64], sizes = [2, 32], strides = [1, 1]} : vector<2x128xf32> to vector<2x32xf32>
    %247 = vector.extract_strided_slice %243 {offsets = [0, 96], sizes = [2, 32], strides = [1, 1]} : vector<2x128xf32> to vector<2x32xf32>
    %248 = arith.mulf %245, %231 : vector<2x32xf32>
    %249 = arith.mulf %244, %246 : vector<2x32xf32>
    %250 = arith.addf %248, %249 : vector<2x32xf32>
    %251 = math.tanh %250 : vector<2x32xf32>
    %252 = arith.mulf %247, %251 : vector<2x32xf32>
    %c0_69 = arith.constant 0 : index
    %c0_70 = arith.constant 0 : index
    %c0_71 = arith.constant 0 : index
    %253 = vector.load %arg13[%c0_69, %c0_70, %c0_71] : memref<2x2x32xf32, #tpu.memory_space<vmem>>, vector<1x2x32xf32>
    %254 = vector.shape_cast %253 : vector<1x2x32xf32> to vector<2x32xf32>
    %255 = vector.shape_cast %252 : vector<2x32xf32> to vector<1x2x32xf32>
    tpu.vector_store %arg13[%c0_69, %c0_70, %c0_71], %255 {strides = array<i32>} : memref<2x2x32xf32, #tpu.memory_space<vmem>>, vector<1x2x32xf32>,
    %c0_72 = arith.constant 0 : index
    %c0_73 = arith.constant 0 : index
    %c0_74 = arith.constant 0 : index
    %256 = vector.load %arg14[%c0_72, %c0_73, %c0_74] : memref<2x2x32xf32, #tpu.memory_space<vmem>>, vector<1x2x32xf32>
    %257 = vector.shape_cast %256 : vector<1x2x32xf32> to vector<2x32xf32>
    %258 = vector.shape_cast %250 : vector<2x32xf32> to vector<1x2x32xf32>
    tpu.vector_store %arg14[%c0_72, %c0_73, %c0_74], %258 {strides = array<i32>} : memref<2x2x32xf32, #tpu.memory_space<vmem>>, vector<1x2x32xf32>,
    %259 = tpu.concatenate %119, %138, %157, %176, %195, %214, %233, %252 in 0 : vector<2x32xf32>, vector<2x32xf32>, vector<2x32xf32>, vector<2x32xf32>, vector<2x32xf32>, vector<2x32xf32>, vector<2x32xf32>, vector<2x32xf32> -> vector<16x32xf32>
    %c0_75 = arith.constant 0 : index
    %c0_76 = arith.constant 0 : index
    %260 = vector.load %arg7[%c0_75, %c0_76] : memref<32x128xf32, #tpu.memory_space<vmem>>, vector<32x128xf32>
    %cst_77 = arith.constant dense<0.000000e+00> : vector<16x128xf32>
    %261 = tpu.matmul %259, %260, %cst_77 {dimension_numbers = #tpu.dot_dimension_numbers<[1], [0], [0], [1], [0, 0, 1, 1], [], []>} : vector<16x32xf32>, vector<32x128xf32>, vector<16x128xf32> -> vector<16x128xf32>
    %c0_78 = arith.constant 0 : index
    %c0_79 = arith.constant 0 : index
    %262 = vector.load %arg9[%c0_78, %c0_79] : memref<1x128xf32, #tpu.memory_space<vmem>>, vector<1x128xf32>
    %263 = vector.broadcast %262 : vector<1x128xf32> to vector<16x128xf32>
    %264 = arith.addf %261, %263 : vector<16x128xf32>
    %c0_80 = arith.constant 0 : index
    %c0_81 = arith.constant 0 : index
    %265 = vector.load %arg15[%c0_80, %c0_81] : memref<16x128xf32, #tpu.memory_space<vmem>>, vector<16x128xf32>
    tpu.vector_store %arg15[%c0_80, %c0_81], %264 {strides = array<i32>} : memref<16x128xf32, #tpu.memory_space<vmem>>, vector<16x128xf32>,
    %c0_82 = arith.constant 0 : index
    %c0_83 = arith.constant 0 : index
    %266 = vector.load %arg8[%c0_82, %c0_83] : memref<32x128xf32, #tpu.memory_space<vmem>>, vector<32x128xf32>
    %c1_84 = arith.constant 1 : index
    %c0_85 = arith.constant 0 : index
    %c0_86 = arith.constant 0 : index
    %267 = vector.load %arg2[%c1_84, %c0_85, %c0_86] : memref<2x2x32xf32, #tpu.memory_space<vmem>>, vector<1x2x32xf32>
    %268 = vector.shape_cast %267 : vector<1x2x32xf32> to vector<2x32xf32>
    %c1_87 = arith.constant 1 : index
    %c0_88 = arith.constant 0 : index
    %c0_89 = arith.constant 0 : index
    %269 = vector.load %arg3[%c1_87, %c0_88, %c0_89] : memref<2x2x32xf32, #tpu.memory_space<vmem>>, vector<1x2x32xf32>
    %270 = vector.shape_cast %269 : vector<1x2x32xf32> to vector<2x32xf32>
    %c0_90 = arith.constant 0 : index
    %c0_91 = arith.constant 0 : index
    %271 = vector.load %arg15[%c0_90, %c0_91] : memref<16x128xf32, #tpu.memory_space<vmem>>, vector<2x128xf32>
    %cst_92 = arith.constant dense<0.000000e+00> : vector<2x128xf32>
    %272 = tpu.matmul %268, %266, %cst_92 {dimension_numbers = #tpu.dot_dimension_numbers<[1], [0], [0], [1], [0, 0, 1, 1], [], []>} : vector<2x32xf32>, vector<32x128xf32>, vector<2x128xf32> -> vector<2x128xf32>
    %273 = arith.addf %271, %272 : vector<2x128xf32>
    %274 = arith.negf %273 : vector<2x128xf32>
    %275 = math.exp %274 : vector<2x128xf32>
    %cst_93 = arith.constant 1.000000e+00 : f32
    %276 = vector.broadcast %cst_93 : f32 to vector<2x128xf32>
    %277 = arith.addf %276, %275 : vector<2x128xf32>
    %278 = arith.divf %276, %277 : vector<2x128xf32>
    %279 = math.tanh %273 : vector<2x128xf32>
    %280 = arith.select %89, %279, %278 : vector<2x128xi1>, vector<2x128xf32>
    %281 = vector.extract_strided_slice %280 {offsets = [0, 0], sizes = [2, 32], strides = [1, 1]} : vector<2x128xf32> to vector<2x32xf32>
    %282 = vector.extract_strided_slice %280 {offsets = [0, 32], sizes = [2, 32], strides = [1, 1]} : vector<2x128xf32> to vector<2x32xf32>
    %283 = vector.extract_strided_slice %280 {offsets = [0, 64], sizes = [2, 32], strides = [1, 1]} : vector<2x128xf32> to vector<2x32xf32>
    %284 = vector.extract_strided_slice %280 {offsets = [0, 96], sizes = [2, 32], strides = [1, 1]} : vector<2x128xf32> to vector<2x32xf32>
    %285 = arith.mulf %282, %270 : vector<2x32xf32>
    %286 = arith.mulf %281, %283 : vector<2x32xf32>
    %287 = arith.addf %285, %286 : vector<2x32xf32>
    %288 = math.tanh %287 : vector<2x32xf32>
    %289 = arith.mulf %284, %288 : vector<2x32xf32>
    %c2_94 = arith.constant 2 : index
    %c0_95 = arith.constant 0 : index
    %290 = vector.load %arg15[%c2_94, %c0_95] : memref<16x128xf32, #tpu.memory_space<vmem>>, vector<2x128xf32>
    %cst_96 = arith.constant dense<0.000000e+00> : vector<2x128xf32>
    %291 = tpu.matmul %289, %266, %cst_96 {dimension_numbers = #tpu.dot_dimension_numbers<[1], [0], [0], [1], [0, 0, 1, 1], [], []>} : vector<2x32xf32>, vector<32x128xf32>, vector<2x128xf32> -> vector<2x128xf32>
    %292 = arith.addf %290, %291 : vector<2x128xf32>
    %293 = arith.negf %292 : vector<2x128xf32>
    %294 = math.exp %293 : vector<2x128xf32>
    %cst_97 = arith.constant 1.000000e+00 : f32
    %295 = vector.broadcast %cst_97 : f32 to vector<2x128xf32>
    %296 = arith.addf %295, %294 : vector<2x128xf32>
    %297 = arith.divf %295, %296 : vector<2x128xf32>
    %298 = math.tanh %292 : vector<2x128xf32>
    %299 = arith.select %89, %298, %297 : vector<2x128xi1>, vector<2x128xf32>
    %300 = vector.extract_strided_slice %299 {offsets = [0, 0], sizes = [2, 32], strides = [1, 1]} : vector<2x128xf32> to vector<2x32xf32>
    %301 = vector.extract_strided_slice %299 {offsets = [0, 32], sizes = [2, 32], strides = [1, 1]} : vector<2x128xf32> to vector<2x32xf32>
    %302 = vector.extract_strided_slice %299 {offsets = [0, 64], sizes = [2, 32], strides = [1, 1]} : vector<2x128xf32> to vector<2x32xf32>
    %303 = vector.extract_strided_slice %299 {offsets = [0, 96], sizes = [2, 32], strides = [1, 1]} : vector<2x128xf32> to vector<2x32xf32>
    %304 = arith.mulf %301, %287 : vector<2x32xf32>
    %305 = arith.mulf %300, %302 : vector<2x32xf32>
    %306 = arith.addf %304, %305 : vector<2x32xf32>
    %307 = math.tanh %306 : vector<2x32xf32>
    %308 = arith.mulf %303, %307 : vector<2x32xf32>
    %c4_98 = arith.constant 4 : index
    %c0_99 = arith.constant 0 : index
    %309 = vector.load %arg15[%c4_98, %c0_99] : memref<16x128xf32, #tpu.memory_space<vmem>>, vector<2x128xf32>
    %cst_100 = arith.constant dense<0.000000e+00> : vector<2x128xf32>
    %310 = tpu.matmul %308, %266, %cst_100 {dimension_numbers = #tpu.dot_dimension_numbers<[1], [0], [0], [1], [0, 0, 1, 1], [], []>} : vector<2x32xf32>, vector<32x128xf32>, vector<2x128xf32> -> vector<2x128xf32>
    %311 = arith.addf %309, %310 : vector<2x128xf32>
    %312 = arith.negf %311 : vector<2x128xf32>
    %313 = math.exp %312 : vector<2x128xf32>
    %cst_101 = arith.constant 1.000000e+00 : f32
    %314 = vector.broadcast %cst_101 : f32 to vector<2x128xf32>
    %315 = arith.addf %314, %313 : vector<2x128xf32>
    %316 = arith.divf %314, %315 : vector<2x128xf32>
    %317 = math.tanh %311 : vector<2x128xf32>
    %318 = arith.select %89, %317, %316 : vector<2x128xi1>, vector<2x128xf32>
    %319 = vector.extract_strided_slice %318 {offsets = [0, 0], sizes = [2, 32], strides = [1, 1]} : vector<2x128xf32> to vector<2x32xf32>
    %320 = vector.extract_strided_slice %318 {offsets = [0, 32], sizes = [2, 32], strides = [1, 1]} : vector<2x128xf32> to vector<2x32xf32>
    %321 = vector.extract_strided_slice %318 {offsets = [0, 64], sizes = [2, 32], strides = [1, 1]} : vector<2x128xf32> to vector<2x32xf32>
    %322 = vector.extract_strided_slice %318 {offsets = [0, 96], sizes = [2, 32], strides = [1, 1]} : vector<2x128xf32> to vector<2x32xf32>
    %323 = arith.mulf %320, %306 : vector<2x32xf32>
    %324 = arith.mulf %319, %321 : vector<2x32xf32>
    %325 = arith.addf %323, %324 : vector<2x32xf32>
    %326 = math.tanh %325 : vector<2x32xf32>
    %327 = arith.mulf %322, %326 : vector<2x32xf32>
    %c6_102 = arith.constant 6 : index
    %c0_103 = arith.constant 0 : index
    %328 = vector.load %arg15[%c6_102, %c0_103] : memref<16x128xf32, #tpu.memory_space<vmem>>, vector<2x128xf32>
    %cst_104 = arith.constant dense<0.000000e+00> : vector<2x128xf32>
    %329 = tpu.matmul %327, %266, %cst_104 {dimension_numbers = #tpu.dot_dimension_numbers<[1], [0], [0], [1], [0, 0, 1, 1], [], []>} : vector<2x32xf32>, vector<32x128xf32>, vector<2x128xf32> -> vector<2x128xf32>
    %330 = arith.addf %328, %329 : vector<2x128xf32>
    %331 = arith.negf %330 : vector<2x128xf32>
    %332 = math.exp %331 : vector<2x128xf32>
    %cst_105 = arith.constant 1.000000e+00 : f32
    %333 = vector.broadcast %cst_105 : f32 to vector<2x128xf32>
    %334 = arith.addf %333, %332 : vector<2x128xf32>
    %335 = arith.divf %333, %334 : vector<2x128xf32>
    %336 = math.tanh %330 : vector<2x128xf32>
    %337 = arith.select %89, %336, %335 : vector<2x128xi1>, vector<2x128xf32>
    %338 = vector.extract_strided_slice %337 {offsets = [0, 0], sizes = [2, 32], strides = [1, 1]} : vector<2x128xf32> to vector<2x32xf32>
    %339 = vector.extract_strided_slice %337 {offsets = [0, 32], sizes = [2, 32], strides = [1, 1]} : vector<2x128xf32> to vector<2x32xf32>
    %340 = vector.extract_strided_slice %337 {offsets = [0, 64], sizes = [2, 32], strides = [1, 1]} : vector<2x128xf32> to vector<2x32xf32>
    %341 = vector.extract_strided_slice %337 {offsets = [0, 96], sizes = [2, 32], strides = [1, 1]} : vector<2x128xf32> to vector<2x32xf32>
    %342 = arith.mulf %339, %325 : vector<2x32xf32>
    %343 = arith.mulf %338, %340 : vector<2x32xf32>
    %344 = arith.addf %342, %343 : vector<2x32xf32>
    %345 = math.tanh %344 : vector<2x32xf32>
    %346 = arith.mulf %341, %345 : vector<2x32xf32>
    %c8_106 = arith.constant 8 : index
    %c0_107 = arith.constant 0 : index
    %347 = vector.load %arg15[%c8_106, %c0_107] : memref<16x128xf32, #tpu.memory_space<vmem>>, vector<2x128xf32>
    %cst_108 = arith.constant dense<0.000000e+00> : vector<2x128xf32>
    %348 = tpu.matmul %346, %266, %cst_108 {dimension_numbers = #tpu.dot_dimension_numbers<[1], [0], [0], [1], [0, 0, 1, 1], [], []>} : vector<2x32xf32>, vector<32x128xf32>, vector<2x128xf32> -> vector<2x128xf32>
    %349 = arith.addf %347, %348 : vector<2x128xf32>
    %350 = arith.negf %349 : vector<2x128xf32>
    %351 = math.exp %350 : vector<2x128xf32>
    %cst_109 = arith.constant 1.000000e+00 : f32
    %352 = vector.broadcast %cst_109 : f32 to vector<2x128xf32>
    %353 = arith.addf %352, %351 : vector<2x128xf32>
    %354 = arith.divf %352, %353 : vector<2x128xf32>
    %355 = math.tanh %349 : vector<2x128xf32>
    %356 = arith.select %89, %355, %354 : vector<2x128xi1>, vector<2x128xf32>
    %357 = vector.extract_strided_slice %356 {offsets = [0, 0], sizes = [2, 32], strides = [1, 1]} : vector<2x128xf32> to vector<2x32xf32>
    %358 = vector.extract_strided_slice %356 {offsets = [0, 32], sizes = [2, 32], strides = [1, 1]} : vector<2x128xf32> to vector<2x32xf32>
    %359 = vector.extract_strided_slice %356 {offsets = [0, 64], sizes = [2, 32], strides = [1, 1]} : vector<2x128xf32> to vector<2x32xf32>
    %360 = vector.extract_strided_slice %356 {offsets = [0, 96], sizes = [2, 32], strides = [1, 1]} : vector<2x128xf32> to vector<2x32xf32>
    %361 = arith.mulf %358, %344 : vector<2x32xf32>
    %362 = arith.mulf %357, %359 : vector<2x32xf32>
    %363 = arith.addf %361, %362 : vector<2x32xf32>
    %364 = math.tanh %363 : vector<2x32xf32>
    %365 = arith.mulf %360, %364 : vector<2x32xf32>
    %c10_110 = arith.constant 10 : index
    %c0_111 = arith.constant 0 : index
    %366 = vector.load %arg15[%c10_110, %c0_111] : memref<16x128xf32, #tpu.memory_space<vmem>>, vector<2x128xf32>
    %cst_112 = arith.constant dense<0.000000e+00> : vector<2x128xf32>
    %367 = tpu.matmul %365, %266, %cst_112 {dimension_numbers = #tpu.dot_dimension_numbers<[1], [0], [0], [1], [0, 0, 1, 1], [], []>} : vector<2x32xf32>, vector<32x128xf32>, vector<2x128xf32> -> vector<2x128xf32>
    %368 = arith.addf %366, %367 : vector<2x128xf32>
    %369 = arith.negf %368 : vector<2x128xf32>
    %370 = math.exp %369 : vector<2x128xf32>
    %cst_113 = arith.constant 1.000000e+00 : f32
    %371 = vector.broadcast %cst_113 : f32 to vector<2x128xf32>
    %372 = arith.addf %371, %370 : vector<2x128xf32>
    %373 = arith.divf %371, %372 : vector<2x128xf32>
    %374 = math.tanh %368 : vector<2x128xf32>
    %375 = arith.select %89, %374, %373 : vector<2x128xi1>, vector<2x128xf32>
    %376 = vector.extract_strided_slice %375 {offsets = [0, 0], sizes = [2, 32], strides = [1, 1]} : vector<2x128xf32> to vector<2x32xf32>
    %377 = vector.extract_strided_slice %375 {offsets = [0, 32], sizes = [2, 32], strides = [1, 1]} : vector<2x128xf32> to vector<2x32xf32>
    %378 = vector.extract_strided_slice %375 {offsets = [0, 64], sizes = [2, 32], strides = [1, 1]} : vector<2x128xf32> to vector<2x32xf32>
    %379 = vector.extract_strided_slice %375 {offsets = [0, 96], sizes = [2, 32], strides = [1, 1]} : vector<2x128xf32> to vector<2x32xf32>
    %380 = arith.mulf %377, %363 : vector<2x32xf32>
    %381 = arith.mulf %376, %378 : vector<2x32xf32>
    %382 = arith.addf %380, %381 : vector<2x32xf32>
    %383 = math.tanh %382 : vector<2x32xf32>
    %384 = arith.mulf %379, %383 : vector<2x32xf32>
    %c12_114 = arith.constant 12 : index
    %c0_115 = arith.constant 0 : index
    %385 = vector.load %arg15[%c12_114, %c0_115] : memref<16x128xf32, #tpu.memory_space<vmem>>, vector<2x128xf32>
    %cst_116 = arith.constant dense<0.000000e+00> : vector<2x128xf32>
    %386 = tpu.matmul %384, %266, %cst_116 {dimension_numbers = #tpu.dot_dimension_numbers<[1], [0], [0], [1], [0, 0, 1, 1], [], []>} : vector<2x32xf32>, vector<32x128xf32>, vector<2x128xf32> -> vector<2x128xf32>
    %387 = arith.addf %385, %386 : vector<2x128xf32>
    %388 = arith.negf %387 : vector<2x128xf32>
    %389 = math.exp %388 : vector<2x128xf32>
    %cst_117 = arith.constant 1.000000e+00 : f32
    %390 = vector.broadcast %cst_117 : f32 to vector<2x128xf32>
    %391 = arith.addf %390, %389 : vector<2x128xf32>
    %392 = arith.divf %390, %391 : vector<2x128xf32>
    %393 = math.tanh %387 : vector<2x128xf32>
    %394 = arith.select %89, %393, %392 : vector<2x128xi1>, vector<2x128xf32>
    %395 = vector.extract_strided_slice %394 {offsets = [0, 0], sizes = [2, 32], strides = [1, 1]} : vector<2x128xf32> to vector<2x32xf32>
    %396 = vector.extract_strided_slice %394 {offsets = [0, 32], sizes = [2, 32], strides = [1, 1]} : vector<2x128xf32> to vector<2x32xf32>
    %397 = vector.extract_strided_slice %394 {offsets = [0, 64], sizes = [2, 32], strides = [1, 1]} : vector<2x128xf32> to vector<2x32xf32>
    %398 = vector.extract_strided_slice %394 {offsets = [0, 96], sizes = [2, 32], strides = [1, 1]} : vector<2x128xf32> to vector<2x32xf32>
    %399 = arith.mulf %396, %382 : vector<2x32xf32>
    %400 = arith.mulf %395, %397 : vector<2x32xf32>
    %401 = arith.addf %399, %400 : vector<2x32xf32>
    %402 = math.tanh %401 : vector<2x32xf32>
    %403 = arith.mulf %398, %402 : vector<2x32xf32>
    %c14_118 = arith.constant 14 : index
    %c0_119 = arith.constant 0 : index
    %404 = vector.load %arg15[%c14_118, %c0_119] : memref<16x128xf32, #tpu.memory_space<vmem>>, vector<2x128xf32>
    %cst_120 = arith.constant dense<0.000000e+00> : vector<2x128xf32>
    %405 = tpu.matmul %403, %266, %cst_120 {dimension_numbers = #tpu.dot_dimension_numbers<[1], [0], [0], [1], [0, 0, 1, 1], [], []>} : vector<2x32xf32>, vector<32x128xf32>, vector<2x128xf32> -> vector<2x128xf32>
    %406 = arith.addf %404, %405 : vector<2x128xf32>
    %407 = arith.negf %406 : vector<2x128xf32>
    %408 = math.exp %407 : vector<2x128xf32>
    %cst_121 = arith.constant 1.000000e+00 : f32
    %409 = vector.broadcast %cst_121 : f32 to vector<2x128xf32>
    %410 = arith.addf %409, %408 : vector<2x128xf32>
    %411 = arith.divf %409, %410 : vector<2x128xf32>
    %412 = math.tanh %406 : vector<2x128xf32>
    %413 = arith.select %89, %412, %411 : vector<2x128xi1>, vector<2x128xf32>
    %414 = vector.extract_strided_slice %413 {offsets = [0, 0], sizes = [2, 32], strides = [1, 1]} : vector<2x128xf32> to vector<2x32xf32>
    %415 = vector.extract_strided_slice %413 {offsets = [0, 32], sizes = [2, 32], strides = [1, 1]} : vector<2x128xf32> to vector<2x32xf32>
    %416 = vector.extract_strided_slice %413 {offsets = [0, 64], sizes = [2, 32], strides = [1, 1]} : vector<2x128xf32> to vector<2x32xf32>
    %417 = vector.extract_strided_slice %413 {offsets = [0, 96], sizes = [2, 32], strides = [1, 1]} : vector<2x128xf32> to vector<2x32xf32>
    %418 = arith.mulf %415, %401 : vector<2x32xf32>
    %419 = arith.mulf %414, %416 : vector<2x32xf32>
    %420 = arith.addf %418, %419 : vector<2x32xf32>
    %421 = math.tanh %420 : vector<2x32xf32>
    %422 = arith.mulf %417, %421 : vector<2x32xf32>
    %c1_122 = arith.constant 1 : index
    %c0_123 = arith.constant 0 : index
    %c0_124 = arith.constant 0 : index
    %423 = vector.load %arg13[%c1_122, %c0_123, %c0_124] : memref<2x2x32xf32, #tpu.memory_space<vmem>>, vector<1x2x32xf32>
    %424 = vector.shape_cast %423 : vector<1x2x32xf32> to vector<2x32xf32>
    %425 = vector.shape_cast %422 : vector<2x32xf32> to vector<1x2x32xf32>
    tpu.vector_store %arg13[%c1_122, %c0_123, %c0_124], %425 {strides = array<i32>} : memref<2x2x32xf32, #tpu.memory_space<vmem>>, vector<1x2x32xf32>,
    %c1_125 = arith.constant 1 : index
    %c0_126 = arith.constant 0 : index
    %c0_127 = arith.constant 0 : index
    %426 = vector.load %arg14[%c1_125, %c0_126, %c0_127] : memref<2x2x32xf32, #tpu.memory_space<vmem>>, vector<1x2x32xf32>
    %427 = vector.shape_cast %426 : vector<1x2x32xf32> to vector<2x32xf32>
    %428 = vector.shape_cast %420 : vector<2x32xf32> to vector<1x2x32xf32>
    tpu.vector_store %arg14[%c1_125, %c0_126, %c0_127], %428 {strides = array<i32>} : memref<2x2x32xf32, #tpu.memory_space<vmem>>, vector<1x2x32xf32>,
    %c0_128 = arith.constant 0 : index
    %c0_129 = arith.constant 0 : index
    %429 = vector.load %arg10[%c0_128, %c0_129] : memref<32x64xf32, #tpu.memory_space<vmem>>, vector<32x64xf32>
    %c0_130 = arith.constant 0 : index
    %c0_131 = arith.constant 0 : index
    %430 = vector.load %arg11[%c0_130, %c0_131] : memref<1x64xf32, #tpu.memory_space<vmem>>, vector<1x64xf32>
    %431 = vector.extract_strided_slice %289 {offsets = [0, 0], sizes = [1, 32], strides = [1, 1]} : vector<2x32xf32> to vector<1x32xf32>
    %432 = vector.extract_strided_slice %308 {offsets = [0, 0], sizes = [1, 32], strides = [1, 1]} : vector<2x32xf32> to vector<1x32xf32>
    %433 = vector.extract_strided_slice %327 {offsets = [0, 0], sizes = [1, 32], strides = [1, 1]} : vector<2x32xf32> to vector<1x32xf32>
    %434 = vector.extract_strided_slice %346 {offsets = [0, 0], sizes = [1, 32], strides = [1, 1]} : vector<2x32xf32> to vector<1x32xf32>
    %435 = vector.extract_strided_slice %365 {offsets = [0, 0], sizes = [1, 32], strides = [1, 1]} : vector<2x32xf32> to vector<1x32xf32>
    %436 = vector.extract_strided_slice %384 {offsets = [0, 0], sizes = [1, 32], strides = [1, 1]} : vector<2x32xf32> to vector<1x32xf32>
    %437 = vector.extract_strided_slice %403 {offsets = [0, 0], sizes = [1, 32], strides = [1, 1]} : vector<2x32xf32> to vector<1x32xf32>
    %438 = vector.extract_strided_slice %422 {offsets = [0, 0], sizes = [1, 32], strides = [1, 1]} : vector<2x32xf32> to vector<1x32xf32>
    %439 = tpu.concatenate %431, %432, %433, %434, %435, %436, %437, %438 in 0 : vector<1x32xf32>, vector<1x32xf32>, vector<1x32xf32>, vector<1x32xf32>, vector<1x32xf32>, vector<1x32xf32>, vector<1x32xf32>, vector<1x32xf32> -> vector<8x32xf32>
    %cst_132 = arith.constant dense<0.000000e+00> : vector<8x64xf32>
    %440 = tpu.matmul %439, %429, %cst_132 {dimension_numbers = #tpu.dot_dimension_numbers<[1], [0], [0], [1], [0, 0, 1, 1], [], []>} : vector<8x32xf32>, vector<32x64xf32>, vector<8x64xf32> -> vector<8x64xf32>
    %441 = vector.broadcast %430 : vector<1x64xf32> to vector<8x64xf32>
    %442 = arith.addf %440, %441 : vector<8x64xf32>
    %c0_133 = arith.constant 0 : index
    %c0_134 = arith.constant 0 : index
    %c0_135 = arith.constant 0 : index
    %443 = vector.load %arg12[%c0_133, %c0_134, %c0_135] : memref<2x8x64xf32, #tpu.memory_space<vmem>>, vector<1x8x64xf32>
    %444 = vector.shape_cast %443 : vector<1x8x64xf32> to vector<8x64xf32>
    %445 = vector.shape_cast %442 : vector<8x64xf32> to vector<1x8x64xf32>
    tpu.vector_store %arg12[%c0_133, %c0_134, %c0_135], %445 {strides = array<i32>} : memref<2x8x64xf32, #tpu.memory_space<vmem>>, vector<1x8x64xf32>,
    %446 = vector.extract_strided_slice %289 {offsets = [1, 0], sizes = [1, 32], strides = [1, 1]} : vector<2x32xf32> to vector<1x32xf32>
    %447 = vector.extract_strided_slice %308 {offsets = [1, 0], sizes = [1, 32], strides = [1, 1]} : vector<2x32xf32> to vector<1x32xf32>
    %448 = vector.extract_strided_slice %327 {offsets = [1, 0], sizes = [1, 32], strides = [1, 1]} : vector<2x32xf32> to vector<1x32xf32>
    %449 = vector.extract_strided_slice %346 {offsets = [1, 0], sizes = [1, 32], strides = [1, 1]} : vector<2x32xf32> to vector<1x32xf32>
    %450 = vector.extract_strided_slice %365 {offsets = [1, 0], sizes = [1, 32], strides = [1, 1]} : vector<2x32xf32> to vector<1x32xf32>
    %451 = vector.extract_strided_slice %384 {offsets = [1, 0], sizes = [1, 32], strides = [1, 1]} : vector<2x32xf32> to vector<1x32xf32>
    %452 = vector.extract_strided_slice %403 {offsets = [1, 0], sizes = [1, 32], strides = [1, 1]} : vector<2x32xf32> to vector<1x32xf32>
    %453 = vector.extract_strided_slice %422 {offsets = [1, 0], sizes = [1, 32], strides = [1, 1]} : vector<2x32xf32> to vector<1x32xf32>
    %454 = tpu.concatenate %446, %447, %448, %449, %450, %451, %452, %453 in 0 : vector<1x32xf32>, vector<1x32xf32>, vector<1x32xf32>, vector<1x32xf32>, vector<1x32xf32>, vector<1x32xf32>, vector<1x32xf32>, vector<1x32xf32> -> vector<8x32xf32>
    %cst_136 = arith.constant dense<0.000000e+00> : vector<8x64xf32>
    %455 = tpu.matmul %454, %429, %cst_136 {dimension_numbers = #tpu.dot_dimension_numbers<[1], [0], [0], [1], [0, 0, 1, 1], [], []>} : vector<8x32xf32>, vector<32x64xf32>, vector<8x64xf32> -> vector<8x64xf32>
    %456 = vector.broadcast %430 : vector<1x64xf32> to vector<8x64xf32>
    %457 = arith.addf %455, %456 : vector<8x64xf32>
    %c1_137 = arith.constant 1 : index
    %c0_138 = arith.constant 0 : index
    %c0_139 = arith.constant 0 : index
    %458 = vector.load %arg12[%c1_137, %c0_138, %c0_139] : memref<2x8x64xf32, #tpu.memory_space<vmem>>, vector<1x8x64xf32>
    %459 = vector.shape_cast %458 : vector<1x8x64xf32> to vector<8x64xf32>
    %460 = vector.shape_cast %457 : vector<8x64xf32> to vector<1x8x64xf32>
    tpu.vector_store %arg12[%c1_137, %c0_138, %c0_139], %460 {strides = array<i32>} : memref<2x8x64xf32, #tpu.memory_space<vmem>>, vector<1x8x64xf32>,
    return
  }
}

</mosaic_0001>

<llo_original>
// kernel: decoder_forward.1
$region0: #{decoder_forward.1}
  #allocation0 [shape = 'u32[]', space=smem, size = 0x4, offset = 0x4, fixed_abs, tag = 'smem constant byte address 0x4 - core index']
  #allocation1 [shape = 'u32[144,128]{1,0:T(1,128)}', space=vmem, size = 0x12000, scoped, tag = 'internal scratch']
  #allocation2 [shape = 'f32[16,128]{1,0:T(8,128)}', space=vmem, size = 0x2000, scoped, tag = 'scratch operand']
  %s0 = inlined_call_operand.vmem [shape: s32[2,8], index: 0, kind: input, shape index: {}]
  %s1 = inlined_call_operand.vmem [shape: f32[64,32], index: 1, kind: input, shape index: {}]
  %s2 = inlined_call_operand.vmem [shape: f32[2,2,32], index: 2, kind: input, shape index: {}]
  %s3 = inlined_call_operand.vmem [shape: f32[2,2,32], index: 3, kind: input, shape index: {}]
  %s4 = inlined_call_operand.vmem [shape: f32[32,128], index: 4, kind: input, shape index: {}]
  %s5 = inlined_call_operand.vmem [shape: f32[32,128], index: 5, kind: input, shape index: {}]
  %s6 = inlined_call_operand.hbm [shape: f32[1,128], index: 6, kind: input, shape index: {}]
  %s7 = inlined_call_operand.vmem [shape: f32[32,128], index: 7, kind: input, shape index: {}]
  %s8 = inlined_call_operand.hbm [shape: f32[32,128], index: 8, kind: input, shape index: {}]
  %s9 = inlined_call_operand.vmem [shape: f32[1,128], index: 9, kind: input, shape index: {}]
  %s10 = inlined_call_operand.hbm [shape: f32[32,64], index: 10, kind: input, shape index: {}]
  %s11 = inlined_call_operand.hbm [shape: f32[1,64], index: 11, kind: input, shape index: {}]
  %s12 = inlined_call_operand.hbm [shape: f32[2,8,64], index: 12, kind: output, shape index: {0}]
  %s13 = inlined_call_operand.hbm [shape: f32[2,2,32], index: 13, kind: output, shape index: {1}]
  %s14 = inlined_call_operand.hbm [shape: f32[2,2,32], index: 14, kind: output, shape index: {2}]
  %15 = xla_tuple %s12, %s13, %s14
  %s16 = sld [smem:[#allocation0]]
  $region94: #{decoder_forward.1} parent=0
    _
  %s18 = ssub.s32 1, %s16
  %s19 = scalar_select 0, %s18, %s16
  $region1: #{decoder_forward.1} parent=0
    #allocation3 [shape = 'u8[1024]{0}', space=smem, size = 0x400, scoped, tag = 'input window, operand 0, single buffered']
    #allocation4 [shape = 's32[1]{0}', space=sflag, size = 0x4, scoped, tag = 'scoped memory for decoder_forward.1']
    #allocation5 [shape = 's32[1]{0}', space=sflag, size = 0x4, scoped, tag = 'scoped memory for decoder_forward.1']
    #allocation6 [shape = 's32[1]{0}', space=sflag, size = 0x4, scoped, tag = 'scoped memory for decoder_forward.1']
    #allocation7 [shape = 'u8[512]{0}', space=vmem, size = 0x400, scoped, tag = 'input window, operand 6, single buffered']
    #allocation8 [shape = 'u8[16384]{0}', space=vmem, size = 0x4000, scoped, tag = 'input window, operand 8, single buffered']
    #allocation9 [shape = 's32[1]{0}', space=sflag, size = 0x4, scoped, tag = 'scoped memory for decoder_forward.1']
    #allocation10 [shape = 'u8[16384]{0}', space=vmem, size = 0x4000, scoped, tag = 'input window, operand 10, single buffered']
    #allocation11 [shape = 'u8[512]{0}', space=vmem, size = 0x400, scoped, tag = 'input window, operand 11, single buffered']
    #allocation12 [shape = 's32[1]{0}', space=sflag, size = 0x4, scoped, tag = 'scoped memory for decoder_forward.1']
    #allocation13 [shape = 'u8[8192]{0}', space=vmem, size = 0x2000, scoped, tag = 'output window, operand 0, single buffered']
    #allocation14 [shape = 'u8[2048]{0}', space=vmem, size = 0x800, scoped, tag = 'output window, operand 1, single buffered']
    #allocation15 [shape = 's32[1]{0}', space=sflag, size = 0x4, scoped, tag = 'scoped memory for decoder_forward.1']
    #allocation16 [shape = 'u8[2048]{0}', space=vmem, size = 0x800, scoped, tag = 'output window, operand 2, single buffered']
    %20 = vsyncpa [#allocation6], 0
    %21 = vsyncpa [#allocation4], 0
    %22 = vsyncpa [#allocation9], 0
    %23 = vsyncpa [#allocation12], 0
    %24 = vsyncpa [#allocation5], 0
    %25 = vsyncpa [#allocation15], 0
    // Predicated region
    $region2: #{decoder_forward.1} parent=1 // pred_check
      _
    $region3: #{decoder_forward.1} parent=1 // pred_check_branch
      %27 = sbr.rel (0) target = $region5
    $region4: #{decoder_forward.1} parent=1 // pred_region
      %s29 = ssub.s32 32, 32
      %30 = vsyncadd [#allocation6], %s29
      %s32 = sshll.u32 %s0, 4
      %s33 = int_to_ptr.vmem [resolvable:$true] %s32
      %35 = dma.vmem_to_smem %s33, 32, [#allocation3], [#allocation6]
    $region5: #{decoder_forward.1} parent=1 // pred_fallthru
      _
    // Predicated region
    $region6: #{decoder_forward.1} parent=1 // pred_check
      _
    $region7: #{decoder_forward.1} parent=1 // pred_check_branch
      %37 = sbr.rel (0) target = $region9
    $region8: #{decoder_forward.1} parent=1 // pred_region
      _
    $region9: #{decoder_forward.1} parent=1 // pred_fallthru
      _
    // Predicated region
    $region10: #{decoder_forward.1} parent=1 // pred_check
      _
    $region11: #{decoder_forward.1} parent=1 // pred_check_branch
      %39 = sbr.rel (0) target = $region13
    $region12: #{decoder_forward.1} parent=1 // pred_region
      _
    $region13: #{decoder_forward.1} parent=1 // pred_fallthru
      _
    // Predicated region
    $region14: #{decoder_forward.1} parent=1 // pred_check
      _
    $region15: #{decoder_forward.1} parent=1 // pred_check_branch
      %41 = sbr.rel (0) target = $region17
    $region16: #{decoder_forward.1} parent=1 // pred_region
      _
    $region17: #{decoder_forward.1} parent=1 // pred_fallthru
      _
    // Predicated region
    $region18: #{decoder_forward.1} parent=1 // pred_check
      _
    $region19: #{decoder_forward.1} parent=1 // pred_check_branch
      %43 = sbr.rel (0) target = $region21
    $region20: #{decoder_forward.1} parent=1 // pred_region
      _
    $region21: #{decoder_forward.1} parent=1 // pred_fallthru
      _
    // Predicated region
    $region22: #{decoder_forward.1} parent=1 // pred_check
      _
    $region23: #{decoder_forward.1} parent=1 // pred_check_branch
      %45 = sbr.rel (0) target = $region25
    $region24: #{decoder_forward.1} parent=1 // pred_region
      _
    $region25: #{decoder_forward.1} parent=1 // pred_fallthru
      _
    // Predicated region
    $region26: #{decoder_forward.1} parent=1 // pred_check
      _
    $region27: #{decoder_forward.1} parent=1 // pred_check_branch
      %47 = sbr.rel (0) target = $region29
    $region28: #{decoder_forward.1} parent=1 // pred_region
      %s49 = ssub.s32 16, 16
      %50 = vsyncadd [#allocation4], %s49
      %s52 = sshll.u32 [#allocation7], 4
      %s53 = int_to_ptr.vmem [resolvable:$true] %s52
      %55 = dma.hbm_to_vmem [thread:$0]  %s6, 16, %s53, [#allocation4]
    $region29: #{decoder_forward.1} parent=1 // pred_fallthru
      _
    // Predicated region
    $region30: #{decoder_forward.1} parent=1 // pred_check
      _
    $region31: #{decoder_forward.1} parent=1 // pred_check_branch
      %57 = sbr.rel (0) target = $region33
    $region32: #{decoder_forward.1} parent=1 // pred_region
      _
    $region33: #{decoder_forward.1} parent=1 // pred_fallthru
      _
    // Predicated region
    $region34: #{decoder_forward.1} parent=1 // pred_check
      _
    $region35: #{decoder_forward.1} parent=1 // pred_check_branch
      %59 = sbr.rel (0) target = $region37
    $region36: #{decoder_forward.1} parent=1 // pred_region
      %s61 = ssub.s32 512, 512
      %62 = vsyncadd [#allocation9], %s61
      %s63 = sshll.u32 [#allocation8], 4
      %s64 = int_to_ptr.vmem [resolvable:$true] %s63
      %69 = dma.hbm_to_vmem [thread:$0]  %s8, 512, %s64, [#allocation9], 128, 128, 8
    $region37: #{decoder_forward.1} parent=1 // pred_fallthru
      _
    // Predicated region
    $region38: #{decoder_forward.1} parent=1 // pred_check
      _
    $region39: #{decoder_forward.1} parent=1 // pred_check_branch
      %71 = sbr.rel (0) target = $region41
    $region40: #{decoder_forward.1} parent=1 // pred_region
      _
    $region41: #{decoder_forward.1} parent=1 // pred_fallthru
      _
    // Predicated region
    $region42: #{decoder_forward.1} parent=1 // pred_check
      _
    $region43: #{decoder_forward.1} parent=1 // pred_check_branch
      %73 = sbr.rel (0) target = $region45
    $region44: #{decoder_forward.1} parent=1 // pred_region
      %s75 = ssub.s32 512, 512
      %76 = vsyncadd [#allocation9], %s75
      %s77 = sshll.u32 [#allocation10], 4
      %s78 = int_to_ptr.vmem [resolvable:$true] %s77
      %83 = dma.hbm_to_vmem [thread:$0]  %s10, 512, %s78, [#allocation9], 128, 128, 8
    $region45: #{decoder_forward.1} parent=1 // pred_fallthru
      _
    // Predicated region
    $region46: #{decoder_forward.1} parent=1 // pred_check
      _
    $region47: #{decoder_forward.1} parent=1 // pred_check_branch
      %85 = sbr.rel (0) target = $region49
    $region48: #{decoder_forward.1} parent=1 // pred_region
      %s87 = ssub.s32 16, 16
      %88 = vsyncadd [#allocation12], %s87
      %s90 = sshll.u32 [#allocation11], 4
      %s91 = int_to_ptr.vmem [resolvable:$true] %s90
      %93 = dma.hbm_to_vmem [thread:$0]  %s11, 16, %s91, [#allocation12]
    $region49: #{decoder_forward.1} parent=1 // pred_fallthru
      _
    // Predicated region
    $region50: #{decoder_forward.1} parent=1 // pred_check
      _
    $region51: #{decoder_forward.1} parent=1 // pred_check_branch
      %95 = sbr.rel (0) target = $region53
    $region52: #{decoder_forward.1} parent=1 // pred_region
      %96 = dma.done [#allocation6], 32
    $region53: #{decoder_forward.1} parent=1 // pred_fallthru
      _
    // Predicated region
    $region54: #{decoder_forward.1} parent=1 // pred_check
      _
    $region55: #{decoder_forward.1} parent=1 // pred_check_branch
      %98 = sbr.rel (0) target = $region57
    $region56: #{decoder_forward.1} parent=1 // pred_region
      %99 = dma.done [#allocation4], 16
    $region57: #{decoder_forward.1} parent=1 // pred_fallthru
      _
    // Predicated region
    $region58: #{decoder_forward.1} parent=1 // pred_check
      _
    $region59: #{decoder_forward.1} parent=1 // pred_check_branch
      %101 = sbr.rel (0) target = $region61
    $region60: #{decoder_forward.1} parent=1 // pred_region
      %102 = dma.done [#allocation9], 512
    $region61: #{decoder_forward.1} parent=1 // pred_fallthru
      _
    // Predicated region
    $region62: #{decoder_forward.1} parent=1 // pred_check
      _
    $region63: #{decoder_forward.1} parent=1 // pred_check_branch
      %104 = sbr.rel (0) target = $region65
    $region64: #{decoder_forward.1} parent=1 // pred_region
      %105 = dma.done [#allocation9], 512
    $region65: #{decoder_forward.1} parent=1 // pred_fallthru
      _
    // Predicated region
    $region66: #{decoder_forward.1} parent=1 // pred_check
      _
    $region67: #{decoder_forward.1} parent=1 // pred_check_branch
      %107 = sbr.rel (0) target = $region69
    $region68: #{decoder_forward.1} parent=1 // pred_region
      %108 = dma.done [#allocation12], 16
    $region69: #{decoder_forward.1} parent=1 // pred_fallthru
      _
    %109 = sfence
    %v110 = vlaneseq
    %v111 = vand.u32 %v110, 127
    %s112 = sld [smem:[#allocation3]]
    %v113 = vstv %s112
    %vm114 = vcmp.eq.s32.totalorder %v111, %v113
    %v115 = vsel %vm114, 1, 0
    %v116 = vcvt.s32.f32 %v115
    %s117 = sld [smem:[#allocation3 + $0x80]]
    %v118 = vstv %s117
    %vm119 = vcmp.eq.s32.totalorder %v111, %v118
    %v120 = vsel %vm119, 1, 0
    %v121 = vcvt.s32.f32 %v120
    %s122 = sld [smem:[#allocation3 + $0x1]]
    %v123 = vstv %s122
    %vm124 = vcmp.eq.s32.totalorder %v111, %v123
    %v125 = vsel %vm124, 1, 0
    %v126 = vcvt.s32.f32 %v125
    %s127 = sld [smem:[#allocation3 + $0x81]]
    %v128 = vstv %s127
    %vm129 = vcmp.eq.s32.totalorder %v111, %v128
    %v130 = vsel %vm129, 1, 0
    %v131 = vcvt.s32.f32 %v130
    %s132 = sld [smem:[#allocation3 + $0x2]]
    %v133 = vstv %s132
    %vm134 = vcmp.eq.s32.totalorder %v111, %v133
    %v135 = vsel %vm134, 1, 0
    %v136 = vcvt.s32.f32 %v135
    %s137 = sld [smem:[#allocation3 + $0x82]]
    %v138 = vstv %s137
    %vm139 = vcmp.eq.s32.totalorder %v111, %v138
    %v140 = vsel %vm139, 1, 0
    %v141 = vcvt.s32.f32 %v140
    %s142 = sld [smem:[#allocation3 + $0x3]]
    %v143 = vstv %s142
    %vm144 = vcmp.eq.s32.totalorder %v111, %v143
    %v145 = vsel %vm144, 1, 0
    %v146 = vcvt.s32.f32 %v145
    %s147 = sld [smem:[#allocation3 + $0x83]]
    %v148 = vstv %s147
    %vm149 = vcmp.eq.s32.totalorder %v111, %v148
    %v150 = vsel %vm149, 1, 0
    %v151 = vcvt.s32.f32 %v150
    %s152 = sld [smem:[#allocation3 + $0x4]]
    %v153 = vstv %s152
    %vm154 = vcmp.eq.s32.totalorder %v111, %v153
    %v155 = vsel %vm154, 1, 0
    %v156 = vcvt.s32.f32 %v155
    %s157 = sld [smem:[#allocation3 + $0x84]]
    %v158 = vstv %s157
    %vm159 = vcmp.eq.s32.totalorder %v111, %v158
    %v160 = vsel %vm159, 1, 0
    %v161 = vcvt.s32.f32 %v160
    %s162 = sld [smem:[#allocation3 + $0x5]]
    %v163 = vstv %s162
    %vm164 = vcmp.eq.s32.totalorder %v111, %v163
    %v165 = vsel %vm164, 1, 0
    %v166 = vcvt.s32.f32 %v165
    %s167 = sld [smem:[#allocation3 + $0x85]]
    %v168 = vstv %s167
    %vm169 = vcmp.eq.s32.totalorder %v111, %v168
    %v170 = vsel %vm169, 1, 0
    %v171 = vcvt.s32.f32 %v170
    %s172 = sld [smem:[#allocation3 + $0x6]]
    %v173 = vstv %s172
    %vm174 = vcmp.eq.s32.totalorder %v111, %v173
    %v175 = vsel %vm174, 1, 0
    %v176 = vcvt.s32.f32 %v175
    %s177 = sld [smem:[#allocation3 + $0x86]]
    %v178 = vstv %s177
    %vm179 = vcmp.eq.s32.totalorder %v111, %v178
    %v180 = vsel %vm179, 1, 0
    %v181 = vcvt.s32.f32 %v180
    %s182 = sld [smem:[#allocation3 + $0x7]]
    %v183 = vstv %s182
    %vm184 = vcmp.eq.s32.totalorder %v111, %v183
    %v185 = vsel %vm184, 1, 0
    %v186 = vcvt.s32.f32 %v185
    %s187 = sld [smem:[#allocation3 + $0x87]]
    %v188 = vstv %s187
    %vm189 = vcmp.eq.s32.totalorder %v111, %v188
    %v190 = vsel %vm189, 1, 0
    %v191 = vcvt.s32.f32 %v190
    %vm192 = vcmask 1040384
    %v193 = vsel %vm192, %v116, %v121
    %vm194 = vcmask 1041408
    %v195 = vsel %vm194, %v193, %v126
    %vm196 = vcmask 1042432
    %v197 = vsel %vm196, %v195, %v131
    %vm198 = vcmask 1043456
    %v199 = vsel %vm198, %v197, %v136
    %vm200 = vcmask 1044480
    %v201 = vsel %vm200, %v199, %v141
    %vm202 = vcmask 1045504
    %v203 = vsel %vm202, %v201, %v146
    %vm204 = vcmask 1046528
    %v205 = vsel %vm204, %v203, %v151
    %v206 = vsel %vm192, %v156, %v161
    %v207 = vsel %vm194, %v206, %v166
    %v208 = vsel %vm196, %v207, %v171
    %v209 = vsel %vm198, %v208, %v176
    %v210 = vsel %vm200, %v209, %v181
    %v211 = vsel %vm202, %v210, %v186
    %v212 = vsel %vm204, %v211, %v191
    %v213 = vld [vmem:[%s1] sm:$0xff]
    %v214 = vld [vmem:[%s1 + $0x8] sm:$0xff]
    %v215 = vld [vmem:[%s1 + $0x10] sm:$0xff]
    %v216 = vld [vmem:[%s1 + $0x18] sm:$0xff]
    %v217 = vld [vmem:[%s1 + $0x20] sm:$0xff]
    %v218 = vld [vmem:[%s1 + $0x28] sm:$0xff]
    %v219 = vld [vmem:[%s1 + $0x30] sm:$0xff]
    %v220 = vld [vmem:[%s1 + $0x38] sm:$0xff]
    %vm221 = vcmask 523264
    %v223 = vsel %vm221, %v205, 0
    %v226 = vsel %vm221, %v212, 0
    %228 = vmatprep.subr.mxu0 0.0
    %229 = vmatpush1.msra.mxu0 %v213
    %230 = vmatprep.subr.mxu0 0.0
    %231 = vmatpush1.msra.mxu0 %v214
    %232 = vmatprep.subr.mxu0 0.0
    %233 = vmatpush1.msra.mxu0 %v215
    %234 = vmatprep.subr.mxu0 0.0
    %235 = vmatpush1.msra.mxu0 %v216
    %236 = vmatprep.subr.mxu0 0.0
    %237 = vmatpush1.msra.mxu0 %v217
    %238 = vmatprep.subr.mxu0 0.0
    %239 = vmatpush1.msra.mxu0 %v218
    %240 = vmatprep.subr.mxu0 0.0
    %241 = vmatpush1.msra.mxu0 %v219
    %242 = vmatprep.subr.mxu0 0.0
    %243 = vmatpush1.msra.mxu0 %v220
    %244 = vmatprep.subr.mxu0 0.0
    %245 = vmatpush1.msra.mxu0 0.0
    %246 = vmatprep.subr.mxu0 0.0
    %247 = vmatpush1.msra.mxu0 0.0
    %248 = vmatprep.subr.mxu0 0.0
    %249 = vmatpush1.msra.mxu0 0.0
    %250 = vmatprep.subr.mxu0 0.0
    %251 = vmatpush1.msra.mxu0 0.0
    %252 = vmatprep.subr.mxu0 0.0
    %253 = vmatpush1.msra.mxu0 0.0
    %254 = vmatprep.subr.mxu0 0.0
    %255 = vmatpush1.msra.mxu0 0.0
    %256 = vmatprep.subr.mxu0 0.0
    %257 = vmatpush1.msra.mxu0 0.0
    %258 = vmatprep.subr.mxu0 0.0
    %259 = vmatpush1.msra.mxu0 0.0
    %260 = vmatprep.subr.mxu0 0.0
    %261 = vmatpush1.msra.mxu0 0.0
    %262 = vmatprep.subr.mxu0 0.0
    %263 = vmatpush1.msra.mxu0 0.0
    %264 = vmatprep.subr.mxu0 0.0
    %265 = vmatpush1.msra.mxu0 0.0
    %266 = vmatprep.subr.mxu0 0.0
    %267 = vmatpush1.msra.mxu0 0.0
    %268 = vmatprep.subr.mxu0 0.0
    %269 = vmatpush1.msra.mxu0 0.0
    %270 = vmatprep.subr.mxu0 0.0
    %271 = vmatpush1.msra.mxu0 0.0
    %272 = vmatprep.subr.mxu0 0.0
    %273 = vmatpush1.msra.mxu0 0.0
    %274 = vmatprep.subr.mxu0 0.0
    %275 = vmatpush1.msra.mxu0 0.0
    %276 = vmatprep.subr.mxu0 0.0
    %277 = vmatpush1.msra.mxu0 0.0
    %278 = vmatprep.subr.mxu0 0.0
    %279 = vmatpush1.msra.mxu0 0.0
    %280 = vmatprep.subr.mxu0 0.0
    %281 = vmatpush1.msra.mxu0 0.0
    %282 = vmatprep.subr.mxu0 0.0
    %283 = vmatpush1.msra.mxu0 0.0
    %284 = vmatprep.subr.mxu0 0.0
    %285 = vmatpush1.msra.mxu0 0.0
    %286 = vmatprep.subr.mxu0 0.0
    %287 = vmatpush1.msra.mxu0 0.0
    %288 = vmatprep.subr.mxu0 0.0
    %289 = vmatpush1.msra.mxu0 0.0
    %290 = vmatprep.subr.mxu0 0.0
    %291 = vmatpush1.msra.mxu0 0.0
    %292 = vmatprep.mubr.f32.mxu0 0.0
    %293 = vmatmul.mubr.f32.gmra.mrb[0].mxu0 %v223
    %v294 = vpop.f32.mrb[0].mxu0
    %v295 = vadd.f32 0.0, %v294
    %v296 = vpop.f32.mrb[0].mxu0
    %297 = vmatprep.mubr.f32.mxu0 0.0
    %298 = vmatmul.mubr.f32.gmra.mrb[0].mxu0 %v226
    %v299 = vpop.f32.mrb[0].mxu0
    %v300 = vadd.f32 0.0, %v299
    %v301 = vpop.f32.mrb[0].mxu0
    %302 = vdwg.mxu0
    %vm303 = vcmp.ge.s32.totalorder %v111, 64
    %vm304 = vcmp.lt.s32.totalorder %v111, 96
    %vm305 = vmand %vm303, %vm304
    %v306 = vld [vmem:[%s4] sm:$0xff]
    %v307 = vld [vmem:[%s4 + $0x8] sm:$0xff]
    %v308 = vld [vmem:[%s4 + $0x10] sm:$0xff]
    %v309 = vld [vmem:[%s4 + $0x18] sm:$0xff]
    %v310 = vld [vmem:[#allocation7] sm:$0x1]
    %v312 = vlaneseq
    %v313 = vshrl.u32 %v312, 7
    %v314 = vsub.s32 0, %v313
    %v315 = vrot.slane %v310, %v314
    %vm317 = vcmask 261120
    %v319 = vsel %vm317, %v295, 0
    %v322 = vsel %vm317, %v300, 0
    %324 = vmatprep.subr.mxu0 0.0
    %325 = vmatpush1.msra.mxu0 %v306
    %326 = vmatprep.subr.mxu0 0.0
    %327 = vmatpush1.msra.mxu0 %v307
    %328 = vmatprep.subr.mxu0 0.0
    %329 = vmatpush1.msra.mxu0 %v308
    %330 = vmatprep.subr.mxu0 0.0
    %331 = vmatpush1.msra.mxu0 %v309
    %332 = vmatprep.subr.mxu0 0.0
    %333 = vmatpush1.msra.mxu0 0.0
    %334 = vmatprep.subr.mxu0 0.0
    %335 = vmatpush1.msra.mxu0 0.0
    %336 = vmatprep.subr.mxu0 0.0
    %337 = vmatpush1.msra.mxu0 0.0
    %338 = vmatprep.subr.mxu0 0.0
    %339 = vmatpush1.msra.mxu0 0.0
    %340 = vmatprep.subr.mxu0 0.0
    %341 = vmatpush1.msra.mxu0 0.0
    %342 = vmatprep.subr.mxu0 0.0
    %343 = vmatpush1.msra.mxu0 0.0
    %344 = vmatprep.subr.mxu0 0.0
    %345 = vmatpush1.msra.mxu0 0.0
    %346 = vmatprep.subr.mxu0 0.0
    %347 = vmatpush1.msra.mxu0 0.0
    %348 = vmatprep.subr.mxu0 0.0
    %349 = vmatpush1.msra.mxu0 0.0
    %350 = vmatprep.subr.mxu0 0.0
    %351 = vmatpush1.msra.mxu0 0.0
    %352 = vmatprep.subr.mxu0 0.0
    %353 = vmatpush1.msra.mxu0 0.0
    %354 = vmatprep.subr.mxu0 0.0
    %355 = vmatpush1.msra.mxu0 0.0
    %356 = vmatprep.subr.mxu0 0.0
    %357 = vmatpush1.msra.mxu0 0.0
    %358 = vmatprep.subr.mxu0 0.0
    %359 = vmatpush1.msra.mxu0 0.0
    %360 = vmatprep.subr.mxu0 0.0
    %361 = vmatpush1.msra.mxu0 0.0
    %362 = vmatprep.subr.mxu0 0.0
    %363 = vmatpush1.msra.mxu0 0.0
    %364 = vmatprep.subr.mxu0 0.0
    %365 = vmatpush1.msra.mxu0 0.0
    %366 = vmatprep.subr.mxu0 0.0
    %367 = vmatpush1.msra.mxu0 0.0
    %368 = vmatprep.subr.mxu0 0.0
    %369 = vmatpush1.msra.mxu0 0.0
    %370 = vmatprep.subr.mxu0 0.0
    %371 = vmatpush1.msra.mxu0 0.0
    %372 = vmatprep.subr.mxu0 0.0
    %373 = vmatpush1.msra.mxu0 0.0
    %374 = vmatprep.subr.mxu0 0.0
    %375 = vmatpush1.msra.mxu0 0.0
    %376 = vmatprep.subr.mxu0 0.0
    %377 = vmatpush1.msra.mxu0 0.0
    %378 = vmatprep.subr.mxu0 0.0
    %379 = vmatpush1.msra.mxu0 0.0
    %380 = vmatprep.subr.mxu0 0.0
    %381 = vmatpush1.msra.mxu0 0.0
    %382 = vmatprep.subr.mxu0 0.0
    %383 = vmatpush1.msra.mxu0 0.0
    %384 = vmatprep.subr.mxu0 0.0
    %385 = vmatpush1.msra.mxu0 0.0
    %386 = vmatprep.subr.mxu0 0.0
    %387 = vmatpush1.msra.mxu0 0.0
    %388 = vmatprep.mubr.f32.mxu0 0.0
    %389 = vmatmul.mubr.f32.gmra.mrb[0].mxu0 %v319
    %v390 = vpop.f32.mrb[0].mxu0
    %v391 = vadd.f32 %v315, %v390
    %v392 = vpop.f32.mrb[0].mxu0
    %393 = vmatprep.mubr.f32.mxu0 0.0
    %394 = vmatmul.mubr.f32.gmra.mrb[0].mxu0 %v322
    %v395 = vpop.f32.mrb[0].mxu0
    %v396 = vadd.f32 %v315, %v395
    %v397 = vpop.f32.mrb[0].mxu0
    %398 = vdwg.mxu0
    %399 = vst [vmem:[#allocation2] sm:$0xff] %v391
    %400 = vst [vmem:[#allocation2 + $0x8] sm:$0xff] %v396
    %v401 = vld [vmem:[%s5] sm:$0xff]
    %v402 = vld [vmem:[%s5 + $0x8] sm:$0xff]
    %v403 = vld [vmem:[%s5 + $0x10] sm:$0xff]
    %v404 = vld [vmem:[%s5 + $0x18] sm:$0xff]
    %v405 = vld [vmem:[%s2] sm:$0x3]
    %v406 = vld [vmem:[%s3] sm:$0x3]
    %v407 = vld [vmem:[#allocation2] sm:$0x3]
    %v409 = vsel %vm317, %v405, 0
    %411 = vmatprep.subr.mxu0 0.0
    %412 = vmatpush1.msra.mxu0 %v401
    %413 = vmatprep.subr.mxu0 0.0
    %414 = vmatpush1.msra.mxu0 %v402
    %415 = vmatprep.subr.mxu0 0.0
    %416 = vmatpush1.msra.mxu0 %v403
    %417 = vmatprep.subr.mxu0 0.0
    %418 = vmatpush1.msra.mxu0 %v404
    %419 = vmatprep.subr.mxu0 0.0
    %420 = vmatpush1.msra.mxu0 0.0
    %421 = vmatprep.subr.mxu0 0.0
    %422 = vmatpush1.msra.mxu0 0.0
    %423 = vmatprep.subr.mxu0 0.0
    %424 = vmatpush1.msra.mxu0 0.0
    %425 = vmatprep.subr.mxu0 0.0
    %426 = vmatpush1.msra.mxu0 0.0
    %427 = vmatprep.subr.mxu0 0.0
    %428 = vmatpush1.msra.mxu0 0.0
    %429 = vmatprep.subr.mxu0 0.0
    %430 = vmatpush1.msra.mxu0 0.0
    %431 = vmatprep.subr.mxu0 0.0
    %432 = vmatpush1.msra.mxu0 0.0
    %433 = vmatprep.subr.mxu0 0.0
    %434 = vmatpush1.msra.mxu0 0.0
    %435 = vmatprep.subr.mxu0 0.0
    %436 = vmatpush1.msra.mxu0 0.0
    %437 = vmatprep.subr.mxu0 0.0
    %438 = vmatpush1.msra.mxu0 0.0
    %439 = vmatprep.subr.mxu0 0.0
    %440 = vmatpush1.msra.mxu0 0.0
    %441 = vmatprep.subr.mxu0 0.0
    %442 = vmatpush1.msra.mxu0 0.0
    %443 = vmatprep.subr.mxu0 0.0
    %444 = vmatpush1.msra.mxu0 0.0
    %445 = vmatprep.subr.mxu0 0.0
    %446 = vmatpush1.msra.mxu0 0.0
    %447 = vmatprep.subr.mxu0 0.0
    %448 = vmatpush1.msra.mxu0 0.0
    %449 = vmatprep.subr.mxu0 0.0
    %450 = vmatpush1.msra.mxu0 0.0
    %451 = vmatprep.subr.mxu0 0.0
    %452 = vmatpush1.msra.mxu0 0.0
    %453 = vmatprep.subr.mxu0 0.0
    %454 = vmatpush1.msra.mxu0 0.0
    %455 = vmatprep.subr.mxu0 0.0
    %456 = vmatpush1.msra.mxu0 0.0
    %457 = vmatprep.subr.mxu0 0.0
    %458 = vmatpush1.msra.mxu0 0.0
    %459 = vmatprep.subr.mxu0 0.0
    %460 = vmatpush1.msra.mxu0 0.0
    %461 = vmatprep.subr.mxu0 0.0
    %462 = vmatpush1.msra.mxu0 0.0
    %463 = vmatprep.subr.mxu0 0.0
    %464 = vmatpush1.msra.mxu0 0.0
    %465 = vmatprep.subr.mxu0 0.0
    %466 = vmatpush1.msra.mxu0 0.0
    %467 = vmatprep.subr.mxu0 0.0
    %468 = vmatpush1.msra.mxu0 0.0
    %469 = vmatprep.subr.mxu0 0.0
    %470 = vmatpush1.msra.mxu0 0.0
    %471 = vmatprep.subr.mxu0 0.0
    %472 = vmatpush1.msra.mxu0 0.0
    %473 = vmatprep.subr.mxu0 0.0
    %474 = vmatpush1.msra.mxu0 0.0
    %475 = vmatprep.mubr.f32.mxu0 0.0
    %476 = vmatmul.mubr.f32.gmra.mrb[0].mxu0 %v409
    %v477 = vpop.f32.mrb[0].mxu0
    %v478 = vadd.f32 0.0, %v477
    %v479 = vpop.f32.mrb[0].mxu0
    %480 = vdwg.mxu0
    %v481 = vadd.f32 %v407, %v478
    %v482 = vxor.u32 %v481, 2147483648
    %v483 = vmul.f32 %v482, 1.442695
    %v484 = vpow.pop %v483
    %v485 = vadd.f32 %v484, 1.0
    %v486 = vrcp.pop %v485
    %v487 = vmul.f32 1.0, %v486
    %v488 = vtanh.pop %v481
    %v489 = vsel %vm305, %v488, %v487
    %491 = vrot.lane.b32.xlu0 %v406, 32
    %v492 = vpop.permute.xlu0 %491
    %v494 = vmul.f32 %v489, %v492
    %496 = vrot.lane.b32.xlu0 %v489, 64
    %v497 = vpop.permute.xlu0 %496
    %v499 = vmul.f32 %v489, %v497
    %501 = vrot.lane.b32.xlu0 %v499, 32
    %v502 = vpop.permute.xlu0 %501
    %v504 = vadd.f32 %v494, %v502
    %v505 = vtanh.pop %v504
    %507 = vrot.lane.b32.xlu0 %v505, 64
    %v508 = vpop.permute.xlu0 %507
    %v510 = vmul.f32 %v489, %v508
    %v511 = vld [vmem:[#allocation2 + $0x2] sm:$0x3]
    %513 = vrot.lane.b32.xlu0 %v510, 32
    %v514 = vpop.permute.xlu0 %513
    %v515 = vsel %vm317, %v514, 0
    %517 = vmatprep.subr.mxu0 0.0
    %518 = vmatpush1.msra.mxu0 %v401
    %519 = vmatprep.subr.mxu0 0.0
    %520 = vmatpush1.msra.mxu0 %v402
    %521 = vmatprep.subr.mxu0 0.0
    %522 = vmatpush1.msra.mxu0 %v403
    %523 = vmatprep.subr.mxu0 0.0
    %524 = vmatpush1.msra.mxu0 %v404
    %525 = vmatprep.subr.mxu0 0.0
    %526 = vmatpush1.msra.mxu0 0.0
    %527 = vmatprep.subr.mxu0 0.0
    %528 = vmatpush1.msra.mxu0 0.0
    %529 = vmatprep.subr.mxu0 0.0
    %530 = vmatpush1.msra.mxu0 0.0
    %531 = vmatprep.subr.mxu0 0.0
    %532 = vmatpush1.msra.mxu0 0.0
    %533 = vmatprep.subr.mxu0 0.0
    %534 = vmatpush1.msra.mxu0 0.0
    %535 = vmatprep.subr.mxu0 0.0
    %536 = vmatpush1.msra.mxu0 0.0
    %537 = vmatprep.subr.mxu0 0.0
    %538 = vmatpush1.msra.mxu0 0.0
    %539 = vmatprep.subr.mxu0 0.0
    %540 = vmatpush1.msra.mxu0 0.0
    %541 = vmatprep.subr.mxu0 0.0
    %542 = vmatpush1.msra.mxu0 0.0
    %543 = vmatprep.subr.mxu0 0.0
    %544 = vmatpush1.msra.mxu0 0.0
    %545 = vmatprep.subr.mxu0 0.0
    %546 = vmatpush1.msra.mxu0 0.0
    %547 = vmatprep.subr.mxu0 0.0
    %548 = vmatpush1.msra.mxu0 0.0
    %549 = vmatprep.subr.mxu0 0.0
    %550 = vmatpush1.msra.mxu0 0.0
    %551 = vmatprep.subr.mxu0 0.0
    %552 = vmatpush1.msra.mxu0 0.0
    %553 = vmatprep.subr.mxu0 0.0
    %554 = vmatpush1.msra.mxu0 0.0
    %555 = vmatprep.subr.mxu0 0.0
    %556 = vmatpush1.msra.mxu0 0.0
    %557 = vmatprep.subr.mxu0 0.0
    %558 = vmatpush1.msra.mxu0 0.0
    %559 = vmatprep.subr.mxu0 0.0
    %560 = vmatpush1.msra.mxu0 0.0
    %561 = vmatprep.subr.mxu0 0.0
    %562 = vmatpush1.msra.mxu0 0.0
    %563 = vmatprep.subr.mxu0 0.0
    %564 = vmatpush1.msra.mxu0 0.0
    %565 = vmatprep.subr.mxu0 0.0
    %566 = vmatpush1.msra.mxu0 0.0
    %567 = vmatprep.subr.mxu0 0.0
    %568 = vmatpush1.msra.mxu0 0.0
    %569 = vmatprep.subr.mxu0 0.0
    %570 = vmatpush1.msra.mxu0 0.0
    %571 = vmatprep.subr.mxu0 0.0
    %572 = vmatpush1.msra.mxu0 0.0
    %573 = vmatprep.subr.mxu0 0.0
    %574 = vmatpush1.msra.mxu0 0.0
    %575 = vmatprep.subr.mxu0 0.0
    %576 = vmatpush1.msra.mxu0 0.0
    %577 = vmatprep.subr.mxu0 0.0
    %578 = vmatpush1.msra.mxu0 0.0
    %579 = vmatprep.subr.mxu0 0.0
    %580 = vmatpush1.msra.mxu0 0.0
    %581 = vmatprep.mubr.f32.mxu0 0.0
    %582 = vmatmul.mubr.f32.gmra.mrb[0].mxu0 %v515
    %v583 = vpop.f32.mrb[0].mxu0
    %v584 = vadd.f32 0.0, %v583
    %v585 = vpop.f32.mrb[0].mxu0
    %586 = vdwg.mxu0
    %v587 = vadd.f32 %v511, %v584
    %v588 = vxor.u32 %v587, 2147483648
    %v589 = vmul.f32 %v588, 1.442695
    %v590 = vpow.pop %v589
    %v591 = vadd.f32 %v590, 1.0
    %v592 = vrcp.pop %v591
    %v593 = vmul.f32 1.0, %v592
    %v594 = vtanh.pop %v587
    %v595 = vsel %vm305, %v594, %v593
    %v596 = vmul.f32 %v595, %v504
    %598 = vrot.lane.b32.xlu0 %v595, 64
    %v599 = vpop.permute.xlu0 %598
    %v601 = vmul.f32 %v595, %v599
    %603 = vrot.lane.b32.xlu0 %v601, 32
    %v604 = vpop.permute.xlu0 %603
    %v606 = vadd.f32 %v596, %v604
    %v607 = vtanh.pop %v606
    %609 = vrot.lane.b32.xlu0 %v607, 64
    %v610 = vpop.permute.xlu0 %609
    %v612 = vmul.f32 %v595, %v610
    %v613 = vld [vmem:[#allocation2 + $0x4] sm:$0x3]
    %615 = vrot.lane.b32.xlu0 %v612, 32
    %v616 = vpop.permute.xlu0 %615
    %v617 = vsel %vm317, %v616, 0
    %619 = vmatprep.subr.mxu0 0.0
    %620 = vmatpush1.msra.mxu0 %v401
    %621 = vmatprep.subr.mxu0 0.0
    %622 = vmatpush1.msra.mxu0 %v402
    %623 = vmatprep.subr.mxu0 0.0
    %624 = vmatpush1.msra.mxu0 %v403
    %625 = vmatprep.subr.mxu0 0.0
    %626 = vmatpush1.msra.mxu0 %v404
    %627 = vmatprep.subr.mxu0 0.0
    %628 = vmatpush1.msra.mxu0 0.0
    %629 = vmatprep.subr.mxu0 0.0
    %630 = vmatpush1.msra.mxu0 0.0
    %631 = vmatprep.subr.mxu0 0.0
    %632 = vmatpush1.msra.mxu0 0.0
    %633 = vmatprep.subr.mxu0 0.0
    %634 = vmatpush1.msra.mxu0 0.0
    %635 = vmatprep.subr.mxu0 0.0
    %636 = vmatpush1.msra.mxu0 0.0
    %637 = vmatprep.subr.mxu0 0.0
    %638 = vmatpush1.msra.mxu0 0.0
    %639 = vmatprep.subr.mxu0 0.0
    %640 = vmatpush1.msra.mxu0 0.0
    %641 = vmatprep.subr.mxu0 0.0
    %642 = vmatpush1.msra.mxu0 0.0
    %643 = vmatprep.subr.mxu0 0.0
    %644 = vmatpush1.msra.mxu0 0.0
    %645 = vmatprep.subr.mxu0 0.0
    %646 = vmatpush1.msra.mxu0 0.0
    %647 = vmatprep.subr.mxu0 0.0
    %648 = vmatpush1.msra.mxu0 0.0
    %649 = vmatprep.subr.mxu0 0.0
    %650 = vmatpush1.msra.mxu0 0.0
    %651 = vmatprep.subr.mxu0 0.0
    %652 = vmatpush1.msra.mxu0 0.0
    %653 = vmatprep.subr.mxu0 0.0
    %654 = vmatpush1.msra.mxu0 0.0
    %655 = vmatprep.subr.mxu0 0.0
    %656 = vmatpush1.msra.mxu0 0.0
    %657 = vmatprep.subr.mxu0 0.0
    %658 = vmatpush1.msra.mxu0 0.0
    %659 = vmatprep.subr.mxu0 0.0
    %660 = vmatpush1.msra.mxu0 0.0
    %661 = vmatprep.subr.mxu0 0.0
    %662 = vmatpush1.msra.mxu0 0.0
    %663 = vmatprep.subr.mxu0 0.0
    %664 = vmatpush1.msra.mxu0 0.0
    %665 = vmatprep.subr.mxu0 0.0
    %666 = vmatpush1.msra.mxu0 0.0
    %667 = vmatprep.subr.mxu0 0.0
    %668 = vmatpush1.msra.mxu0 0.0
    %669 = vmatprep.subr.mxu0 0.0
    %670 = vmatpush1.msra.mxu0 0.0
    %671 = vmatprep.subr.mxu0 0.0
    %672 = vmatpush1.msra.mxu0 0.0
    %673 = vmatprep.subr.mxu0 0.0
    %674 = vmatpush1.msra.mxu0 0.0
    %675 = vmatprep.subr.mxu0 0.0
    %676 = vmatpush1.msra.mxu0 0.0
    %677 = vmatprep.subr.mxu0 0.0
    %678 = vmatpush1.msra.mxu0 0.0
    %679 = vmatprep.subr.mxu0 0.0
    %680 = vmatpush1.msra.mxu0 0.0
    %681 = vmatprep.subr.mxu0 0.0
    %682 = vmatpush1.msra.mxu0 0.0
    %683 = vmatprep.mubr.f32.mxu0 0.0
    %684 = vmatmul.mubr.f32.gmra.mrb[0].mxu0 %v617
    %v685 = vpop.f32.mrb[0].mxu0
    %v686 = vadd.f32 0.0, %v685
    %v687 = vpop.f32.mrb[0].mxu0
    %688 = vdwg.mxu0
    %v689 = vadd.f32 %v613, %v686
    %v690 = vxor.u32 %v689, 2147483648
    %v691 = vmul.f32 %v690, 1.442695
    %v692 = vpow.pop %v691
    %v693 = vadd.f32 %v692, 1.0
    %v694 = vrcp.pop %v693
    %v695 = vmul.f32 1.0, %v694
    %v696 = vtanh.pop %v689
    %v697 = vsel %vm305, %v696, %v695
    %v698 = vmul.f32 %v697, %v606
    %700 = vrot.lane.b32.xlu0 %v697, 64
    %v701 = vpop.permute.xlu0 %700
    %v703 = vmul.f32 %v697, %v701
    %705 = vrot.lane.b32.xlu0 %v703, 32
    %v706 = vpop.permute.xlu0 %705
    %v708 = vadd.f32 %v698, %v706
    %v709 = vtanh.pop %v708
    %711 = vrot.lane.b32.xlu0 %v709, 64
    %v712 = vpop.permute.xlu0 %711
    %v714 = vmul.f32 %v697, %v712
    %v715 = vld [vmem:[#allocation2 + $0x6] sm:$0x3]
    %717 = vrot.lane.b32.xlu0 %v714, 32
    %v718 = vpop.permute.xlu0 %717
    %v719 = vsel %vm317, %v718, 0
    %721 = vmatprep.subr.mxu0 0.0
    %722 = vmatpush1.msra.mxu0 %v401
    %723 = vmatprep.subr.mxu0 0.0
    %724 = vmatpush1.msra.mxu0 %v402
    %725 = vmatprep.subr.mxu0 0.0
    %726 = vmatpush1.msra.mxu0 %v403
    %727 = vmatprep.subr.mxu0 0.0
    %728 = vmatpush1.msra.mxu0 %v404
    %729 = vmatprep.subr.mxu0 0.0
    %730 = vmatpush1.msra.mxu0 0.0
    %731 = vmatprep.subr.mxu0 0.0
    %732 = vmatpush1.msra.mxu0 0.0
    %733 = vmatprep.subr.mxu0 0.0
    %734 = vmatpush1.msra.mxu0 0.0
    %735 = vmatprep.subr.mxu0 0.0
    %736 = vmatpush1.msra.mxu0 0.0
    %737 = vmatprep.subr.mxu0 0.0
    %738 = vmatpush1.msra.mxu0 0.0
    %739 = vmatprep.subr.mxu0 0.0
    %740 = vmatpush1.msra.mxu0 0.0
    %741 = vmatprep.subr.mxu0 0.0
    %742 = vmatpush1.msra.mxu0 0.0
    %743 = vmatprep.subr.mxu0 0.0
    %744 = vmatpush1.msra.mxu0 0.0
    %745 = vmatprep.subr.mxu0 0.0
    %746 = vmatpush1.msra.mxu0 0.0
    %747 = vmatprep.subr.mxu0 0.0
    %748 = vmatpush1.msra.mxu0 0.0
    %749 = vmatprep.subr.mxu0 0.0
    %750 = vmatpush1.msra.mxu0 0.0
    %751 = vmatprep.subr.mxu0 0.0
    %752 = vmatpush1.msra.mxu0 0.0
    %753 = vmatprep.subr.mxu0 0.0
    %754 = vmatpush1.msra.mxu0 0.0
    %755 = vmatprep.subr.mxu0 0.0
    %756 = vmatpush1.msra.mxu0 0.0
    %757 = vmatprep.subr.mxu0 0.0
    %758 = vmatpush1.msra.mxu0 0.0
    %759 = vmatprep.subr.mxu0 0.0
    %760 = vmatpush1.msra.mxu0 0.0
    %761 = vmatprep.subr.mxu0 0.0
    %762 = vmatpush1.msra.mxu0 0.0
    %763 = vmatprep.subr.mxu0 0.0
    %764 = vmatpush1.msra.mxu0 0.0
    %765 = vmatprep.subr.mxu0 0.0
    %766 = vmatpush1.msra.mxu0 0.0
    %767 = vmatprep.subr.mxu0 0.0
    %768 = vmatpush1.msra.mxu0 0.0
    %769 = vmatprep.subr.mxu0 0.0
    %770 = vmatpush1.msra.mxu0 0.0
    %771 = vmatprep.subr.mxu0 0.0
    %772 = vmatpush1.msra.mxu0 0.0
    %773 = vmatprep.subr.mxu0 0.0
    %774 = vmatpush1.msra.mxu0 0.0
    %775 = vmatprep.subr.mxu0 0.0
    %776 = vmatpush1.msra.mxu0 0.0
    %777 = vmatprep.subr.mxu0 0.0
    %778 = vmatpush1.msra.mxu0 0.0
    %779 = vmatprep.subr.mxu0 0.0
    %780 = vmatpush1.msra.mxu0 0.0
    %781 = vmatprep.subr.mxu0 0.0
    %782 = vmatpush1.msra.mxu0 0.0
    %783 = vmatprep.subr.mxu0 0.0
    %784 = vmatpush1.msra.mxu0 0.0
    %785 = vmatprep.mubr.f32.mxu0 0.0
    %786 = vmatmul.mubr.f32.gmra.mrb[0].mxu0 %v719
    %v787 = vpop.f32.mrb[0].mxu0
    %v788 = vadd.f32 0.0, %v787
    %v789 = vpop.f32.mrb[0].mxu0
    %790 = vdwg.mxu0
    %v791 = vadd.f32 %v715, %v788
    %v792 = vxor.u32 %v791, 2147483648
    %v793 = vmul.f32 %v792, 1.442695
    %v794 = vpow.pop %v793
    %v795 = vadd.f32 %v794, 1.0
    %v796 = vrcp.pop %v795
    %v797 = vmul.f32 1.0, %v796
    %v798 = vtanh.pop %v791
    %v799 = vsel %vm305, %v798, %v797
    %v800 = vmul.f32 %v799, %v708
    %802 = vrot.lane.b32.xlu0 %v799, 64
    %v803 = vpop.permute.xlu0 %802
    %v805 = vmul.f32 %v799, %v803
    %807 = vrot.lane.b32.xlu0 %v805, 32
    %v808 = vpop.permute.xlu0 %807
    %v810 = vadd.f32 %v800, %v808
    %v811 = vtanh.pop %v810
    %813 = vrot.lane.b32.xlu0 %v811, 64
    %v814 = vpop.permute.xlu0 %813
    %v816 = vmul.f32 %v799, %v814
    %v817 = vld [vmem:[#allocation2 + $0x8] sm:$0x3]
    %819 = vrot.lane.b32.xlu0 %v816, 32
    %v820 = vpop.permute.xlu0 %819
    %v821 = vsel %vm317, %v820, 0
    %823 = vmatprep.subr.mxu0 0.0
    %824 = vmatpush1.msra.mxu0 %v401
    %825 = vmatprep.subr.mxu0 0.0
    %826 = vmatpush1.msra.mxu0 %v402
    %827 = vmatprep.subr.mxu0 0.0
    %828 = vmatpush1.msra.mxu0 %v403
    %829 = vmatprep.subr.mxu0 0.0
    %830 = vmatpush1.msra.mxu0 %v404
    %831 = vmatprep.subr.mxu0 0.0
    %832 = vmatpush1.msra.mxu0 0.0
    %833 = vmatprep.subr.mxu0 0.0
    %834 = vmatpush1.msra.mxu0 0.0
    %835 = vmatprep.subr.mxu0 0.0
    %836 = vmatpush1.msra.mxu0 0.0
    %837 = vmatprep.subr.mxu0 0.0
    %838 = vmatpush1.msra.mxu0 0.0
    %839 = vmatprep.subr.mxu0 0.0
    %840 = vmatpush1.msra.mxu0 0.0
    %841 = vmatprep.subr.mxu0 0.0
    %842 = vmatpush1.msra.mxu0 0.0
    %843 = vmatprep.subr.mxu0 0.0
    %844 = vmatpush1.msra.mxu0 0.0
    %845 = vmatprep.subr.mxu0 0.0
    %846 = vmatpush1.msra.mxu0 0.0
    %847 = vmatprep.subr.mxu0 0.0
    %848 = vmatpush1.msra.mxu0 0.0
    %849 = vmatprep.subr.mxu0 0.0
    %850 = vmatpush1.msra.mxu0 0.0
    %851 = vmatprep.subr.mxu0 0.0
    %852 = vmatpush1.msra.mxu0 0.0
    %853 = vmatprep.subr.mxu0 0.0
    %854 = vmatpush1.msra.mxu0 0.0
    %855 = vmatprep.subr.mxu0 0.0
    %856 = vmatpush1.msra.mxu0 0.0
    %857 = vmatprep.subr.mxu0 0.0
    %858 = vmatpush1.msra.mxu0 0.0
    %859 = vmatprep.subr.mxu0 0.0
    %860 = vmatpush1.msra.mxu0 0.0
    %861 = vmatprep.subr.mxu0 0.0
    %862 = vmatpush1.msra.mxu0 0.0
    %863 = vmatprep.subr.mxu0 0.0
    %864 = vmatpush1.msra.mxu0 0.0
    %865 = vmatprep.subr.mxu0 0.0
    %866 = vmatpush1.msra.mxu0 0.0
    %867 = vmatprep.subr.mxu0 0.0
    %868 = vmatpush1.msra.mxu0 0.0
    %869 = vmatprep.subr.mxu0 0.0
    %870 = vmatpush1.msra.mxu0 0.0
    %871 = vmatprep.subr.mxu0 0.0
    %872 = vmatpush1.msra.mxu0 0.0
    %873 = vmatprep.subr.mxu0 0.0
    %874 = vmatpush1.msra.mxu0 0.0
    %875 = vmatprep.subr.mxu0 0.0
    %876 = vmatpush1.msra.mxu0 0.0
    %877 = vmatprep.subr.mxu0 0.0
    %878 = vmatpush1.msra.mxu0 0.0
    %879 = vmatprep.subr.mxu0 0.0
    %880 = vmatpush1.msra.mxu0 0.0
    %881 = vmatprep.subr.mxu0 0.0
    %882 = vmatpush1.msra.mxu0 0.0
    %883 = vmatprep.subr.mxu0 0.0
    %884 = vmatpush1.msra.mxu0 0.0
    %885 = vmatprep.subr.mxu0 0.0
    %886 = vmatpush1.msra.mxu0 0.0
    %887 = vmatprep.mubr.f32.mxu0 0.0
    %888 = vmatmul.mubr.f32.gmra.mrb[0].mxu0 %v821
    %v889 = vpop.f32.mrb[0].mxu0
    %v890 = vadd.f32 0.0, %v889
    %v891 = vpop.f32.mrb[0].mxu0
    %892 = vdwg.mxu0
    %v893 = vadd.f32 %v817, %v890
    %v894 = vxor.u32 %v893, 2147483648
    %v895 = vmul.f32 %v894, 1.442695
    %v896 = vpow.pop %v895
    %v897 = vadd.f32 %v896, 1.0
    %v898 = vrcp.pop %v897
    %v899 = vmul.f32 1.0, %v898
    %v900 = vtanh.pop %v893
    %v901 = vsel %vm305, %v900, %v899
    %v902 = vmul.f32 %v901, %v810
    %904 = vrot.lane.b32.xlu0 %v901, 64
    %v905 = vpop.permute.xlu0 %904
    %v907 = vmul.f32 %v901, %v905
    %909 = vrot.lane.b32.xlu0 %v907, 32
    %v910 = vpop.permute.xlu0 %909
    %v912 = vadd.f32 %v902, %v910
    %v913 = vtanh.pop %v912
    %915 = vrot.lane.b32.xlu0 %v913, 64
    %v916 = vpop.permute.xlu0 %915
    %v918 = vmul.f32 %v901, %v916
    %v919 = vld [vmem:[#allocation2 + $0xa] sm:$0x3]
    %921 = vrot.lane.b32.xlu0 %v918, 32
    %v922 = vpop.permute.xlu0 %921
    %v923 = vsel %vm317, %v922, 0
    %925 = vmatprep.subr.mxu0 0.0
    %926 = vmatpush1.msra.mxu0 %v401
    %927 = vmatprep.subr.mxu0 0.0
    %928 = vmatpush1.msra.mxu0 %v402
    %929 = vmatprep.subr.mxu0 0.0
    %930 = vmatpush1.msra.mxu0 %v403
    %931 = vmatprep.subr.mxu0 0.0
    %932 = vmatpush1.msra.mxu0 %v404
    %933 = vmatprep.subr.mxu0 0.0
    %934 = vmatpush1.msra.mxu0 0.0
    %935 = vmatprep.subr.mxu0 0.0
    %936 = vmatpush1.msra.mxu0 0.0
    %937 = vmatprep.subr.mxu0 0.0
    %938 = vmatpush1.msra.mxu0 0.0
    %939 = vmatprep.subr.mxu0 0.0
    %940 = vmatpush1.msra.mxu0 0.0
    %941 = vmatprep.subr.mxu0 0.0
    %942 = vmatpush1.msra.mxu0 0.0
    %943 = vmatprep.subr.mxu0 0.0
    %944 = vmatpush1.msra.mxu0 0.0
    %945 = vmatprep.subr.mxu0 0.0
    %946 = vmatpush1.msra.mxu0 0.0
    %947 = vmatprep.subr.mxu0 0.0
    %948 = vmatpush1.msra.mxu0 0.0
    %949 = vmatprep.subr.mxu0 0.0
    %950 = vmatpush1.msra.mxu0 0.0
    %951 = vmatprep.subr.mxu0 0.0
    %952 = vmatpush1.msra.mxu0 0.0
    %953 = vmatprep.subr.mxu0 0.0
    %954 = vmatpush1.msra.mxu0 0.0
    %955 = vmatprep.subr.mxu0 0.0
    %956 = vmatpush1.msra.mxu0 0.0
    %957 = vmatprep.subr.mxu0 0.0
    %958 = vmatpush1.msra.mxu0 0.0
    %959 = vmatprep.subr.mxu0 0.0
    %960 = vmatpush1.msra.mxu0 0.0
    %961 = vmatprep.subr.mxu0 0.0
    %962 = vmatpush1.msra.mxu0 0.0
    %963 = vmatprep.subr.mxu0 0.0
    %964 = vmatpush1.msra.mxu0 0.0
    %965 = vmatprep.subr.mxu0 0.0
    %966 = vmatpush1.msra.mxu0 0.0
    %967 = vmatprep.subr.mxu0 0.0
    %968 = vmatpush1.msra.mxu0 0.0
    %969 = vmatprep.subr.mxu0 0.0
    %970 = vmatpush1.msra.mxu0 0.0
    %971 = vmatprep.subr.mxu0 0.0
    %972 = vmatpush1.msra.mxu0 0.0
    %973 = vmatprep.subr.mxu0 0.0
    %974 = vmatpush1.msra.mxu0 0.0
    %975 = vmatprep.subr.mxu0 0.0
    %976 = vmatpush1.msra.mxu0 0.0
    %977 = vmatprep.subr.mxu0 0.0
    %978 = vmatpush1.msra.mxu0 0.0
    %979 = vmatprep.subr.mxu0 0.0
    %980 = vmatpush1.msra.mxu0 0.0
    %981 = vmatprep.subr.mxu0 0.0
    %982 = vmatpush1.msra.mxu0 0.0
    %983 = vmatprep.subr.mxu0 0.0
    %984 = vmatpush1.msra.mxu0 0.0
    %985 = vmatprep.subr.mxu0 0.0
    %986 = vmatpush1.msra.mxu0 0.0
    %987 = vmatprep.subr.mxu0 0.0
    %988 = vmatpush1.msra.mxu0 0.0
    %989 = vmatprep.mubr.f32.mxu0 0.0
    %990 = vmatmul.mubr.f32.gmra.mrb[0].mxu0 %v923
    %v991 = vpop.f32.mrb[0].mxu0
    %v992 = vadd.f32 0.0, %v991
    %v993 = vpop.f32.mrb[0].mxu0
    %994 = vdwg.mxu0
    %v995 = vadd.f32 %v919, %v992
    %v996 = vxor.u32 %v995, 2147483648
    %v997 = vmul.f32 %v996, 1.442695
    %v998 = vpow.pop %v997
    %v999 = vadd.f32 %v998, 1.0
    %v1000 = vrcp.pop %v999
    %v1001 = vmul.f32 1.0, %v1000
    %v1002 = vtanh.pop %v995
    %v1003 = vsel %vm305, %v1002, %v1001
    %v1004 = vmul.f32 %v1003, %v912
    %1006 = vrot.lane.b32.xlu0 %v1003, 64
    %v1007 = vpop.permute.xlu0 %1006
    %v1009 = vmul.f32 %v1003, %v1007
    %1011 = vrot.lane.b32.xlu0 %v1009, 32
    %v1012 = vpop.permute.xlu0 %1011
    %v1014 = vadd.f32 %v1004, %v1012
    %v1015 = vtanh.pop %v1014
    %1017 = vrot.lane.b32.xlu0 %v1015, 64
    %v1018 = vpop.permute.xlu0 %1017
    %v1020 = vmul.f32 %v1003, %v1018
    %v1021 = vld [vmem:[#allocation2 + $0xc] sm:$0x3]
    %1023 = vrot.lane.b32.xlu0 %v1020, 32
    %v1024 = vpop.permute.xlu0 %1023
    %v1025 = vsel %vm317, %v1024, 0
    %1027 = vmatprep.subr.mxu0 0.0
    %1028 = vmatpush1.msra.mxu0 %v401
    %1029 = vmatprep.subr.mxu0 0.0
    %1030 = vmatpush1.msra.mxu0 %v402
    %1031 = vmatprep.subr.mxu0 0.0
    %1032 = vmatpush1.msra.mxu0 %v403
    %1033 = vmatprep.subr.mxu0 0.0
    %1034 = vmatpush1.msra.mxu0 %v404
    %1035 = vmatprep.subr.mxu0 0.0
    %1036 = vmatpush1.msra.mxu0 0.0
    %1037 = vmatprep.subr.mxu0 0.0
    %1038 = vmatpush1.msra.mxu0 0.0
    %1039 = vmatprep.subr.mxu0 0.0
    %1040 = vmatpush1.msra.mxu0 0.0
    %1041 = vmatprep.subr.mxu0 0.0
    %1042 = vmatpush1.msra.mxu0 0.0
    %1043 = vmatprep.subr.mxu0 0.0
    %1044 = vmatpush1.msra.mxu0 0.0
    %1045 = vmatprep.subr.mxu0 0.0
    %1046 = vmatpush1.msra.mxu0 0.0
    %1047 = vmatprep.subr.mxu0 0.0
    %1048 = vmatpush1.msra.mxu0 0.0
    %1049 = vmatprep.subr.mxu0 0.0
    %1050 = vmatpush1.msra.mxu0 0.0
    %1051 = vmatprep.subr.mxu0 0.0
    %1052 = vmatpush1.msra.mxu0 0.0
    %1053 = vmatprep.subr.mxu0 0.0
    %1054 = vmatpush1.msra.mxu0 0.0
    %1055 = vmatprep.subr.mxu0 0.0
    %1056 = vmatpush1.msra.mxu0 0.0
    %1057 = vmatprep.subr.mxu0 0.0
    %1058 = vmatpush1.msra.mxu0 0.0
    %1059 = vmatprep.subr.mxu0 0.0
    %1060 = vmatpush1.msra.mxu0 0.0
    %1061 = vmatprep.subr.mxu0 0.0
    %1062 = vmatpush1.msra.mxu0 0.0
    %1063 = vmatprep.subr.mxu0 0.0
    %1064 = vmatpush1.msra.mxu0 0.0
    %1065 = vmatprep.subr.mxu0 0.0
    %1066 = vmatpush1.msra.mxu0 0.0
    %1067 = vmatprep.subr.mxu0 0.0
    %1068 = vmatpush1.msra.mxu0 0.0
    %1069 = vmatprep.subr.mxu0 0.0
    %1070 = vmatpush1.msra.mxu0 0.0
    %1071 = vmatprep.subr.mxu0 0.0
    %1072 = vmatpush1.msra.mxu0 0.0
    %1073 = vmatprep.subr.mxu0 0.0
    %1074 = vmatpush1.msra.mxu0 0.0
    %1075 = vmatprep.subr.mxu0 0.0
    %1076 = vmatpush1.msra.mxu0 0.0
    %1077 = vmatprep.subr.mxu0 0.0
    %1078 = vmatpush1.msra.mxu0 0.0
    %1079 = vmatprep.subr.mxu0 0.0
    %1080 = vmatpush1.msra.mxu0 0.0
    %1081 = vmatprep.subr.mxu0 0.0
    %1082 = vmatpush1.msra.mxu0 0.0
    %1083 = vmatprep.subr.mxu0 0.0
    %1084 = vmatpush1.msra.mxu0 0.0
    %1085 = vmatprep.subr.mxu0 0.0
    %1086 = vmatpush1.msra.mxu0 0.0
    %1087 = vmatprep.subr.mxu0 0.0
    %1088 = vmatpush1.msra.mxu0 0.0
    %1089 = vmatprep.subr.mxu0 0.0
    %1090 = vmatpush1.msra.mxu0 0.0
    %1091 = vmatprep.mubr.f32.mxu0 0.0
    %1092 = vmatmul.mubr.f32.gmra.mrb[0].mxu0 %v1025
    %v1093 = vpop.f32.mrb[0].mxu0
    %v1094 = vadd.f32 0.0, %v1093
    %v1095 = vpop.f32.mrb[0].mxu0
    %1096 = vdwg.mxu0
    %v1097 = vadd.f32 %v1021, %v1094
    %v1098 = vxor.u32 %v1097, 2147483648
    %v1099 = vmul.f32 %v1098, 1.442695
    %v1100 = vpow.pop %v1099
    %v1101 = vadd.f32 %v1100, 1.0
    %v1102 = vrcp.pop %v1101
    %v1103 = vmul.f32 1.0, %v1102
    %v1104 = vtanh.pop %v1097
    %v1105 = vsel %vm305, %v1104, %v1103
    %v1106 = vmul.f32 %v1105, %v1014
    %1108 = vrot.lane.b32.xlu0 %v1105, 64
    %v1109 = vpop.permute.xlu0 %1108
    %v1111 = vmul.f32 %v1105, %v1109
    %1113 = vrot.lane.b32.xlu0 %v1111, 32
    %v1114 = vpop.permute.xlu0 %1113
    %v1116 = vadd.f32 %v1106, %v1114
    %v1117 = vtanh.pop %v1116
    %1119 = vrot.lane.b32.xlu0 %v1117, 64
    %v1120 = vpop.permute.xlu0 %1119
    %v1122 = vmul.f32 %v1105, %v1120
    %v1123 = vld [vmem:[#allocation2 + $0xe] sm:$0x3]
    %1125 = vrot.lane.b32.xlu0 %v1122, 32
    %v1126 = vpop.permute.xlu0 %1125
    %v1127 = vsel %vm317, %v1126, 0
    %1129 = vmatprep.subr.mxu0 0.0
    %1130 = vmatpush1.msra.mxu0 %v401
    %1131 = vmatprep.subr.mxu0 0.0
    %1132 = vmatpush1.msra.mxu0 %v402
    %1133 = vmatprep.subr.mxu0 0.0
    %1134 = vmatpush1.msra.mxu0 %v403
    %1135 = vmatprep.subr.mxu0 0.0
    %1136 = vmatpush1.msra.mxu0 %v404
    %1137 = vmatprep.subr.mxu0 0.0
    %1138 = vmatpush1.msra.mxu0 0.0
    %1139 = vmatprep.subr.mxu0 0.0
    %1140 = vmatpush1.msra.mxu0 0.0
    %1141 = vmatprep.subr.mxu0 0.0
    %1142 = vmatpush1.msra.mxu0 0.0
    %1143 = vmatprep.subr.mxu0 0.0
    %1144 = vmatpush1.msra.mxu0 0.0
    %1145 = vmatprep.subr.mxu0 0.0
    %1146 = vmatpush1.msra.mxu0 0.0
    %1147 = vmatprep.subr.mxu0 0.0
    %1148 = vmatpush1.msra.mxu0 0.0
    %1149 = vmatprep.subr.mxu0 0.0
    %1150 = vmatpush1.msra.mxu0 0.0
    %1151 = vmatprep.subr.mxu0 0.0
    %1152 = vmatpush1.msra.mxu0 0.0
    %1153 = vmatprep.subr.mxu0 0.0
    %1154 = vmatpush1.msra.mxu0 0.0
    %1155 = vmatprep.subr.mxu0 0.0
    %1156 = vmatpush1.msra.mxu0 0.0
    %1157 = vmatprep.subr.mxu0 0.0
    %1158 = vmatpush1.msra.mxu0 0.0
    %1159 = vmatprep.subr.mxu0 0.0
    %1160 = vmatpush1.msra.mxu0 0.0
    %1161 = vmatprep.subr.mxu0 0.0
    %1162 = vmatpush1.msra.mxu0 0.0
    %1163 = vmatprep.subr.mxu0 0.0
    %1164 = vmatpush1.msra.mxu0 0.0
    %1165 = vmatprep.subr.mxu0 0.0
    %1166 = vmatpush1.msra.mxu0 0.0
    %1167 = vmatprep.subr.mxu0 0.0
    %1168 = vmatpush1.msra.mxu0 0.0
    %1169 = vmatprep.subr.mxu0 0.0
    %1170 = vmatpush1.msra.mxu0 0.0
    %1171 = vmatprep.subr.mxu0 0.0
    %1172 = vmatpush1.msra.mxu0 0.0
    %1173 = vmatprep.subr.mxu0 0.0
    %1174 = vmatpush1.msra.mxu0 0.0
    %1175 = vmatprep.subr.mxu0 0.0
    %1176 = vmatpush1.msra.mxu0 0.0
    %1177 = vmatprep.subr.mxu0 0.0
    %1178 = vmatpush1.msra.mxu0 0.0
    %1179 = vmatprep.subr.mxu0 0.0
    %1180 = vmatpush1.msra.mxu0 0.0
    %1181 = vmatprep.subr.mxu0 0.0
    %1182 = vmatpush1.msra.mxu0 0.0
    %1183 = vmatprep.subr.mxu0 0.0
    %1184 = vmatpush1.msra.mxu0 0.0
    %1185 = vmatprep.subr.mxu0 0.0
    %1186 = vmatpush1.msra.mxu0 0.0
    %1187 = vmatprep.subr.mxu0 0.0
    %1188 = vmatpush1.msra.mxu0 0.0
    %1189 = vmatprep.subr.mxu0 0.0
    %1190 = vmatpush1.msra.mxu0 0.0
    %1191 = vmatprep.subr.mxu0 0.0
    %1192 = vmatpush1.msra.mxu0 0.0
    %1193 = vmatprep.mubr.f32.mxu0 0.0
    %1194 = vmatmul.mubr.f32.gmra.mrb[0].mxu0 %v1127
    %v1195 = vpop.f32.mrb[0].mxu0
    %v1196 = vadd.f32 0.0, %v1195
    %v1197 = vpop.f32.mrb[0].mxu0
    %1198 = vdwg.mxu0
    %v1199 = vadd.f32 %v1123, %v1196
    %v1200 = vxor.u32 %v1199, 2147483648
    %v1201 = vmul.f32 %v1200, 1.442695
    %v1202 = vpow.pop %v1201
    %v1203 = vadd.f32 %v1202, 1.0
    %v1204 = vrcp.pop %v1203
    %v1205 = vmul.f32 1.0, %v1204
    %v1206 = vtanh.pop %v1199
    %v1207 = vsel %vm305, %v1206, %v1205
    %v1208 = vmul.f32 %v1207, %v1116
    %1210 = vrot.lane.b32.xlu0 %v1207, 64
    %v1211 = vpop.permute.xlu0 %1210
    %v1213 = vmul.f32 %v1207, %v1211
    %1215 = vrot.lane.b32.xlu0 %v1213, 32
    %v1216 = vpop.permute.xlu0 %1215
    %v1218 = vadd.f32 %v1208, %v1216
    %v1219 = vtanh.pop %v1218
    %1221 = vrot.lane.b32.xlu0 %v1219, 64
    %v1222 = vpop.permute.xlu0 %1221
    %v1224 = vmul.f32 %v1207, %v1222
    %1226 = vrot.lane.b32.xlu0 %v1224, 32
    %v1227 = vpop.permute.xlu0 %1226
    %vm1229 = vcmask 254976
    %1230 = vst.msk [vmem:[#allocation14] sm:$0x3] %vm1229, %v1227
    %1232 = vrot.lane.b32.xlu0 %v1218, 96
    %v1233 = vpop.permute.xlu0 %1232
    %1235 = vst.msk [vmem:[#allocation16] sm:$0x3] %vm1229, %v1233
    %v1236 = vrot.slane %v612, 6
    %v1238 = vrot.slane %v714, 4
    %v1240 = vrot.slane %v816, 2
    %v1242 = vrot.slane %v1020, 6
    %v1244 = vrot.slane %v1122, 4
    %v1246 = vrot.slane %v1224, 2
    %v1248 = vsel %vm194, %v510, %v1236
    %v1249 = vsel %vm198, %v1248, %v1238
    %v1250 = vsel %vm202, %v1249, %v1240
    %v1251 = vsel %vm194, %v918, %v1242
    %v1252 = vsel %vm198, %v1251, %v1244
    %v1253 = vsel %vm202, %v1252, %v1246
    %v1254 = vld [vmem:[%s7] sm:$0xff]
    %v1255 = vld [vmem:[%s7 + $0x8] sm:$0xff]
    %v1256 = vld [vmem:[%s7 + $0x10] sm:$0xff]
    %v1257 = vld [vmem:[%s7 + $0x18] sm:$0xff]
    %v1258 = vld [vmem:[%s9] sm:$0x1]
    %v1260 = vlaneseq
    %v1261 = vshrl.u32 %v1260, 7
    %v1262 = vsub.s32 0, %v1261
    %v1263 = vrot.slane %v1258, %v1262
    %1267 = vrot.lane.b32.xlu0 %v1250, 32
    %v1268 = vpop.permute.xlu0 %1267
    %1269 = vrot.lane.b32.xlu0 %v1253, 32
    %v1270 = vpop.permute.xlu0 %1269
    %v1271 = vsel %vm317, %v1268, 0
    %v1273 = vsel %vm317, %v1270, 0
    %1275 = vmatprep.subr.mxu0 0.0
    %1276 = vmatpush1.msra.mxu0 %v1254
    %1277 = vmatprep.subr.mxu0 0.0
    %1278 = vmatpush1.msra.mxu0 %v1255
    %1279 = vmatprep.subr.mxu0 0.0
    %1280 = vmatpush1.msra.mxu0 %v1256
    %1281 = vmatprep.subr.mxu0 0.0
    %1282 = vmatpush1.msra.mxu0 %v1257
    %1283 = vmatprep.subr.mxu0 0.0
    %1284 = vmatpush1.msra.mxu0 0.0
    %1285 = vmatprep.subr.mxu0 0.0
    %1286 = vmatpush1.msra.mxu0 0.0
    %1287 = vmatprep.subr.mxu0 0.0
    %1288 = vmatpush1.msra.mxu0 0.0
    %1289 = vmatprep.subr.mxu0 0.0
    %1290 = vmatpush1.msra.mxu0 0.0
    %1291 = vmatprep.subr.mxu0 0.0
    %1292 = vmatpush1.msra.mxu0 0.0
    %1293 = vmatprep.subr.mxu0 0.0
    %1294 = vmatpush1.msra.mxu0 0.0
    %1295 = vmatprep.subr.mxu0 0.0
    %1296 = vmatpush1.msra.mxu0 0.0
    %1297 = vmatprep.subr.mxu0 0.0
    %1298 = vmatpush1.msra.mxu0 0.0
    %1299 = vmatprep.subr.mxu0 0.0
    %1300 = vmatpush1.msra.mxu0 0.0
    %1301 = vmatprep.subr.mxu0 0.0
    %1302 = vmatpush1.msra.mxu0 0.0
    %1303 = vmatprep.subr.mxu0 0.0
    %1304 = vmatpush1.msra.mxu0 0.0
    %1305 = vmatprep.subr.mxu0 0.0
    %1306 = vmatpush1.msra.mxu0 0.0
    %1307 = vmatprep.subr.mxu0 0.0
    %1308 = vmatpush1.msra.mxu0 0.0
    %1309 = vmatprep.subr.mxu0 0.0
    %1310 = vmatpush1.msra.mxu0 0.0
    %1311 = vmatprep.subr.mxu0 0.0
    %1312 = vmatpush1.msra.mxu0 0.0
    %1313 = vmatprep.subr.mxu0 0.0
    %1314 = vmatpush1.msra.mxu0 0.0
    %1315 = vmatprep.subr.mxu0 0.0
    %1316 = vmatpush1.msra.mxu0 0.0
    %1317 = vmatprep.subr.mxu0 0.0
    %1318 = vmatpush1.msra.mxu0 0.0
    %1319 = vmatprep.subr.mxu0 0.0
    %1320 = vmatpush1.msra.mxu0 0.0
    %1321 = vmatprep.subr.mxu0 0.0
    %1322 = vmatpush1.msra.mxu0 0.0
    %1323 = vmatprep.subr.mxu0 0.0
    %1324 = vmatpush1.msra.mxu0 0.0
    %1325 = vmatprep.subr.mxu0 0.0
    %1326 = vmatpush1.msra.mxu0 0.0
    %1327 = vmatprep.subr.mxu0 0.0
    %1328 = vmatpush1.msra.mxu0 0.0
    %1329 = vmatprep.subr.mxu0 0.0
    %1330 = vmatpush1.msra.mxu0 0.0
    %1331 = vmatprep.subr.mxu0 0.0
    %1332 = vmatpush1.msra.mxu0 0.0
    %1333 = vmatprep.subr.mxu0 0.0
    %1334 = vmatpush1.msra.mxu0 0.0
    %1335 = vmatprep.subr.mxu0 0.0
    %1336 = vmatpush1.msra.mxu0 0.0
    %1337 = vmatprep.subr.mxu0 0.0
    %1338 = vmatpush1.msra.mxu0 0.0
    %1339 = vmatprep.mubr.f32.mxu0 0.0
    %1340 = vmatmul.mubr.f32.gmra.mrb[0].mxu0 %v1271
    %v1341 = vpop.f32.mrb[0].mxu0
    %v1342 = vadd.f32 %v1263, %v1341
    %v1343 = vpop.f32.mrb[0].mxu0
    %1344 = vmatprep.mubr.f32.mxu0 0.0
    %1345 = vmatmul.mubr.f32.gmra.mrb[0].mxu0 %v1273
    %v1346 = vpop.f32.mrb[0].mxu0
    %v1347 = vadd.f32 %v1263, %v1346
    %v1348 = vpop.f32.mrb[0].mxu0
    %1349 = vdwg.mxu0
    %1350 = vst [vmem:[#allocation2] sm:$0xff] %v1342
    %1351 = vst [vmem:[#allocation2 + $0x8] sm:$0xff] %v1347
    %v1352 = vld [vmem:[#allocation8] sm:$0xff]
    %v1353 = vld [vmem:[#allocation8 + $0x8] sm:$0xff]
    %v1354 = vld [vmem:[#allocation8 + $0x10] sm:$0xff]
    %v1355 = vld [vmem:[#allocation8 + $0x18] sm:$0xff]
    %s1356 = scalar_lea.vmem %s2, 2
    %v1357 = vld [vmem:[%s1356] sm:$0x3]
    %s1358 = scalar_lea.vmem %s3, 2
    %v1359 = vld [vmem:[%s1358] sm:$0x3]
    %v1360 = vld [vmem:[#allocation2] sm:$0x3]
    %v1362 = vsel %vm317, %v1357, 0
    %1364 = vmatprep.subr.mxu0 0.0
    %1365 = vmatpush1.msra.mxu0 %v1352
    %1366 = vmatprep.subr.mxu0 0.0
    %1367 = vmatpush1.msra.mxu0 %v1353
    %1368 = vmatprep.subr.mxu0 0.0
    %1369 = vmatpush1.msra.mxu0 %v1354
    %1370 = vmatprep.subr.mxu0 0.0
    %1371 = vmatpush1.msra.mxu0 %v1355
    %1372 = vmatprep.subr.mxu0 0.0
    %1373 = vmatpush1.msra.mxu0 0.0
    %1374 = vmatprep.subr.mxu0 0.0
    %1375 = vmatpush1.msra.mxu0 0.0
    %1376 = vmatprep.subr.mxu0 0.0
    %1377 = vmatpush1.msra.mxu0 0.0
    %1378 = vmatprep.subr.mxu0 0.0
    %1379 = vmatpush1.msra.mxu0 0.0
    %1380 = vmatprep.subr.mxu0 0.0
    %1381 = vmatpush1.msra.mxu0 0.0
    %1382 = vmatprep.subr.mxu0 0.0
    %1383 = vmatpush1.msra.mxu0 0.0
    %1384 = vmatprep.subr.mxu0 0.0
    %1385 = vmatpush1.msra.mxu0 0.0
    %1386 = vmatprep.subr.mxu0 0.0
    %1387 = vmatpush1.msra.mxu0 0.0
    %1388 = vmatprep.subr.mxu0 0.0
    %1389 = vmatpush1.msra.mxu0 0.0
    %1390 = vmatprep.subr.mxu0 0.0
    %1391 = vmatpush1.msra.mxu0 0.0
    %1392 = vmatprep.subr.mxu0 0.0
    %1393 = vmatpush1.msra.mxu0 0.0
    %1394 = vmatprep.subr.mxu0 0.0
    %1395 = vmatpush1.msra.mxu0 0.0
    %1396 = vmatprep.subr.mxu0 0.0
    %1397 = vmatpush1.msra.mxu0 0.0
    %1398 = vmatprep.subr.mxu0 0.0
    %1399 = vmatpush1.msra.mxu0 0.0
    %1400 = vmatprep.subr.mxu0 0.0
    %1401 = vmatpush1.msra.mxu0 0.0
    %1402 = vmatprep.subr.mxu0 0.0
    %1403 = vmatpush1.msra.mxu0 0.0
    %1404 = vmatprep.subr.mxu0 0.0
    %1405 = vmatpush1.msra.mxu0 0.0
    %1406 = vmatprep.subr.mxu0 0.0
    %1407 = vmatpush1.msra.mxu0 0.0
    %1408 = vmatprep.subr.mxu0 0.0
    %1409 = vmatpush1.msra.mxu0 0.0
    %1410 = vmatprep.subr.mxu0 0.0
    %1411 = vmatpush1.msra.mxu0 0.0
    %1412 = vmatprep.subr.mxu0 0.0
    %1413 = vmatpush1.msra.mxu0 0.0
    %1414 = vmatprep.subr.mxu0 0.0
    %1415 = vmatpush1.msra.mxu0 0.0
    %1416 = vmatprep.subr.mxu0 0.0
    %1417 = vmatpush1.msra.mxu0 0.0
    %1418 = vmatprep.subr.mxu0 0.0
    %1419 = vmatpush1.msra.mxu0 0.0
    %1420 = vmatprep.subr.mxu0 0.0
    %1421 = vmatpush1.msra.mxu0 0.0
    %1422 = vmatprep.subr.mxu0 0.0
    %1423 = vmatpush1.msra.mxu0 0.0
    %1424 = vmatprep.subr.mxu0 0.0
    %1425 = vmatpush1.msra.mxu0 0.0
    %1426 = vmatprep.subr.mxu0 0.0
    %1427 = vmatpush1.msra.mxu0 0.0
    %1428 = vmatprep.mubr.f32.mxu0 0.0
    %1429 = vmatmul.mubr.f32.gmra.mrb[0].mxu0 %v1362
    %v1430 = vpop.f32.mrb[0].mxu0
    %v1431 = vadd.f32 0.0, %v1430
    %v1432 = vpop.f32.mrb[0].mxu0
    %1433 = vdwg.mxu0
    %v1434 = vadd.f32 %v1360, %v1431
    %v1435 = vxor.u32 %v1434, 2147483648
    %v1436 = vmul.f32 %v1435, 1.442695
    %v1437 = vpow.pop %v1436
    %v1438 = vadd.f32 %v1437, 1.0
    %v1439 = vrcp.pop %v1438
    %v1440 = vmul.f32 1.0, %v1439
    %v1441 = vtanh.pop %v1434
    %v1442 = vsel %vm305, %v1441, %v1440
    %1444 = vrot.lane.b32.xlu0 %v1359, 32
    %v1445 = vpop.permute.xlu0 %1444
    %v1447 = vmul.f32 %v1442, %v1445
    %1449 = vrot.lane.b32.xlu0 %v1442, 64
    %v1450 = vpop.permute.xlu0 %1449
    %v1452 = vmul.f32 %v1442, %v1450
    %1454 = vrot.lane.b32.xlu0 %v1452, 32
    %v1455 = vpop.permute.xlu0 %1454
    %v1457 = vadd.f32 %v1447, %v1455
    %v1458 = vtanh.pop %v1457
    %1460 = vrot.lane.b32.xlu0 %v1458, 64
    %v1461 = vpop.permute.xlu0 %1460
    %v1463 = vmul.f32 %v1442, %v1461
    %v1464 = vld [vmem:[#allocation2 + $0x2] sm:$0x3]
    %1466 = vrot.lane.b32.xlu0 %v1463, 32
    %v1467 = vpop.permute.xlu0 %1466
    %v1468 = vsel %vm317, %v1467, 0
    %1470 = vmatprep.subr.mxu0 0.0
    %1471 = vmatpush1.msra.mxu0 %v1352
    %1472 = vmatprep.subr.mxu0 0.0
    %1473 = vmatpush1.msra.mxu0 %v1353
    %1474 = vmatprep.subr.mxu0 0.0
    %1475 = vmatpush1.msra.mxu0 %v1354
    %1476 = vmatprep.subr.mxu0 0.0
    %1477 = vmatpush1.msra.mxu0 %v1355
    %1478 = vmatprep.subr.mxu0 0.0
    %1479 = vmatpush1.msra.mxu0 0.0
    %1480 = vmatprep.subr.mxu0 0.0
    %1481 = vmatpush1.msra.mxu0 0.0
    %1482 = vmatprep.subr.mxu0 0.0
    %1483 = vmatpush1.msra.mxu0 0.0
    %1484 = vmatprep.subr.mxu0 0.0
    %1485 = vmatpush1.msra.mxu0 0.0
    %1486 = vmatprep.subr.mxu0 0.0
    %1487 = vmatpush1.msra.mxu0 0.0
    %1488 = vmatprep.subr.mxu0 0.0
    %1489 = vmatpush1.msra.mxu0 0.0
    %1490 = vmatprep.subr.mxu0 0.0
    %1491 = vmatpush1.msra.mxu0 0.0
    %1492 = vmatprep.subr.mxu0 0.0
    %1493 = vmatpush1.msra.mxu0 0.0
    %1494 = vmatprep.subr.mxu0 0.0
    %1495 = vmatpush1.msra.mxu0 0.0
    %1496 = vmatprep.subr.mxu0 0.0
    %1497 = vmatpush1.msra.mxu0 0.0
    %1498 = vmatprep.subr.mxu0 0.0
    %1499 = vmatpush1.msra.mxu0 0.0
    %1500 = vmatprep.subr.mxu0 0.0
    %1501 = vmatpush1.msra.mxu0 0.0
    %1502 = vmatprep.subr.mxu0 0.0
    %1503 = vmatpush1.msra.mxu0 0.0
    %1504 = vmatprep.subr.mxu0 0.0
    %1505 = vmatpush1.msra.mxu0 0.0
    %1506 = vmatprep.subr.mxu0 0.0
    %1507 = vmatpush1.msra.mxu0 0.0
    %1508 = vmatprep.subr.mxu0 0.0
    %1509 = vmatpush1.msra.mxu0 0.0
    %1510 = vmatprep.subr.mxu0 0.0
    %1511 = vmatpush1.msra.mxu0 0.0
    %1512 = vmatprep.subr.mxu0 0.0
    %1513 = vmatpush1.msra.mxu0 0.0
    %1514 = vmatprep.subr.mxu0 0.0
    %1515 = vmatpush1.msra.mxu0 0.0
    %1516 = vmatprep.subr.mxu0 0.0
    %1517 = vmatpush1.msra.mxu0 0.0
    %1518 = vmatprep.subr.mxu0 0.0
    %1519 = vmatpush1.msra.mxu0 0.0
    %1520 = vmatprep.subr.mxu0 0.0
    %1521 = vmatpush1.msra.mxu0 0.0
    %1522 = vmatprep.subr.mxu0 0.0
    %1523 = vmatpush1.msra.mxu0 0.0
    %1524 = vmatprep.subr.mxu0 0.0
    %1525 = vmatpush1.msra.mxu0 0.0
    %1526 = vmatprep.subr.mxu0 0.0
    %1527 = vmatpush1.msra.mxu0 0.0
    %1528 = vmatprep.subr.mxu0 0.0
    %1529 = vmatpush1.msra.mxu0 0.0
    %1530 = vmatprep.subr.mxu0 0.0
    %1531 = vmatpush1.msra.mxu0 0.0
    %1532 = vmatprep.subr.mxu0 0.0
    %1533 = vmatpush1.msra.mxu0 0.0
    %1534 = vmatprep.mubr.f32.mxu0 0.0
    %1535 = vmatmul.mubr.f32.gmra.mrb[0].mxu0 %v1468
    %v1536 = vpop.f32.mrb[0].mxu0
    %v1537 = vadd.f32 0.0, %v1536
    %v1538 = vpop.f32.mrb[0].mxu0
    %1539 = vdwg.mxu0
    %v1540 = vadd.f32 %v1464, %v1537
    %v1541 = vxor.u32 %v1540, 2147483648
    %v1542 = vmul.f32 %v1541, 1.442695
    %v1543 = vpow.pop %v1542
    %v1544 = vadd.f32 %v1543, 1.0
    %v1545 = vrcp.pop %v1544
    %v1546 = vmul.f32 1.0, %v1545
    %v1547 = vtanh.pop %v1540
    %v1548 = vsel %vm305, %v1547, %v1546
    %v1549 = vmul.f32 %v1548, %v1457
    %1551 = vrot.lane.b32.xlu0 %v1548, 64
    %v1552 = vpop.permute.xlu0 %1551
    %v1554 = vmul.f32 %v1548, %v1552
    %1556 = vrot.lane.b32.xlu0 %v1554, 32
    %v1557 = vpop.permute.xlu0 %1556
    %v1559 = vadd.f32 %v1549, %v1557
    %v1560 = vtanh.pop %v1559
    %1562 = vrot.lane.b32.xlu0 %v1560, 64
    %v1563 = vpop.permute.xlu0 %1562
    %v1565 = vmul.f32 %v1548, %v1563
    %v1566 = vld [vmem:[#allocation2 + $0x4] sm:$0x3]
    %1568 = vrot.lane.b32.xlu0 %v1565, 32
    %v1569 = vpop.permute.xlu0 %1568
    %v1570 = vsel %vm317, %v1569, 0
    %1572 = vmatprep.subr.mxu0 0.0
    %1573 = vmatpush1.msra.mxu0 %v1352
    %1574 = vmatprep.subr.mxu0 0.0
    %1575 = vmatpush1.msra.mxu0 %v1353
    %1576 = vmatprep.subr.mxu0 0.0
    %1577 = vmatpush1.msra.mxu0 %v1354
    %1578 = vmatprep.subr.mxu0 0.0
    %1579 = vmatpush1.msra.mxu0 %v1355
    %1580 = vmatprep.subr.mxu0 0.0
    %1581 = vmatpush1.msra.mxu0 0.0
    %1582 = vmatprep.subr.mxu0 0.0
    %1583 = vmatpush1.msra.mxu0 0.0
    %1584 = vmatprep.subr.mxu0 0.0
    %1585 = vmatpush1.msra.mxu0 0.0
    %1586 = vmatprep.subr.mxu0 0.0
    %1587 = vmatpush1.msra.mxu0 0.0
    %1588 = vmatprep.subr.mxu0 0.0
    %1589 = vmatpush1.msra.mxu0 0.0
    %1590 = vmatprep.subr.mxu0 0.0
    %1591 = vmatpush1.msra.mxu0 0.0
    %1592 = vmatprep.subr.mxu0 0.0
    %1593 = vmatpush1.msra.mxu0 0.0
    %1594 = vmatprep.subr.mxu0 0.0
    %1595 = vmatpush1.msra.mxu0 0.0
    %1596 = vmatprep.subr.mxu0 0.0
    %1597 = vmatpush1.msra.mxu0 0.0
    %1598 = vmatprep.subr.mxu0 0.0
    %1599 = vmatpush1.msra.mxu0 0.0
    %1600 = vmatprep.subr.mxu0 0.0
    %1601 = vmatpush1.msra.mxu0 0.0
    %1602 = vmatprep.subr.mxu0 0.0
    %1603 = vmatpush1.msra.mxu0 0.0
    %1604 = vmatprep.subr.mxu0 0.0
    %1605 = vmatpush1.msra.mxu0 0.0
    %1606 = vmatprep.subr.mxu0 0.0
    %1607 = vmatpush1.msra.mxu0 0.0
    %1608 = vmatprep.subr.mxu0 0.0
    %1609 = vmatpush1.msra.mxu0 0.0
    %1610 = vmatprep.subr.mxu0 0.0
    %1611 = vmatpush1.msra.mxu0 0.0
    %1612 = vmatprep.subr.mxu0 0.0
    %1613 = vmatpush1.msra.mxu0 0.0
    %1614 = vmatprep.subr.mxu0 0.0
    %1615 = vmatpush1.msra.mxu0 0.0
    %1616 = vmatprep.subr.mxu0 0.0
    %1617 = vmatpush1.msra.mxu0 0.0
    %1618 = vmatprep.subr.mxu0 0.0
    %1619 = vmatpush1.msra.mxu0 0.0
    %1620 = vmatprep.subr.mxu0 0.0
    %1621 = vmatpush1.msra.mxu0 0.0
    %1622 = vmatprep.subr.mxu0 0.0
    %1623 = vmatpush1.msra.mxu0 0.0
    %1624 = vmatprep.subr.mxu0 0.0
    %1625 = vmatpush1.msra.mxu0 0.0
    %1626 = vmatprep.subr.mxu0 0.0
    %1627 = vmatpush1.msra.mxu0 0.0
    %1628 = vmatprep.subr.mxu0 0.0
    %1629 = vmatpush1.msra.mxu0 0.0
    %1630 = vmatprep.subr.mxu0 0.0
    %1631 = vmatpush1.msra.mxu0 0.0
    %1632 = vmatprep.subr.mxu0 0.0
    %1633 = vmatpush1.msra.mxu0 0.0
    %1634 = vmatprep.subr.mxu0 0.0
    %1635 = vmatpush1.msra.mxu0 0.0
    %1636 = vmatprep.mubr.f32.mxu0 0.0
    %1637 = vmatmul.mubr.f32.gmra.mrb[0].mxu0 %v1570
    %v1638 = vpop.f32.mrb[0].mxu0
    %v1639 = vadd.f32 0.0, %v1638
    %v1640 = vpop.f32.mrb[0].mxu0
    %1641 = vdwg.mxu0
    %v1642 = vadd.f32 %v1566, %v1639
    %v1643 = vxor.u32 %v1642, 2147483648
    %v1644 = vmul.f32 %v1643, 1.442695
    %v1645 = vpow.pop %v1644
    %v1646 = vadd.f32 %v1645, 1.0
    %v1647 = vrcp.pop %v1646
    %v1648 = vmul.f32 1.0, %v1647
    %v1649 = vtanh.pop %v1642
    %v1650 = vsel %vm305, %v1649, %v1648
    %v1651 = vmul.f32 %v1650, %v1559
    %1653 = vrot.lane.b32.xlu0 %v1650, 64
    %v1654 = vpop.permute.xlu0 %1653
    %v1656 = vmul.f32 %v1650, %v1654
    %1658 = vrot.lane.b32.xlu0 %v1656, 32
    %v1659 = vpop.permute.xlu0 %1658
    %v1661 = vadd.f32 %v1651, %v1659
    %v1662 = vtanh.pop %v1661
    %1664 = vrot.lane.b32.xlu0 %v1662, 64
    %v1665 = vpop.permute.xlu0 %1664
    %v1667 = vmul.f32 %v1650, %v1665
    %v1668 = vld [vmem:[#allocation2 + $0x6] sm:$0x3]
    %1670 = vrot.lane.b32.xlu0 %v1667, 32
    %v1671 = vpop.permute.xlu0 %1670
    %v1672 = vsel %vm317, %v1671, 0
    %1674 = vmatprep.subr.mxu0 0.0
    %1675 = vmatpush1.msra.mxu0 %v1352
    %1676 = vmatprep.subr.mxu0 0.0
    %1677 = vmatpush1.msra.mxu0 %v1353
    %1678 = vmatprep.subr.mxu0 0.0
    %1679 = vmatpush1.msra.mxu0 %v1354
    %1680 = vmatprep.subr.mxu0 0.0
    %1681 = vmatpush1.msra.mxu0 %v1355
    %1682 = vmatprep.subr.mxu0 0.0
    %1683 = vmatpush1.msra.mxu0 0.0
    %1684 = vmatprep.subr.mxu0 0.0
    %1685 = vmatpush1.msra.mxu0 0.0
    %1686 = vmatprep.subr.mxu0 0.0
    %1687 = vmatpush1.msra.mxu0 0.0
    %1688 = vmatprep.subr.mxu0 0.0
    %1689 = vmatpush1.msra.mxu0 0.0
    %1690 = vmatprep.subr.mxu0 0.0
    %1691 = vmatpush1.msra.mxu0 0.0
    %1692 = vmatprep.subr.mxu0 0.0
    %1693 = vmatpush1.msra.mxu0 0.0
    %1694 = vmatprep.subr.mxu0 0.0
    %1695 = vmatpush1.msra.mxu0 0.0
    %1696 = vmatprep.subr.mxu0 0.0
    %1697 = vmatpush1.msra.mxu0 0.0
    %1698 = vmatprep.subr.mxu0 0.0
    %1699 = vmatpush1.msra.mxu0 0.0
    %1700 = vmatprep.subr.mxu0 0.0
    %1701 = vmatpush1.msra.mxu0 0.0
    %1702 = vmatprep.subr.mxu0 0.0
    %1703 = vmatpush1.msra.mxu0 0.0
    %1704 = vmatprep.subr.mxu0 0.0
    %1705 = vmatpush1.msra.mxu0 0.0
    %1706 = vmatprep.subr.mxu0 0.0
    %1707 = vmatpush1.msra.mxu0 0.0
    %1708 = vmatprep.subr.mxu0 0.0
    %1709 = vmatpush1.msra.mxu0 0.0
    %1710 = vmatprep.subr.mxu0 0.0
    %1711 = vmatpush1.msra.mxu0 0.0
    %1712 = vmatprep.subr.mxu0 0.0
    %1713 = vmatpush1.msra.mxu0 0.0
    %1714 = vmatprep.subr.mxu0 0.0
    %1715 = vmatpush1.msra.mxu0 0.0
    %1716 = vmatprep.subr.mxu0 0.0
    %1717 = vmatpush1.msra.mxu0 0.0
    %1718 = vmatprep.subr.mxu0 0.0
    %1719 = vmatpush1.msra.mxu0 0.0
    %1720 = vmatprep.subr.mxu0 0.0
    %1721 = vmatpush1.msra.mxu0 0.0
    %1722 = vmatprep.subr.mxu0 0.0
    %1723 = vmatpush1.msra.mxu0 0.0
    %1724 = vmatprep.subr.mxu0 0.0
    %1725 = vmatpush1.msra.mxu0 0.0
    %1726 = vmatprep.subr.mxu0 0.0
    %1727 = vmatpush1.msra.mxu0 0.0
    %1728 = vmatprep.subr.mxu0 0.0
    %1729 = vmatpush1.msra.mxu0 0.0
    %1730 = vmatprep.subr.mxu0 0.0
    %1731 = vmatpush1.msra.mxu0 0.0
    %1732 = vmatprep.subr.mxu0 0.0
    %1733 = vmatpush1.msra.mxu0 0.0
    %1734 = vmatprep.subr.mxu0 0.0
    %1735 = vmatpush1.msra.mxu0 0.0
    %1736 = vmatprep.subr.mxu0 0.0
    %1737 = vmatpush1.msra.mxu0 0.0
    %1738 = vmatprep.mubr.f32.mxu0 0.0
    %1739 = vmatmul.mubr.f32.gmra.mrb[0].mxu0 %v1672
    %v1740 = vpop.f32.mrb[0].mxu0
    %v1741 = vadd.f32 0.0, %v1740
    %v1742 = vpop.f32.mrb[0].mxu0
    %1743 = vdwg.mxu0
    %v1744 = vadd.f32 %v1668, %v1741
    %v1745 = vxor.u32 %v1744, 2147483648
    %v1746 = vmul.f32 %v1745, 1.442695
    %v1747 = vpow.pop %v1746
    %v1748 = vadd.f32 %v1747, 1.0
    %v1749 = vrcp.pop %v1748
    %v1750 = vmul.f32 1.0, %v1749
    %v1751 = vtanh.pop %v1744
    %v1752 = vsel %vm305, %v1751, %v1750
    %v1753 = vmul.f32 %v1752, %v1661
    %1755 = vrot.lane.b32.xlu0 %v1752, 64
    %v1756 = vpop.permute.xlu0 %1755
    %v1758 = vmul.f32 %v1752, %v1756
    %1760 = vrot.lane.b32.xlu0 %v1758, 32
    %v1761 = vpop.permute.xlu0 %1760
    %v1763 = vadd.f32 %v1753, %v1761
    %v1764 = vtanh.pop %v1763
    %1766 = vrot.lane.b32.xlu0 %v1764, 64
    %v1767 = vpop.permute.xlu0 %1766
    %v1769 = vmul.f32 %v1752, %v1767
    %v1770 = vld [vmem:[#allocation2 + $0x8] sm:$0x3]
    %1772 = vrot.lane.b32.xlu0 %v1769, 32
    %v1773 = vpop.permute.xlu0 %1772
    %v1774 = vsel %vm317, %v1773, 0
    %1776 = vmatprep.subr.mxu0 0.0
    %1777 = vmatpush1.msra.mxu0 %v1352
    %1778 = vmatprep.subr.mxu0 0.0
    %1779 = vmatpush1.msra.mxu0 %v1353
    %1780 = vmatprep.subr.mxu0 0.0
    %1781 = vmatpush1.msra.mxu0 %v1354
    %1782 = vmatprep.subr.mxu0 0.0
    %1783 = vmatpush1.msra.mxu0 %v1355
    %1784 = vmatprep.subr.mxu0 0.0
    %1785 = vmatpush1.msra.mxu0 0.0
    %1786 = vmatprep.subr.mxu0 0.0
    %1787 = vmatpush1.msra.mxu0 0.0
    %1788 = vmatprep.subr.mxu0 0.0
    %1789 = vmatpush1.msra.mxu0 0.0
    %1790 = vmatprep.subr.mxu0 0.0
    %1791 = vmatpush1.msra.mxu0 0.0
    %1792 = vmatprep.subr.mxu0 0.0
    %1793 = vmatpush1.msra.mxu0 0.0
    %1794 = vmatprep.subr.mxu0 0.0
    %1795 = vmatpush1.msra.mxu0 0.0
    %1796 = vmatprep.subr.mxu0 0.0
    %1797 = vmatpush1.msra.mxu0 0.0
    %1798 = vmatprep.subr.mxu0 0.0
    %1799 = vmatpush1.msra.mxu0 0.0
    %1800 = vmatprep.subr.mxu0 0.0
    %1801 = vmatpush1.msra.mxu0 0.0
    %1802 = vmatprep.subr.mxu0 0.0
    %1803 = vmatpush1.msra.mxu0 0.0
    %1804 = vmatprep.subr.mxu0 0.0
    %1805 = vmatpush1.msra.mxu0 0.0
    %1806 = vmatprep.subr.mxu0 0.0
    %1807 = vmatpush1.msra.mxu0 0.0
    %1808 = vmatprep.subr.mxu0 0.0
    %1809 = vmatpush1.msra.mxu0 0.0
    %1810 = vmatprep.subr.mxu0 0.0
    %1811 = vmatpush1.msra.mxu0 0.0
    %1812 = vmatprep.subr.mxu0 0.0
    %1813 = vmatpush1.msra.mxu0 0.0
    %1814 = vmatprep.subr.mxu0 0.0
    %1815 = vmatpush1.msra.mxu0 0.0
    %1816 = vmatprep.subr.mxu0 0.0
    %1817 = vmatpush1.msra.mxu0 0.0
    %1818 = vmatprep.subr.mxu0 0.0
    %1819 = vmatpush1.msra.mxu0 0.0
    %1820 = vmatprep.subr.mxu0 0.0
    %1821 = vmatpush1.msra.mxu0 0.0
    %1822 = vmatprep.subr.mxu0 0.0
    %1823 = vmatpush1.msra.mxu0 0.0
    %1824 = vmatprep.subr.mxu0 0.0
    %1825 = vmatpush1.msra.mxu0 0.0
    %1826 = vmatprep.subr.mxu0 0.0
    %1827 = vmatpush1.msra.mxu0 0.0
    %1828 = vmatprep.subr.mxu0 0.0
    %1829 = vmatpush1.msra.mxu0 0.0
    %1830 = vmatprep.subr.mxu0 0.0
    %1831 = vmatpush1.msra.mxu0 0.0
    %1832 = vmatprep.subr.mxu0 0.0
    %1833 = vmatpush1.msra.mxu0 0.0
    %1834 = vmatprep.subr.mxu0 0.0
    %1835 = vmatpush1.msra.mxu0 0.0
    %1836 = vmatprep.subr.mxu0 0.0
    %1837 = vmatpush1.msra.mxu0 0.0
    %1838 = vmatprep.subr.mxu0 0.0
    %1839 = vmatpush1.msra.mxu0 0.0
    %1840 = vmatprep.mubr.f32.mxu0 0.0
    %1841 = vmatmul.mubr.f32.gmra.mrb[0].mxu0 %v1774
    %v1842 = vpop.f32.mrb[0].mxu0
    %v1843 = vadd.f32 0.0, %v1842
    %v1844 = vpop.f32.mrb[0].mxu0
    %1845 = vdwg.mxu0
    %v1846 = vadd.f32 %v1770, %v1843
    %v1847 = vxor.u32 %v1846, 2147483648
    %v1848 = vmul.f32 %v1847, 1.442695
    %v1849 = vpow.pop %v1848
    %v1850 = vadd.f32 %v1849, 1.0
    %v1851 = vrcp.pop %v1850
    %v1852 = vmul.f32 1.0, %v1851
    %v1853 = vtanh.pop %v1846
    %v1854 = vsel %vm305, %v1853, %v1852
    %v1855 = vmul.f32 %v1854, %v1763
    %1857 = vrot.lane.b32.xlu0 %v1854, 64
    %v1858 = vpop.permute.xlu0 %1857
    %v1860 = vmul.f32 %v1854, %v1858
    %1862 = vrot.lane.b32.xlu0 %v1860, 32
    %v1863 = vpop.permute.xlu0 %1862
    %v1865 = vadd.f32 %v1855, %v1863
    %v1866 = vtanh.pop %v1865
    %1868 = vrot.lane.b32.xlu0 %v1866, 64
    %v1869 = vpop.permute.xlu0 %1868
    %v1871 = vmul.f32 %v1854, %v1869
    %v1872 = vld [vmem:[#allocation2 + $0xa] sm:$0x3]
    %1874 = vrot.lane.b32.xlu0 %v1871, 32
    %v1875 = vpop.permute.xlu0 %1874
    %v1876 = vsel %vm317, %v1875, 0
    %1878 = vmatprep.subr.mxu0 0.0
    %1879 = vmatpush1.msra.mxu0 %v1352
    %1880 = vmatprep.subr.mxu0 0.0
    %1881 = vmatpush1.msra.mxu0 %v1353
    %1882 = vmatprep.subr.mxu0 0.0
    %1883 = vmatpush1.msra.mxu0 %v1354
    %1884 = vmatprep.subr.mxu0 0.0
    %1885 = vmatpush1.msra.mxu0 %v1355
    %1886 = vmatprep.subr.mxu0 0.0
    %1887 = vmatpush1.msra.mxu0 0.0
    %1888 = vmatprep.subr.mxu0 0.0
    %1889 = vmatpush1.msra.mxu0 0.0
    %1890 = vmatprep.subr.mxu0 0.0
    %1891 = vmatpush1.msra.mxu0 0.0
    %1892 = vmatprep.subr.mxu0 0.0
    %1893 = vmatpush1.msra.mxu0 0.0
    %1894 = vmatprep.subr.mxu0 0.0
    %1895 = vmatpush1.msra.mxu0 0.0
    %1896 = vmatprep.subr.mxu0 0.0
    %1897 = vmatpush1.msra.mxu0 0.0
    %1898 = vmatprep.subr.mxu0 0.0
    %1899 = vmatpush1.msra.mxu0 0.0
    %1900 = vmatprep.subr.mxu0 0.0
    %1901 = vmatpush1.msra.mxu0 0.0
    %1902 = vmatprep.subr.mxu0 0.0
    %1903 = vmatpush1.msra.mxu0 0.0
    %1904 = vmatprep.subr.mxu0 0.0
    %1905 = vmatpush1.msra.mxu0 0.0
    %1906 = vmatprep.subr.mxu0 0.0
    %1907 = vmatpush1.msra.mxu0 0.0
    %1908 = vmatprep.subr.mxu0 0.0
    %1909 = vmatpush1.msra.mxu0 0.0
    %1910 = vmatprep.subr.mxu0 0.0
    %1911 = vmatpush1.msra.mxu0 0.0
    %1912 = vmatprep.subr.mxu0 0.0
    %1913 = vmatpush1.msra.mxu0 0.0
    %1914 = vmatprep.subr.mxu0 0.0
    %1915 = vmatpush1.msra.mxu0 0.0
    %1916 = vmatprep.subr.mxu0 0.0
    %1917 = vmatpush1.msra.mxu0 0.0
    %1918 = vmatprep.subr.mxu0 0.0
    %1919 = vmatpush1.msra.mxu0 0.0
    %1920 = vmatprep.subr.mxu0 0.0
    %1921 = vmatpush1.msra.mxu0 0.0
    %1922 = vmatprep.subr.mxu0 0.0
    %1923 = vmatpush1.msra.mxu0 0.0
    %1924 = vmatprep.subr.mxu0 0.0
    %1925 = vmatpush1.msra.mxu0 0.0
    %1926 = vmatprep.subr.mxu0 0.0
    %1927 = vmatpush1.msra.mxu0 0.0
    %1928 = vmatprep.subr.mxu0 0.0
    %1929 = vmatpush1.msra.mxu0 0.0
    %1930 = vmatprep.subr.mxu0 0.0
    %1931 = vmatpush1.msra.mxu0 0.0
    %1932 = vmatprep.subr.mxu0 0.0
    %1933 = vmatpush1.msra.mxu0 0.0
    %1934 = vmatprep.subr.mxu0 0.0
    %1935 = vmatpush1.msra.mxu0 0.0
    %1936 = vmatprep.subr.mxu0 0.0
    %1937 = vmatpush1.msra.mxu0 0.0
    %1938 = vmatprep.subr.mxu0 0.0
    %1939 = vmatpush1.msra.mxu0 0.0
    %1940 = vmatprep.subr.mxu0 0.0
    %1941 = vmatpush1.msra.mxu0 0.0
    %1942 = vmatprep.mubr.f32.mxu0 0.0
    %1943 = vmatmul.mubr.f32.gmra.mrb[0].mxu0 %v1876
    %v1944 = vpop.f32.mrb[0].mxu0
    %v1945 = vadd.f32 0.0, %v1944
    %v1946 = vpop.f32.mrb[0].mxu0
    %1947 = vdwg.mxu0
    %v1948 = vadd.f32 %v1872, %v1945
    %v1949 = vxor.u32 %v1948, 2147483648
    %v1950 = vmul.f32 %v1949, 1.442695
    %v1951 = vpow.pop %v1950
    %v1952 = vadd.f32 %v1951, 1.0
    %v1953 = vrcp.pop %v1952
    %v1954 = vmul.f32 1.0, %v1953
    %v1955 = vtanh.pop %v1948
    %v1956 = vsel %vm305, %v1955, %v1954
    %v1957 = vmul.f32 %v1956, %v1865
    %1959 = vrot.lane.b32.xlu0 %v1956, 64
    %v1960 = vpop.permute.xlu0 %1959
    %v1962 = vmul.f32 %v1956, %v1960
    %1964 = vrot.lane.b32.xlu0 %v1962, 32
    %v1965 = vpop.permute.xlu0 %1964
    %v1967 = vadd.f32 %v1957, %v1965
    %v1968 = vtanh.pop %v1967
    %1970 = vrot.lane.b32.xlu0 %v1968, 64
    %v1971 = vpop.permute.xlu0 %1970
    %v1973 = vmul.f32 %v1956, %v1971
    %v1974 = vld [vmem:[#allocation2 + $0xc] sm:$0x3]
    %1976 = vrot.lane.b32.xlu0 %v1973, 32
    %v1977 = vpop.permute.xlu0 %1976
    %v1978 = vsel %vm317, %v1977, 0
    %1980 = vmatprep.subr.mxu0 0.0
    %1981 = vmatpush1.msra.mxu0 %v1352
    %1982 = vmatprep.subr.mxu0 0.0
    %1983 = vmatpush1.msra.mxu0 %v1353
    %1984 = vmatprep.subr.mxu0 0.0
    %1985 = vmatpush1.msra.mxu0 %v1354
    %1986 = vmatprep.subr.mxu0 0.0
    %1987 = vmatpush1.msra.mxu0 %v1355
    %1988 = vmatprep.subr.mxu0 0.0
    %1989 = vmatpush1.msra.mxu0 0.0
    %1990 = vmatprep.subr.mxu0 0.0
    %1991 = vmatpush1.msra.mxu0 0.0
    %1992 = vmatprep.subr.mxu0 0.0
    %1993 = vmatpush1.msra.mxu0 0.0
    %1994 = vmatprep.subr.mxu0 0.0
    %1995 = vmatpush1.msra.mxu0 0.0
    %1996 = vmatprep.subr.mxu0 0.0
    %1997 = vmatpush1.msra.mxu0 0.0
    %1998 = vmatprep.subr.mxu0 0.0
    %1999 = vmatpush1.msra.mxu0 0.0
    %2000 = vmatprep.subr.mxu0 0.0
    %2001 = vmatpush1.msra.mxu0 0.0
    %2002 = vmatprep.subr.mxu0 0.0
    %2003 = vmatpush1.msra.mxu0 0.0
    %2004 = vmatprep.subr.mxu0 0.0
    %2005 = vmatpush1.msra.mxu0 0.0
    %2006 = vmatprep.subr.mxu0 0.0
    %2007 = vmatpush1.msra.mxu0 0.0
    %2008 = vmatprep.subr.mxu0 0.0
    %2009 = vmatpush1.msra.mxu0 0.0
    %2010 = vmatprep.subr.mxu0 0.0
    %2011 = vmatpush1.msra.mxu0 0.0
    %2012 = vmatprep.subr.mxu0 0.0
    %2013 = vmatpush1.msra.mxu0 0.0
    %2014 = vmatprep.subr.mxu0 0.0
    %2015 = vmatpush1.msra.mxu0 0.0
    %2016 = vmatprep.subr.mxu0 0.0
    %2017 = vmatpush1.msra.mxu0 0.0
    %2018 = vmatprep.subr.mxu0 0.0
    %2019 = vmatpush1.msra.mxu0 0.0
    %2020 = vmatprep.subr.mxu0 0.0
    %2021 = vmatpush1.msra.mxu0 0.0
    %2022 = vmatprep.subr.mxu0 0.0
    %2023 = vmatpush1.msra.mxu0 0.0
    %2024 = vmatprep.subr.mxu0 0.0
    %2025 = vmatpush1.msra.mxu0 0.0
    %2026 = vmatprep.subr.mxu0 0.0
    %2027 = vmatpush1.msra.mxu0 0.0
    %2028 = vmatprep.subr.mxu0 0.0
    %2029 = vmatpush1.msra.mxu0 0.0
    %2030 = vmatprep.subr.mxu0 0.0
    %2031 = vmatpush1.msra.mxu0 0.0
    %2032 = vmatprep.subr.mxu0 0.0
    %2033 = vmatpush1.msra.mxu0 0.0
    %2034 = vmatprep.subr.mxu0 0.0
    %2035 = vmatpush1.msra.mxu0 0.0
    %2036 = vmatprep.subr.mxu0 0.0
    %2037 = vmatpush1.msra.mxu0 0.0
    %2038 = vmatprep.subr.mxu0 0.0
    %2039 = vmatpush1.msra.mxu0 0.0
    %2040 = vmatprep.subr.mxu0 0.0
    %2041 = vmatpush1.msra.mxu0 0.0
    %2042 = vmatprep.subr.mxu0 0.0
    %2043 = vmatpush1.msra.mxu0 0.0
    %2044 = vmatprep.mubr.f32.mxu0 0.0
    %2045 = vmatmul.mubr.f32.gmra.mrb[0].mxu0 %v1978
    %v2046 = vpop.f32.mrb[0].mxu0
    %v2047 = vadd.f32 0.0, %v2046
    %v2048 = vpop.f32.mrb[0].mxu0
    %2049 = vdwg.mxu0
    %v2050 = vadd.f32 %v1974, %v2047
    %v2051 = vxor.u32 %v2050, 2147483648
    %v2052 = vmul.f32 %v2051, 1.442695
    %v2053 = vpow.pop %v2052
    %v2054 = vadd.f32 %v2053, 1.0
    %v2055 = vrcp.pop %v2054
    %v2056 = vmul.f32 1.0, %v2055
    %v2057 = vtanh.pop %v2050
    %v2058 = vsel %vm305, %v2057, %v2056
    %v2059 = vmul.f32 %v2058, %v1967
    %2061 = vrot.lane.b32.xlu0 %v2058, 64
    %v2062 = vpop.permute.xlu0 %2061
    %v2064 = vmul.f32 %v2058, %v2062
    %2066 = vrot.lane.b32.xlu0 %v2064, 32
    %v2067 = vpop.permute.xlu0 %2066
    %v2069 = vadd.f32 %v2059, %v2067
    %v2070 = vtanh.pop %v2069
    %2072 = vrot.lane.b32.xlu0 %v2070, 64
    %v2073 = vpop.permute.xlu0 %2072
    %v2075 = vmul.f32 %v2058, %v2073
    %v2076 = vld [vmem:[#allocation2 + $0xe] sm:$0x3]
    %2078 = vrot.lane.b32.xlu0 %v2075, 32
    %v2079 = vpop.permute.xlu0 %2078
    %v2080 = vsel %vm317, %v2079, 0
    %2082 = vmatprep.subr.mxu0 0.0
    %2083 = vmatpush1.msra.mxu0 %v1352
    %2084 = vmatprep.subr.mxu0 0.0
    %2085 = vmatpush1.msra.mxu0 %v1353
    %2086 = vmatprep.subr.mxu0 0.0
    %2087 = vmatpush1.msra.mxu0 %v1354
    %2088 = vmatprep.subr.mxu0 0.0
    %2089 = vmatpush1.msra.mxu0 %v1355
    %2090 = vmatprep.subr.mxu0 0.0
    %2091 = vmatpush1.msra.mxu0 0.0
    %2092 = vmatprep.subr.mxu0 0.0
    %2093 = vmatpush1.msra.mxu0 0.0
    %2094 = vmatprep.subr.mxu0 0.0
    %2095 = vmatpush1.msra.mxu0 0.0
    %2096 = vmatprep.subr.mxu0 0.0
    %2097 = vmatpush1.msra.mxu0 0.0
    %2098 = vmatprep.subr.mxu0 0.0
    %2099 = vmatpush1.msra.mxu0 0.0
    %2100 = vmatprep.subr.mxu0 0.0
    %2101 = vmatpush1.msra.mxu0 0.0
    %2102 = vmatprep.subr.mxu0 0.0
    %2103 = vmatpush1.msra.mxu0 0.0
    %2104 = vmatprep.subr.mxu0 0.0
    %2105 = vmatpush1.msra.mxu0 0.0
    %2106 = vmatprep.subr.mxu0 0.0
    %2107 = vmatpush1.msra.mxu0 0.0
    %2108 = vmatprep.subr.mxu0 0.0
    %2109 = vmatpush1.msra.mxu0 0.0
    %2110 = vmatprep.subr.mxu0 0.0
    %2111 = vmatpush1.msra.mxu0 0.0
    %2112 = vmatprep.subr.mxu0 0.0
    %2113 = vmatpush1.msra.mxu0 0.0
    %2114 = vmatprep.subr.mxu0 0.0
    %2115 = vmatpush1.msra.mxu0 0.0
    %2116 = vmatprep.subr.mxu0 0.0
    %2117 = vmatpush1.msra.mxu0 0.0
    %2118 = vmatprep.subr.mxu0 0.0
    %2119 = vmatpush1.msra.mxu0 0.0
    %2120 = vmatprep.subr.mxu0 0.0
    %2121 = vmatpush1.msra.mxu0 0.0
    %2122 = vmatprep.subr.mxu0 0.0
    %2123 = vmatpush1.msra.mxu0 0.0
    %2124 = vmatprep.subr.mxu0 0.0
    %2125 = vmatpush1.msra.mxu0 0.0
    %2126 = vmatprep.subr.mxu0 0.0
    %2127 = vmatpush1.msra.mxu0 0.0
    %2128 = vmatprep.subr.mxu0 0.0
    %2129 = vmatpush1.msra.mxu0 0.0
    %2130 = vmatprep.subr.mxu0 0.0
    %2131 = vmatpush1.msra.mxu0 0.0
    %2132 = vmatprep.subr.mxu0 0.0
    %2133 = vmatpush1.msra.mxu0 0.0
    %2134 = vmatprep.subr.mxu0 0.0
    %2135 = vmatpush1.msra.mxu0 0.0
    %2136 = vmatprep.subr.mxu0 0.0
    %2137 = vmatpush1.msra.mxu0 0.0
    %2138 = vmatprep.subr.mxu0 0.0
    %2139 = vmatpush1.msra.mxu0 0.0
    %2140 = vmatprep.subr.mxu0 0.0
    %2141 = vmatpush1.msra.mxu0 0.0
    %2142 = vmatprep.subr.mxu0 0.0
    %2143 = vmatpush1.msra.mxu0 0.0
    %2144 = vmatprep.subr.mxu0 0.0
    %2145 = vmatpush1.msra.mxu0 0.0
    %2146 = vmatprep.mubr.f32.mxu0 0.0
    %2147 = vmatmul.mubr.f32.gmra.mrb[0].mxu0 %v2080
    %v2148 = vpop.f32.mrb[0].mxu0
    %v2149 = vadd.f32 0.0, %v2148
    %v2150 = vpop.f32.mrb[0].mxu0
    %2151 = vdwg.mxu0
    %v2152 = vadd.f32 %v2076, %v2149
    %v2153 = vxor.u32 %v2152, 2147483648
    %v2154 = vmul.f32 %v2153, 1.442695
    %v2155 = vpow.pop %v2154
    %v2156 = vadd.f32 %v2155, 1.0
    %v2157 = vrcp.pop %v2156
    %v2158 = vmul.f32 1.0, %v2157
    %v2159 = vtanh.pop %v2152
    %v2160 = vsel %vm305, %v2159, %v2158
    %v2161 = vmul.f32 %v2160, %v2069
    %2163 = vrot.lane.b32.xlu0 %v2160, 64
    %v2164 = vpop.permute.xlu0 %2163
    %v2166 = vmul.f32 %v2160, %v2164
    %2168 = vrot.lane.b32.xlu0 %v2166, 32
    %v2169 = vpop.permute.xlu0 %2168
    %v2171 = vadd.f32 %v2161, %v2169
    %v2172 = vtanh.pop %v2171
    %2174 = vrot.lane.b32.xlu0 %v2172, 64
    %v2175 = vpop.permute.xlu0 %2174
    %v2177 = vmul.f32 %v2160, %v2175
    %2179 = vrot.lane.b32.xlu0 %v2177, 32
    %v2180 = vpop.permute.xlu0 %2179
    %s2182 = scalar_lea.vmem [#allocation14], 2
    %2183 = vst.msk [vmem:[%s2182] sm:$0x3] %vm1229, %v2180
    %2185 = vrot.lane.b32.xlu0 %v2171, 96
    %v2186 = vpop.permute.xlu0 %2185
    %s2188 = scalar_lea.vmem [#allocation16], 2
    %2189 = vst.msk [vmem:[%s2188] sm:$0x3] %vm1229, %v2186
    %v2190 = vld [vmem:[#allocation10] sm:$0xff]
    %v2191 = vld [vmem:[#allocation10 + $0x8] sm:$0xff]
    %v2192 = vld [vmem:[#allocation10 + $0x10] sm:$0xff]
    %v2193 = vld [vmem:[#allocation10 + $0x18] sm:$0xff]
    %v2194 = vld [vmem:[#allocation11] sm:$0x1]
    %v2195 = vrot.slane %v1565, 7
    %v2197 = vrot.slane %v1667, 6
    %v2199 = vrot.slane %v1769, 5
    %v2201 = vrot.slane %v1871, 4
    %v2203 = vrot.slane %v1973, 3
    %v2205 = vrot.slane %v2075, 2
    %v2207 = vrot.slane %v2177, 1
    %v2209 = vsel %vm192, %v1463, %v2195
    %v2210 = vsel %vm194, %v2209, %v2197
    %v2211 = vsel %vm196, %v2210, %v2199
    %v2212 = vsel %vm198, %v2211, %v2201
    %v2213 = vsel %vm200, %v2212, %v2203
    %v2214 = vsel %vm202, %v2213, %v2205
    %v2215 = vsel %vm204, %v2214, %v2207
    %v2217 = vlaneseq
    %v2218 = vshrl.u32 %v2217, 7
    %v2219 = vsub.s32 0, %v2218
    %v2220 = vrot.slane %v2194, %v2219
    %2223 = vrot.lane.b32.xlu0 %v2215, 32
    %v2224 = vpop.permute.xlu0 %2223
    %v2225 = vsel %vm317, %v2224, 0
    %2227 = vmatprep.subr.mxu0 0.0
    %2228 = vmatpush1.msra.mxu0 %v2190
    %2229 = vmatprep.subr.mxu0 0.0
    %2230 = vmatpush1.msra.mxu0 %v2191
    %2231 = vmatprep.subr.mxu0 0.0
    %2232 = vmatpush1.msra.mxu0 %v2192
    %2233 = vmatprep.subr.mxu0 0.0
    %2234 = vmatpush1.msra.mxu0 %v2193
    %2235 = vmatprep.subr.mxu0 0.0
    %2236 = vmatpush1.msra.mxu0 0.0
    %2237 = vmatprep.subr.mxu0 0.0
    %2238 = vmatpush1.msra.mxu0 0.0
    %2239 = vmatprep.subr.mxu0 0.0
    %2240 = vmatpush1.msra.mxu0 0.0
    %2241 = vmatprep.subr.mxu0 0.0
    %2242 = vmatpush1.msra.mxu0 0.0
    %2243 = vmatprep.subr.mxu0 0.0
    %2244 = vmatpush1.msra.mxu0 0.0
    %2245 = vmatprep.subr.mxu0 0.0
    %2246 = vmatpush1.msra.mxu0 0.0
    %2247 = vmatprep.subr.mxu0 0.0
    %2248 = vmatpush1.msra.mxu0 0.0
    %2249 = vmatprep.subr.mxu0 0.0
    %2250 = vmatpush1.msra.mxu0 0.0
    %2251 = vmatprep.subr.mxu0 0.0
    %2252 = vmatpush1.msra.mxu0 0.0
    %2253 = vmatprep.subr.mxu0 0.0
    %2254 = vmatpush1.msra.mxu0 0.0
    %2255 = vmatprep.subr.mxu0 0.0
    %2256 = vmatpush1.msra.mxu0 0.0
    %2257 = vmatprep.subr.mxu0 0.0
    %2258 = vmatpush1.msra.mxu0 0.0
    %2259 = vmatprep.subr.mxu0 0.0
    %2260 = vmatpush1.msra.mxu0 0.0
    %2261 = vmatprep.subr.mxu0 0.0
    %2262 = vmatpush1.msra.mxu0 0.0
    %2263 = vmatprep.subr.mxu0 0.0
    %2264 = vmatpush1.msra.mxu0 0.0
    %2265 = vmatprep.subr.mxu0 0.0
    %2266 = vmatpush1.msra.mxu0 0.0
    %2267 = vmatprep.subr.mxu0 0.0
    %2268 = vmatpush1.msra.mxu0 0.0
    %2269 = vmatprep.subr.mxu0 0.0
    %2270 = vmatpush1.msra.mxu0 0.0
    %2271 = vmatprep.subr.mxu0 0.0
    %2272 = vmatpush1.msra.mxu0 0.0
    %2273 = vmatprep.subr.mxu0 0.0
    %2274 = vmatpush1.msra.mxu0 0.0
    %2275 = vmatprep.subr.mxu0 0.0
    %2276 = vmatpush1.msra.mxu0 0.0
    %2277 = vmatprep.subr.mxu0 0.0
    %2278 = vmatpush1.msra.mxu0 0.0
    %2279 = vmatprep.subr.mxu0 0.0
    %2280 = vmatpush1.msra.mxu0 0.0
    %2281 = vmatprep.subr.mxu0 0.0
    %2282 = vmatpush1.msra.mxu0 0.0
    %2283 = vmatprep.subr.mxu0 0.0
    %2284 = vmatpush1.msra.mxu0 0.0
    %2285 = vmatprep.subr.mxu0 0.0
    %2286 = vmatpush1.msra.mxu0 0.0
    %2287 = vmatprep.subr.mxu0 0.0
    %2288 = vmatpush1.msra.mxu0 0.0
    %2289 = vmatprep.subr.mxu0 0.0
    %2290 = vmatpush1.msra.mxu0 0.0
    %2291 = vmatprep.mubr.f32.mxu0 0.0
    %2292 = vmatmul.mubr.f32.gmra.mrb[0].mxu0 %v2225
    %v2293 = vpop.f32.mrb[0].mxu0
    %v2294 = vadd.f32 %v2220, %v2293
    %v2295 = vpop.f32.mrb[0].mxu0
    %2296 = vdwg.mxu0
    %2297 = vst.msk [vmem:[#allocation13] sm:$0xff] %vm221, %v2294
    %v2298 = vrot.slane %v1463, 1
    %v2300 = vrot.slane %v1667, 7
    %v2302 = vrot.slane %v1769, 6
    %v2304 = vrot.slane %v1871, 5
    %v2306 = vrot.slane %v1973, 4
    %v2308 = vrot.slane %v2075, 3
    %v2310 = vrot.slane %v2177, 2
    %v2312 = vsel %vm192, %v2298, %v1565
    %v2313 = vsel %vm194, %v2312, %v2300
    %v2314 = vsel %vm196, %v2313, %v2302
    %v2315 = vsel %vm198, %v2314, %v2304
    %v2316 = vsel %vm200, %v2315, %v2306
    %v2317 = vsel %vm202, %v2316, %v2308
    %v2318 = vsel %vm204, %v2317, %v2310
    %2320 = vrot.lane.b32.xlu0 %v2318, 32
    %v2321 = vpop.permute.xlu0 %2320
    %v2322 = vsel %vm317, %v2321, 0
    %2324 = vmatprep.subr.mxu0 0.0
    %2325 = vmatpush1.msra.mxu0 %v2190
    %2326 = vmatprep.subr.mxu0 0.0
    %2327 = vmatpush1.msra.mxu0 %v2191
    %2328 = vmatprep.subr.mxu0 0.0
    %2329 = vmatpush1.msra.mxu0 %v2192
    %2330 = vmatprep.subr.mxu0 0.0
    %2331 = vmatpush1.msra.mxu0 %v2193
    %2332 = vmatprep.subr.mxu0 0.0
    %2333 = vmatpush1.msra.mxu0 0.0
    %2334 = vmatprep.subr.mxu0 0.0
    %2335 = vmatpush1.msra.mxu0 0.0
    %2336 = vmatprep.subr.mxu0 0.0
    %2337 = vmatpush1.msra.mxu0 0.0
    %2338 = vmatprep.subr.mxu0 0.0
    %2339 = vmatpush1.msra.mxu0 0.0
    %2340 = vmatprep.subr.mxu0 0.0
    %2341 = vmatpush1.msra.mxu0 0.0
    %2342 = vmatprep.subr.mxu0 0.0
    %2343 = vmatpush1.msra.mxu0 0.0
    %2344 = vmatprep.subr.mxu0 0.0
    %2345 = vmatpush1.msra.mxu0 0.0
    %2346 = vmatprep.subr.mxu0 0.0
    %2347 = vmatpush1.msra.mxu0 0.0
    %2348 = vmatprep.subr.mxu0 0.0
    %2349 = vmatpush1.msra.mxu0 0.0
    %2350 = vmatprep.subr.mxu0 0.0
    %2351 = vmatpush1.msra.mxu0 0.0
    %2352 = vmatprep.subr.mxu0 0.0
    %2353 = vmatpush1.msra.mxu0 0.0
    %2354 = vmatprep.subr.mxu0 0.0
    %2355 = vmatpush1.msra.mxu0 0.0
    %2356 = vmatprep.subr.mxu0 0.0
    %2357 = vmatpush1.msra.mxu0 0.0
    %2358 = vmatprep.subr.mxu0 0.0
    %2359 = vmatpush1.msra.mxu0 0.0
    %2360 = vmatprep.subr.mxu0 0.0
    %2361 = vmatpush1.msra.mxu0 0.0
    %2362 = vmatprep.subr.mxu0 0.0
    %2363 = vmatpush1.msra.mxu0 0.0
    %2364 = vmatprep.subr.mxu0 0.0
    %2365 = vmatpush1.msra.mxu0 0.0
    %2366 = vmatprep.subr.mxu0 0.0
    %2367 = vmatpush1.msra.mxu0 0.0
    %2368 = vmatprep.subr.mxu0 0.0
    %2369 = vmatpush1.msra.mxu0 0.0
    %2370 = vmatprep.subr.mxu0 0.0
    %2371 = vmatpush1.msra.mxu0 0.0
    %2372 = vmatprep.subr.mxu0 0.0
    %2373 = vmatpush1.msra.mxu0 0.0
    %2374 = vmatprep.subr.mxu0 0.0
    %2375 = vmatpush1.msra.mxu0 0.0
    %2376 = vmatprep.subr.mxu0 0.0
    %2377 = vmatpush1.msra.mxu0 0.0
    %2378 = vmatprep.subr.mxu0 0.0
    %2379 = vmatpush1.msra.mxu0 0.0
    %2380 = vmatprep.subr.mxu0 0.0
    %2381 = vmatpush1.msra.mxu0 0.0
    %2382 = vmatprep.subr.mxu0 0.0
    %2383 = vmatpush1.msra.mxu0 0.0
    %2384 = vmatprep.subr.mxu0 0.0
    %2385 = vmatpush1.msra.mxu0 0.0
    %2386 = vmatprep.subr.mxu0 0.0
    %2387 = vmatpush1.msra.mxu0 0.0
    %2388 = vmatprep.mubr.f32.mxu0 0.0
    %2389 = vmatmul.mubr.f32.gmra.mrb[0].mxu0 %v2322
    %v2390 = vpop.f32.mrb[0].mxu0
    %v2391 = vadd.f32 %v2220, %v2390
    %v2392 = vpop.f32.mrb[0].mxu0
    %2393 = vdwg.mxu0
    %s2394 = scalar_lea.vmem [#allocation13], 8
    %2395 = vst.msk [vmem:[%s2394] sm:$0xff] %vm221, %v2391
    // Predicated region
    $region70: #{decoder_forward.1} parent=1 // pred_check
      _
    $region71: #{decoder_forward.1} parent=1 // pred_check_branch
      %2397 = sbr.rel (0) target = $region73
    $region72: #{decoder_forward.1} parent=1 // pred_region
      %s2399 = ssub.s32 256, 256
      %2400 = vsyncadd [#allocation5], %s2399
      %s2401 = sshll.u32 [#allocation13], 4
      %s2402 = int_to_ptr.vmem [resolvable:$true] %s2401
      %2407 = dma.vmem_to_hbm [thread:$0]  %s2402, 256, %s12, [#allocation5], 128, 128, 8
    $region73: #{decoder_forward.1} parent=1 // pred_fallthru
      _
    // Predicated region
    $region74: #{decoder_forward.1} parent=1 // pred_check
      _
    $region75: #{decoder_forward.1} parent=1 // pred_check_branch
      %2409 = sbr.rel (0) target = $region77
    $region76: #{decoder_forward.1} parent=1 // pred_region
      %s2411 = ssub.s32 64, 64
      %2412 = vsyncadd [#allocation15], %s2411
      %s2413 = sshll.u32 [#allocation14], 4
      %s2414 = int_to_ptr.vmem [resolvable:$true] %s2413
      %2419 = dma.vmem_to_hbm [thread:$0]  %s2414, 64, %s13, [#allocation15], 32, 32, 2
    $region77: #{decoder_forward.1} parent=1 // pred_fallthru
      _
    // Predicated region
    $region78: #{decoder_forward.1} parent=1 // pred_check
      _
    $region79: #{decoder_forward.1} parent=1 // pred_check_branch
      %2421 = sbr.rel (0) target = $region81
    $region80: #{decoder_forward.1} parent=1 // pred_region
      %s2423 = ssub.s32 64, 64
      %2424 = vsyncadd [#allocation15], %s2423
      %s2425 = sshll.u32 [#allocation16], 4
      %s2426 = int_to_ptr.vmem [resolvable:$true] %s2425
      %2431 = dma.vmem_to_hbm [thread:$0]  %s2426, 64, %s14, [#allocation15], 32, 32, 2
    $region81: #{decoder_forward.1} parent=1 // pred_fallthru
      _
    // Predicated region
    $region82: #{decoder_forward.1} parent=1 // pred_check
      _
    $region83: #{decoder_forward.1} parent=1 // pred_check_branch
      %2433 = sbr.rel (0) target = $region85
    $region84: #{decoder_forward.1} parent=1 // pred_region
      %2434 = dma.done [#allocation5], 256
    $region85: #{decoder_forward.1} parent=1 // pred_fallthru
      _
    // Predicated region
    $region86: #{decoder_forward.1} parent=1 // pred_check
      _
    $region87: #{decoder_forward.1} parent=1 // pred_check_branch
      %2436 = sbr.rel (0) target = $region89
    $region88: #{decoder_forward.1} parent=1 // pred_region
      %2437 = dma.done [#allocation15], 64
    $region89: #{decoder_forward.1} parent=1 // pred_fallthru
      _
    // Predicated region
    $region90: #{decoder_forward.1} parent=1 // pred_check
      _
    $region91: #{decoder_forward.1} parent=1 // pred_check_branch
      %2439 = sbr.rel (0) target = $region93
    $region92: #{decoder_forward.1} parent=1 // pred_region
      %2440 = dma.done [#allocation15], 64
    $region93: #{decoder_forward.1} parent=1 // pred_fallthru
      _
    %2441 = vsyncpa [#allocation4], 1
    %2442 = vsyncpa [#allocation9], 1
    %2443 = vsyncpa [#allocation12], 1
    %2444 = vsyncpa [#allocation5], 1
    %2445 = vsyncpa [#allocation15], 1
    %2446 = vsyncpa [#allocation6], 1

</llo_original>
